<compile_context>
chip_gen: v7x
topology: tpu7x:2x2x1
jax: 0.10.0
libtpu: 0.0.40
codegen_flags: <defaults>
</compile_context>

<pallas_src>
import jax
import jax.numpy as jnp
from jax.experimental import pallas as pl
from jax.experimental.pallas import tpu as pltpu

# ---------------- configuration (small synthetic shapes) ----------------
B = 2            # batch
C_IN = 3         # input channels (RGB)
C_IN_PAD = 8     # stem K padded to sublane tile
H = W = 16       # spatial
C_FEAT = 32      # backbone feature channels
A = 1            # anchors per location
NUM_CLASSES = 5  # incl. background (class 0)
MASK_DIM = 8     # prototype / coefficient dim
NUM_OBJS = 4     # ground-truth objects per image (fixed, synthetic)
P = H * W * A    # priors per image
ROWS = B * H * W # backbone rows
# TODO(synk): the fused row<->prior mapping (and in-kernel coef extraction) assumes A == 1.
assert A == 1 and ROWS == B * P

# prediction-slab lane layout (one lane-dense 128-wide row per prior/pixel)
LOC_OFF = 0
CONF_OFF = LOC_OFF + A * 4
COEF_OFF = CONF_OFF + A * NUM_CLASSES
PROTO_OFF = COEF_OFF + A * MASK_DIM
HEAD_DIM = PROTO_OFF + MASK_DIM          # 25 useful lanes
SLAB_PAD = 128                           # lane-dense slab width

# target-slab lane layout (built once per batch, outside the jitted step)
TGT_LOC_OFF = 0
TGT_LAB_OFF = 4
TGT_GTM_OFF = 5
TGT_PAD = 128

LOSS_PAD = 128   # lane-dense partial-loss row
LOSS_SUB = 8     # sublane pad so each image's loss block is a clean (8, 128) tile


# ---------------- the single fused Pallas kernel ----------------
def _fused_kernel(x_ref, w1_ref, b1_ref, wh_ref, bh_ref, tgt_ref, slab_ref, loss_ref):
    # ---- forward: stem 1x1 conv + all 4 heads as one lane-dense matmul (bf16 MXU, f32 acc)
    feat = jnp.dot(x_ref[...], w1_ref[...], preferred_element_type=jnp.float32)
    feat = jnp.maximum(feat + b1_ref[...], 0.0)
    y = jnp.dot(feat.astype(wh_ref.dtype), wh_ref[...],
                preferred_element_type=jnp.float32)
    y = y + bh_ref[...]
    lane = jax.lax.broadcasted_iota(jnp.int32, y.shape, 1)
    # per-head activations by lane range: loc/conf raw, coef tanh, proto relu
    y = jnp.where((lane >= COEF_OFF) & (lane < PROTO_OFF), jnp.tanh(y), y)
    y = jnp.where(lane >= PROTO_OFF, jnp.maximum(y, 0.0), y)
    slab_ref[...] = y.astype(slab_ref.dtype)

    # ---- losses, computed from the in-register slab (per-image partial sums) ----
    t = tgt_ref[...]                                               # (P, 128) target slab
    lab_f = jnp.sum(jnp.where(lane == TGT_LAB_OFF, t, 0.0), axis=-1, keepdims=True)
    pos = (lab_f > 0.5).astype(jnp.float32)                        # (P, 1)
    n_pos = jnp.sum(pos)

    # smooth-L1 box loss on loc lanes, positive priors only
    diff = y - t
    ad = jnp.abs(diff)
    sl1 = jnp.where(ad < 1.0, 0.5 * diff * diff, ad - 0.5)
    loc_mask = (lane < LOC_OFF + 4).astype(jnp.float32)
    loss_b = jnp.sum(sl1 * loc_mask * pos)

    # softmax cross entropy on conf lanes (pad lanes -> -inf BEFORE max / logsumexp)
    conf_mask = (lane >= CONF_OFF) & (lane < CONF_OFF + NUM_CLASSES)
    conf = jnp.where(conf_mask, y, -jnp.inf)
    m = jnp.max(conf, axis=-1, keepdims=True)
    lse = m + jnp.log(jnp.sum(jnp.exp(conf - m), axis=-1, keepdims=True))
    lab_i = lab_f.astype(jnp.int32)
    true_logit = jnp.sum(jnp.where(lane == CONF_OFF + lab_i, y, 0.0),
                         axis=-1, keepdims=True)
    loss_c = jnp.sum(lse - true_logit)

    # prototype-mask BCE: coefficients of the first NUM_OBJS priors of THIS image,
    # unrolled over the (tiny) object count so no transpose / scatter is needed.
    proto = y[:, PROTO_OFF:PROTO_OFF + MASK_DIM]                   # (P, MASK_DIM)
    loss_m = jnp.float32(0.0)
    for o in range(NUM_OBJS):
        coef_o = y[o:o + 1, COEF_OFF:COEF_OFF + MASK_DIM]          # (1, MASK_DIM)
        logit = jnp.sum(proto * coef_o, axis=-1, keepdims=True)    # (P, 1)
        z = jnp.sum(jnp.where(lane == TGT_GTM_OFF + o, t, 0.0),
                    axis=-1, keepdims=True)                        # (P, 1)
        bce = jnp.maximum(logit, 0.0) - logit * z + jnp.log1p(jnp.exp(-jnp.abs(logit)))
        loss_m = loss_m + jnp.sum(bce)

    # lane-dense per-image partial sums: [loss_b, loss_c, loss_m, n_pos, 0...]
    llane = jax.lax.broadcasted_iota(jnp.int32, (LOSS_SUB, LOSS_PAD), 1)
    row = jnp.where(llane == 0, loss_b, 0.0)
    row = jnp.where(llane == 1, loss_c, row)
    row = jnp.where(llane == 2, loss_m, row)
    row = jnp.where(llane == 3, n_pos, row)
    loss_ref[...] = row


def fused_net_and_loss(x_rows, w1, b1, w_heads, b_heads, tgt_slab):
    return pl.pallas_call(
        _fused_kernel,
        out_shape=(jax.ShapeDtypeStruct((ROWS, SLAB_PAD), jnp.float32),
                   jax.ShapeDtypeStruct((B * LOSS_SUB, LOSS_PAD), jnp.float32)),
        grid=(B,),
        in_specs=[
            pl.BlockSpec((P, C_IN_PAD), lambda b: (b, 0)),
            pl.BlockSpec((C_IN_PAD, C_FEAT), lambda b: (0, 0)),
            pl.BlockSpec((1, C_FEAT), lambda b: (0, 0)),
            pl.BlockSpec((C_FEAT, SLAB_PAD), lambda b: (0, 0)),
            pl.BlockSpec((1, SLAB_PAD), lambda b: (0, 0)),
            pl.BlockSpec((P, TGT_PAD), lambda b: (b, 0)),
        ],
        out_specs=(
            pl.BlockSpec((P, SLAB_PAD), lambda b: (b, 0)),
            pl.BlockSpec((LOSS_SUB, LOSS_PAD), lambda b: (b, 0)),
        ),
        compiler_params=pltpu.CompilerParams(
            dimension_semantics=("parallel",),        # v7x: one image per TensorCore
            vmem_limit_bytes=32 * 1024 * 1024,        # well under v7x's 64 MiB physical
        ),
    )(x_rows, w1, b1, w_heads, b_heads, tgt_slab)


# ---------------- one-time preprocessing (hoisted out of the training step) ----------------
def prepare_params(params):
    """Pad / concat / bf16-cast all weights once; weights live bf16 at rest."""
    w1 = jnp.pad(params["w1"], ((0, C_IN_PAD - C_IN), (0, 0))).astype(jnp.bfloat16)
    b1 = params["b1"].reshape(1, C_FEAT).astype(jnp.float32)
    w_heads = jnp.concatenate(
        [params["w_loc"], params["w_conf"], params["w_mask"], params["w_proto"]], axis=1)
    b_heads = jnp.concatenate(
        [params["b_loc"], params["b_conf"], params["b_mask"], params["b_proto"]], axis=0)
    w_heads = jnp.pad(w_heads, ((0, 0), (0, SLAB_PAD - HEAD_DIM))).astype(jnp.bfloat16)
    b_heads = jnp.pad(b_heads, (0, SLAB_PAD - HEAD_DIM)).reshape(1, SLAB_PAD).astype(jnp.float32)
    return {"w1": w1, "b1": b1, "w_heads": w_heads, "b_heads": b_heads}


def prepare_images(images):
    """NCHW -> lane-padded bf16 row-major buffer (data-pipeline work, not per-step glue)."""
    b, c, h, w = images.shape
    x = jnp.transpose(images, (0, 2, 3, 1)).reshape(b * h * w, c)
    return jnp.pad(x, ((0, 0), (0, C_IN_PAD - c))).astype(jnp.bfloat16)


def prepare_targets(targets, masks, num_crowds):
    """Pack gt_loc | label | per-object gt-mask columns into one lane-dense (B*P,128) slab.
    TODO(synk): real MultiBoxLoss does IoU prior<->GT matching, SSD box encoding, hard
    negative mining and crowd handling (num_crowds); a deterministic synthetic assignment
    (prior p -> object p % NUM_OBJS) is used instead."""
    del num_crowds
    obj_idx = jnp.arange(P) % NUM_OBJS
    gt_loc = targets[:, obj_idx, :4]                                     # (B, P, 4)
    labels = targets[:, obj_idx, 4]                                      # (B, P)
    gtm = jnp.transpose(masks.reshape(B, NUM_OBJS, H * W), (0, 2, 1))    # (B, HW, O)
    tgt = jnp.zeros((B, P, TGT_PAD), jnp.float32)
    tgt = tgt.at[:, :, TGT_LOC_OFF:TGT_LOC_OFF + 4].set(gt_loc)
    tgt = tgt.at[:, :, TGT_LAB_OFF].set(labels)
    tgt = tgt.at[:, :, TGT_GTM_OFF:TGT_GTM_OFF + NUM_OBJS].set(gtm)
    return tgt.reshape(B * P, TGT_PAD)


def make_priors(h, w):
    ys = (jnp.arange(h, dtype=jnp.float32) + 0.5) / h
    xs = (jnp.arange(w, dtype=jnp.float32) + 0.5) / w
    cy, cx = jnp.meshgrid(ys, xs, indexing="ij")
    wh = jnp.full_like(cx, 1.0 / max(h, w))
    return jnp.stack([cx, cy, wh, wh], axis=-1).reshape(h * w * A, 4)


# ---------------- the jitted step: one fused kernel + tiny scalar glue ----------------
@jax.jit
def net_with_loss_preds(prep_params, x_rows, tgt_slab):
    slab, lraw = fused_net_and_loss(
        x_rows, prep_params["w1"], prep_params["b1"],
        prep_params["w_heads"], prep_params["b_heads"], tgt_slab)

    # Output formatting only — the loss no longer depends on these slices.
    preds = {
        "loc":    slab[:, LOC_OFF:LOC_OFF + 4].reshape(B, P, 4),
        "conf":   slab[:, CONF_OFF:CONF_OFF + NUM_CLASSES].reshape(B, P, NUM_CLASSES),
        "mask":   slab[:, COEF_OFF:COEF_OFF + MASK_DIM].reshape(B, P, MASK_DIM),
        "proto":  slab[:, PROTO_OFF:PROTO_OFF + MASK_DIM].reshape(B, H, W, MASK_DIM),
        "priors": make_priors(H, W),
    }

    part = lraw.reshape(B, LOSS_SUB, LOSS_PAD)[:, 0, :]       # (B, 128) per-image partials
    sums = jnp.sum(part, axis=0)
    num_pos = jnp.maximum(sums[3], 1.0)
    losses = {"B": sums[0] / num_pos,
              "C": sums[1] / num_pos,
              "M": sums[2] / jnp.float32(B * P * NUM_OBJS)}
    # TODO(synk): semantic-segmentation ('S') and other auxiliary YOLACT losses not reproduced.
    return losses, preds


# ---------------- deterministic parameter init ----------------
def init_params(key):
    ks = jax.random.split(key, 5)

    def mk(k, shape, scale=0.1):
        return (scale * jax.random.normal(k, shape)).astype(jnp.float32)

    return {
        "w1": mk(ks[0], (C_IN, C_FEAT)),       "b1": jnp.zeros((C_FEAT,), jnp.float32),
        "w_loc": mk(ks[1], (C_FEAT, A * 4)),   "b_loc": jnp.zeros((A * 4,), jnp.float32),
        "w_conf": mk(ks[2], (C_FEAT, A * NUM_CLASSES)),
        "b_conf": jnp.zeros((A * NUM_CLASSES,), jnp.float32),
        "w_mask": mk(ks[3], (C_FEAT, A * MASK_DIM)),
        "b_mask": jnp.zeros((A * MASK_DIM,), jnp.float32),
        "w_proto": mk(ks[4], (C_FEAT, MASK_DIM)),
        "b_proto": jnp.zeros((MASK_DIM,), jnp.float32),
    }


if __name__ == "__main__":
    key = jax.random.PRNGKey(0)
    k_img, k_box, k_lab, k_msk, k_par = jax.random.split(key, 5)

    images = jax.random.normal(k_img, (B, C_IN, H, W), jnp.float32)          # NCHW
    xy = jax.random.uniform(k_box, (B, NUM_OBJS, 2), minval=0.0, maxval=0.5)
    wh = jax.random.uniform(k_box, (B, NUM_OBJS, 2), minval=0.1, maxval=0.5)
    boxes = jnp.concatenate([xy, xy + wh], axis=-1)                          # (B, O, 4)
    labels = jax.random.randint(k_lab, (B, NUM_OBJS), 1, NUM_CLASSES).astype(jnp.float32)
    targets = jnp.concatenate([boxes, labels[..., None]], axis=-1)           # (B, O, 5)
    gt_masks = (jax.random.uniform(k_msk, (B, NUM_OBJS, H, W)) > 0.5).astype(jnp.float32)
    num_crowds = jnp.zeros((B,), jnp.int32)

    params = init_params(jax.random.PRNGKey(42))

    # one-time / data-pipeline preprocessing (outside the jitted step, per perf review)
    prep_params = prepare_params(params)
    x_rows = prepare_images(images)
    tgt_slab = prepare_targets(targets, gt_masks, num_crowds)

    losses, preds = net_with_loss_preds(prep_params, x_rows, tgt_slab)
    jax.block_until_ready((losses, preds))

    assert preds["loc"].shape == (B, P, 4)
    assert preds["conf"].shape == (B, P, NUM_CLASSES)
    assert preds["mask"].shape == (B, P, MASK_DIM)
    assert preds["proto"].shape == (B, H, W, MASK_DIM)
    assert all(jnp.isfinite(v).all() for v in losses.values())
    print("KERNEL_OK")
</pallas_src>

<mosaic_0001>
module attributes {stable_mosaic.version = 11 : i64} {
  func.func @_fused_kernel(%arg0: i32, %arg1: memref<256x8xbf16, #tpu.memory_space<vmem>>, %arg2: memref<8x32xbf16, #tpu.memory_space<vmem>>, %arg3: memref<1x32xf32, #tpu.memory_space<vmem>>, %arg4: memref<32x128xbf16, #tpu.memory_space<vmem>>, %arg5: memref<1x128xf32, #tpu.memory_space<vmem>>, %arg6: memref<256x128xf32, #tpu.memory_space<vmem>>, %arg7: memref<256x128xf32, #tpu.memory_space<vmem>>, %arg8: memref<8x128xf32, #tpu.memory_space<vmem>>) attributes {dimension_semantics = [#tpu.dimension_semantics<parallel>], iteration_bounds = array<i64: 2>, scalar_prefetch = 0 : i64, scratch_operands = 0 : i64, tpu.core_type = #tpu.core_type<tc>, window_params = [{transform_indices = @transform_0, window_bounds = array<i64: 256, 8>}, {pipeline_mode = #tpu.pipeline_mode<synchronous>, transform_indices = @transform_1, window_bounds = array<i64: 8, 32>}, {pipeline_mode = #tpu.pipeline_mode<synchronous>, transform_indices = @transform_2, window_bounds = array<i64: 1, 32>}, {pipeline_mode = #tpu.pipeline_mode<synchronous>, transform_indices = @transform_3, window_bounds = array<i64: 32, 128>}, {pipeline_mode = #tpu.pipeline_mode<synchronous>, transform_indices = @transform_4, window_bounds = array<i64: 1, 128>}, {transform_indices = @transform_5, window_bounds = array<i64: 256, 128>}, {transform_indices = @transform_6, window_bounds = array<i64: 256, 128>}, {transform_indices = @transform_7, window_bounds = array<i64: 8, 128>}]} {
    %c0 = arith.constant 0 : index
    %c0_0 = arith.constant 0 : index
    %0 = vector.load %arg1[%c0, %c0_0] : memref<256x8xbf16, #tpu.memory_space<vmem>>, vector<256x8xbf16>
    %c0_1 = arith.constant 0 : index
    %c0_2 = arith.constant 0 : index
    %1 = vector.load %arg2[%c0_1, %c0_2] : memref<8x32xbf16, #tpu.memory_space<vmem>>, vector<8x32xbf16>
    %cst = arith.constant dense<0.000000e+00> : vector<256x32xf32>
    %2 = tpu.matmul %0, %1, %cst {dimension_numbers = #tpu.dot_dimension_numbers<[1], [0], [0], [1], [0, 0, 1, 1], [], []>} : vector<256x8xbf16>, vector<8x32xbf16>, vector<256x32xf32> -> vector<256x32xf32>
    %c0_3 = arith.constant 0 : index
    %c0_4 = arith.constant 0 : index
    %3 = vector.load %arg3[%c0_3, %c0_4] : memref<1x32xf32, #tpu.memory_space<vmem>>, vector<1x32xf32>
    %4 = vector.broadcast %3 : vector<1x32xf32> to vector<256x32xf32>
    %5 = arith.addf %2, %4 : vector<256x32xf32>
    %cst_5 = arith.constant 0.000000e+00 : f32
    %6 = vector.broadcast %cst_5 : f32 to vector<256x32xf32>
    %7 = arith.maximumf %5, %6 : vector<256x32xf32>
    %8 = arith.truncf %7 : vector<256x32xf32> to vector<256x32xbf16>
    %c0_6 = arith.constant 0 : index
    %c0_7 = arith.constant 0 : index
    %9 = vector.load %arg4[%c0_6, %c0_7] : memref<32x128xbf16, #tpu.memory_space<vmem>>, vector<32x128xbf16>
    %cst_8 = arith.constant dense<0.000000e+00> : vector<256x128xf32>
    %10 = tpu.matmul %8, %9, %cst_8 {dimension_numbers = #tpu.dot_dimension_numbers<[1], [0], [0], [1], [0, 0, 1, 1], [], []>} : vector<256x32xbf16>, vector<32x128xbf16>, vector<256x128xf32> -> vector<256x128xf32>
    %c0_9 = arith.constant 0 : index
    %c0_10 = arith.constant 0 : index
    %11 = vector.load %arg5[%c0_9, %c0_10] : memref<1x128xf32, #tpu.memory_space<vmem>>, vector<1x128xf32>
    %12 = vector.broadcast %11 : vector<1x128xf32> to vector<256x128xf32>
    %13 = arith.addf %10, %12 : vector<256x128xf32>
    %14 = tpu.iota {dimensions = array<i32: 1>} : vector<256x128xi32>
    %c9_i32 = arith.constant 9 : i32
    %15 = vector.broadcast %c9_i32 : i32 to vector<256x128xi32>
    %16 = arith.cmpi sge, %14, %15 : vector<256x128xi32>
    %c17_i32 = arith.constant 17 : i32
    %17 = vector.broadcast %c17_i32 : i32 to vector<256x128xi32>
    %18 = arith.cmpi slt, %14, %17 : vector<256x128xi32>
    %19 = arith.andi %16, %18 : vector<256x128xi1>
    %20 = math.tanh %13 : vector<256x128xf32>
    %21 = arith.select %19, %20, %13 : vector<256x128xi1>, vector<256x128xf32>
    %c17_i32_11 = arith.constant 17 : i32
    %22 = vector.broadcast %c17_i32_11 : i32 to vector<256x128xi32>
    %23 = arith.cmpi sge, %14, %22 : vector<256x128xi32>
    %cst_12 = arith.constant 0.000000e+00 : f32
    %24 = vector.broadcast %cst_12 : f32 to vector<256x128xf32>
    %25 = arith.maximumf %21, %24 : vector<256x128xf32>
    %26 = arith.select %23, %25, %21 : vector<256x128xi1>, vector<256x128xf32>
    %c0_13 = arith.constant 0 : index
    %c0_14 = arith.constant 0 : index
    %27 = vector.load %arg7[%c0_13, %c0_14] : memref<256x128xf32, #tpu.memory_space<vmem>>, vector<256x128xf32>
    tpu.vector_store %arg7[%c0_13, %c0_14], %26 {strides = array<i32>} : memref<256x128xf32, #tpu.memory_space<vmem>>, vector<256x128xf32>,
    %c0_15 = arith.constant 0 : index
    %c0_16 = arith.constant 0 : index
    %28 = vector.load %arg6[%c0_15, %c0_16] : memref<256x128xf32, #tpu.memory_space<vmem>>, vector<256x128xf32>
    %c4_i32 = arith.constant 4 : i32
    %29 = vector.broadcast %c4_i32 : i32 to vector<256x128xi32>
    %30 = arith.cmpi eq, %14, %29 : vector<256x128xi32>
    %cst_17 = arith.constant 0.000000e+00 : f32
    %31 = vector.broadcast %cst_17 : f32 to vector<256x128xf32>
    %32 = arith.select %30, %28, %31 : vector<256x128xi1>, vector<256x128xf32>
    %cst_18 = arith.constant dense<0.000000e+00> : vector<256xf32>
    %33 = vector.multi_reduction <add>, %32, %cst_18 [1] : vector<256x128xf32> to vector<256xf32>
    %34 = vector.shape_cast %33 : vector<256xf32> to vector<256x1xf32>
    %cst_19 = arith.constant 5.000000e-01 : f32
    %35 = vector.broadcast %cst_19 : f32 to vector<256x1xf32>
    %36 = arith.cmpf ogt, %34, %35 : vector<256x1xf32>
    %37 = arith.extui %36 : vector<256x1xi1> to vector<256x1xi32>
    %38 = arith.sitofp %37 : vector<256x1xi32> to vector<256x1xf32>
    %39 = vector.shape_cast %38 : vector<256x1xf32> to vector<1x256x1xf32>
    %cst_20 = arith.constant dense<0.000000e+00> : vector<1xf32>
    %40 = vector.multi_reduction <add>, %39, %cst_20 [1, 2] : vector<1x256x1xf32> to vector<1xf32>
    %41 = vector.shape_cast %40 : vector<1xf32> to vector<1x1x1xf32>
    %42 = vector.extract %41[0, 0, 0] : f32 from vector<1x1x1xf32>
    %43 = arith.subf %26, %28 : vector<256x128xf32>
    %44 = math.absf %43 : vector<256x128xf32>
    %cst_21 = arith.constant 1.000000e+00 : f32
    %45 = vector.broadcast %cst_21 : f32 to vector<256x128xf32>
    %46 = arith.cmpf olt, %44, %45 : vector<256x128xf32>
    %cst_22 = arith.constant 5.000000e-01 : f32
    %47 = vector.broadcast %cst_22 : f32 to vector<256x128xf32>
    %48 = arith.mulf %47, %43 : vector<256x128xf32>
    %49 = arith.mulf %48, %43 : vector<256x128xf32>
    %cst_23 = arith.constant 5.000000e-01 : f32
    %50 = vector.broadcast %cst_23 : f32 to vector<256x128xf32>
    %51 = arith.subf %44, %50 : vector<256x128xf32>
    %52 = arith.select %46, %49, %51 : vector<256x128xi1>, vector<256x128xf32>
    %c4_i32_24 = arith.constant 4 : i32
    %53 = vector.broadcast %c4_i32_24 : i32 to vector<256x128xi32>
    %54 = arith.cmpi slt, %14, %53 : vector<256x128xi32>
    %55 = arith.extui %54 : vector<256x128xi1> to vector<256x128xi32>
    %56 = arith.sitofp %55 : vector<256x128xi32> to vector<256x128xf32>
    %57 = arith.mulf %52, %56 : vector<256x128xf32>
    %58 = vector.broadcast %38 : vector<256x1xf32> to vector<256x128xf32>
    %59 = arith.mulf %57, %58 : vector<256x128xf32>
    %60 = vector.shape_cast %59 : vector<256x128xf32> to vector<1x256x128xf32>
    %cst_25 = arith.constant dense<0.000000e+00> : vector<1xf32>
    %61 = vector.multi_reduction <add>, %60, %cst_25 [1, 2] : vector<1x256x128xf32> to vector<1xf32>
    %62 = vector.shape_cast %61 : vector<1xf32> to vector<1x1x1xf32>
    %63 = vector.extract %62[0, 0, 0] : f32 from vector<1x1x1xf32>
    %c4_i32_26 = arith.constant 4 : i32
    %64 = vector.broadcast %c4_i32_26 : i32 to vector<256x128xi32>
    %65 = arith.cmpi sge, %14, %64 : vector<256x128xi32>
    %c9_i32_27 = arith.constant 9 : i32
    %66 = vector.broadcast %c9_i32_27 : i32 to vector<256x128xi32>
    %67 = arith.cmpi slt, %14, %66 : vector<256x128xi32>
    %68 = arith.andi %65, %67 : vector<256x128xi1>
    %cst_28 = arith.constant 0xFF800000 : f32
    %69 = vector.broadcast %cst_28 : f32 to vector<256x128xf32>
    %70 = arith.select %68, %26, %69 : vector<256x128xi1>, vector<256x128xf32>
    %cst_29 = arith.constant dense<0xFF800000> : vector<256xf32>
    %71 = vector.multi_reduction <maximumf>, %70, %cst_29 [1] : vector<256x128xf32> to vector<256xf32>
    %72 = vector.shape_cast %71 : vector<256xf32> to vector<256x1xf32>
    %73 = vector.broadcast %72 : vector<256x1xf32> to vector<256x128xf32>
    %74 = arith.subf %70, %73 : vector<256x128xf32>
    %75 = math.exp %74 : vector<256x128xf32>
    %cst_30 = arith.constant dense<0.000000e+00> : vector<256xf32>
    %76 = vector.multi_reduction <add>, %75, %cst_30 [1] : vector<256x128xf32> to vector<256xf32>
    %77 = vector.shape_cast %76 : vector<256xf32> to vector<256x1xf32>
    %78 = math.log %77 : vector<256x1xf32>
    %79 = arith.addf %72, %78 : vector<256x1xf32>
    %80 = arith.fptosi %34 : vector<256x1xf32> to vector<256x1xi32>
    %c4_i32_31 = arith.constant 4 : i32
    %81 = vector.broadcast %c4_i32_31 : i32 to vector<256x1xi32>
    %82 = arith.addi %81, %80 : vector<256x1xi32>
    %83 = vector.broadcast %82 : vector<256x1xi32> to vector<256x128xi32>
    %84 = arith.cmpi eq, %14, %83 : vector<256x128xi32>
    %cst_32 = arith.constant 0.000000e+00 : f32
    %85 = vector.broadcast %cst_32 : f32 to vector<256x128xf32>
    %86 = arith.select %84, %26, %85 : vector<256x128xi1>, vector<256x128xf32>
    %cst_33 = arith.constant dense<0.000000e+00> : vector<256xf32>
    %87 = vector.multi_reduction <add>, %86, %cst_33 [1] : vector<256x128xf32> to vector<256xf32>
    %88 = vector.shape_cast %87 : vector<256xf32> to vector<256x1xf32>
    %89 = arith.subf %79, %88 : vector<256x1xf32>
    %90 = vector.shape_cast %89 : vector<256x1xf32> to vector<1x256x1xf32>
    %cst_34 = arith.constant dense<0.000000e+00> : vector<1xf32>
    %91 = vector.multi_reduction <add>, %90, %cst_34 [1, 2] : vector<1x256x1xf32> to vector<1xf32>
    %92 = vector.shape_cast %91 : vector<1xf32> to vector<1x1x1xf32>
    %93 = vector.extract %92[0, 0, 0] : f32 from vector<1x1x1xf32>
    %94 = vector.extract_strided_slice %26 {offsets = [0, 17], sizes = [256, 8], strides = [1, 1]} : vector<256x128xf32> to vector<256x8xf32>
    %95 = vector.extract_strided_slice %26 {offsets = [0, 9], sizes = [1, 8], strides = [1, 1]} : vector<256x128xf32> to vector<1x8xf32>
    %96 = vector.broadcast %95 : vector<1x8xf32> to vector<256x8xf32>
    %97 = arith.mulf %94, %96 : vector<256x8xf32>
    %cst_35 = arith.constant dense<0.000000e+00> : vector<256xf32>
    %98 = vector.multi_reduction <add>, %97, %cst_35 [1] : vector<256x8xf32> to vector<256xf32>
    %99 = vector.shape_cast %98 : vector<256xf32> to vector<256x1xf32>
    %c5_i32 = arith.constant 5 : i32
    %100 = vector.broadcast %c5_i32 : i32 to vector<256x128xi32>
    %101 = arith.cmpi eq, %14, %100 : vector<256x128xi32>
    %cst_36 = arith.constant 0.000000e+00 : f32
    %102 = vector.broadcast %cst_36 : f32 to vector<256x128xf32>
    %103 = arith.select %101, %28, %102 : vector<256x128xi1>, vector<256x128xf32>
    %cst_37 = arith.constant dense<0.000000e+00> : vector<256xf32>
    %104 = vector.multi_reduction <add>, %103, %cst_37 [1] : vector<256x128xf32> to vector<256xf32>
    %105 = vector.shape_cast %104 : vector<256xf32> to vector<256x1xf32>
    %cst_38 = arith.constant 0.000000e+00 : f32
    %106 = vector.broadcast %cst_38 : f32 to vector<256x1xf32>
    %107 = arith.maximumf %99, %106 : vector<256x1xf32>
    %108 = arith.mulf %99, %105 : vector<256x1xf32>
    %109 = arith.subf %107, %108 : vector<256x1xf32>
    %110 = math.absf %99 : vector<256x1xf32>
    %cst_39 = arith.constant 0.000000e+00 : f32
    %111 = vector.broadcast %cst_39 : f32 to vector<256x1xf32>
    %112 = arith.subf %111, %110 : vector<256x1xf32>
    %113 = math.exp %112 : vector<256x1xf32>
    %114 = math.log1p %113 : vector<256x1xf32>
    %115 = arith.addf %109, %114 : vector<256x1xf32>
    %116 = vector.shape_cast %115 : vector<256x1xf32> to vector<1x256x1xf32>
    %cst_40 = arith.constant dense<0.000000e+00> : vector<1xf32>
    %117 = vector.multi_reduction <add>, %116, %cst_40 [1, 2] : vector<1x256x1xf32> to vector<1xf32>
    %118 = vector.shape_cast %117 : vector<1xf32> to vector<1x1x1xf32>
    %119 = vector.extract %118[0, 0, 0] : f32 from vector<1x1x1xf32>
    %cst_41 = arith.constant 0.000000e+00 : f32
    %120 = arith.addf %cst_41, %119 : f32
    %121 = vector.extract_strided_slice %26 {offsets = [1, 9], sizes = [1, 8], strides = [1, 1]} : vector<256x128xf32> to vector<1x8xf32>
    %122 = vector.broadcast %121 : vector<1x8xf32> to vector<256x8xf32>
    %123 = arith.mulf %94, %122 : vector<256x8xf32>
    %cst_42 = arith.constant dense<0.000000e+00> : vector<256xf32>
    %124 = vector.multi_reduction <add>, %123, %cst_42 [1] : vector<256x8xf32> to vector<256xf32>
    %125 = vector.shape_cast %124 : vector<256xf32> to vector<256x1xf32>
    %c6_i32 = arith.constant 6 : i32
    %126 = vector.broadcast %c6_i32 : i32 to vector<256x128xi32>
    %127 = arith.cmpi eq, %14, %126 : vector<256x128xi32>
    %cst_43 = arith.constant 0.000000e+00 : f32
    %128 = vector.broadcast %cst_43 : f32 to vector<256x128xf32>
    %129 = arith.select %127, %28, %128 : vector<256x128xi1>, vector<256x128xf32>
    %cst_44 = arith.constant dense<0.000000e+00> : vector<256xf32>
    %130 = vector.multi_reduction <add>, %129, %cst_44 [1] : vector<256x128xf32> to vector<256xf32>
    %131 = vector.shape_cast %130 : vector<256xf32> to vector<256x1xf32>
    %cst_45 = arith.constant 0.000000e+00 : f32
    %132 = vector.broadcast %cst_45 : f32 to vector<256x1xf32>
    %133 = arith.maximumf %125, %132 : vector<256x1xf32>
    %134 = arith.mulf %125, %131 : vector<256x1xf32>
    %135 = arith.subf %133, %134 : vector<256x1xf32>
    %136 = math.absf %125 : vector<256x1xf32>
    %cst_46 = arith.constant 0.000000e+00 : f32
    %137 = vector.broadcast %cst_46 : f32 to vector<256x1xf32>
    %138 = arith.subf %137, %136 : vector<256x1xf32>
    %139 = math.exp %138 : vector<256x1xf32>
    %140 = math.log1p %139 : vector<256x1xf32>
    %141 = arith.addf %135, %140 : vector<256x1xf32>
    %142 = vector.shape_cast %141 : vector<256x1xf32> to vector<1x256x1xf32>
    %cst_47 = arith.constant dense<0.000000e+00> : vector<1xf32>
    %143 = vector.multi_reduction <add>, %142, %cst_47 [1, 2] : vector<1x256x1xf32> to vector<1xf32>
    %144 = vector.shape_cast %143 : vector<1xf32> to vector<1x1x1xf32>
    %145 = vector.extract %144[0, 0, 0] : f32 from vector<1x1x1xf32>
    %146 = arith.addf %120, %145 : f32
    %147 = vector.extract_strided_slice %26 {offsets = [2, 9], sizes = [1, 8], strides = [1, 1]} : vector<256x128xf32> to vector<1x8xf32>
    %148 = vector.broadcast %147 : vector<1x8xf32> to vector<256x8xf32>
    %149 = arith.mulf %94, %148 : vector<256x8xf32>
    %cst_48 = arith.constant dense<0.000000e+00> : vector<256xf32>
    %150 = vector.multi_reduction <add>, %149, %cst_48 [1] : vector<256x8xf32> to vector<256xf32>
    %151 = vector.shape_cast %150 : vector<256xf32> to vector<256x1xf32>
    %c7_i32 = arith.constant 7 : i32
    %152 = vector.broadcast %c7_i32 : i32 to vector<256x128xi32>
    %153 = arith.cmpi eq, %14, %152 : vector<256x128xi32>
    %cst_49 = arith.constant 0.000000e+00 : f32
    %154 = vector.broadcast %cst_49 : f32 to vector<256x128xf32>
    %155 = arith.select %153, %28, %154 : vector<256x128xi1>, vector<256x128xf32>
    %cst_50 = arith.constant dense<0.000000e+00> : vector<256xf32>
    %156 = vector.multi_reduction <add>, %155, %cst_50 [1] : vector<256x128xf32> to vector<256xf32>
    %157 = vector.shape_cast %156 : vector<256xf32> to vector<256x1xf32>
    %cst_51 = arith.constant 0.000000e+00 : f32
    %158 = vector.broadcast %cst_51 : f32 to vector<256x1xf32>
    %159 = arith.maximumf %151, %158 : vector<256x1xf32>
    %160 = arith.mulf %151, %157 : vector<256x1xf32>
    %161 = arith.subf %159, %160 : vector<256x1xf32>
    %162 = math.absf %151 : vector<256x1xf32>
    %cst_52 = arith.constant 0.000000e+00 : f32
    %163 = vector.broadcast %cst_52 : f32 to vector<256x1xf32>
    %164 = arith.subf %163, %162 : vector<256x1xf32>
    %165 = math.exp %164 : vector<256x1xf32>
    %166 = math.log1p %165 : vector<256x1xf32>
    %167 = arith.addf %161, %166 : vector<256x1xf32>
    %168 = vector.shape_cast %167 : vector<256x1xf32> to vector<1x256x1xf32>
    %cst_53 = arith.constant dense<0.000000e+00> : vector<1xf32>
    %169 = vector.multi_reduction <add>, %168, %cst_53 [1, 2] : vector<1x256x1xf32> to vector<1xf32>
    %170 = vector.shape_cast %169 : vector<1xf32> to vector<1x1x1xf32>
    %171 = vector.extract %170[0, 0, 0] : f32 from vector<1x1x1xf32>
    %172 = arith.addf %146, %171 : f32
    %173 = vector.extract_strided_slice %26 {offsets = [3, 9], sizes = [1, 8], strides = [1, 1]} : vector<256x128xf32> to vector<1x8xf32>
    %174 = vector.broadcast %173 : vector<1x8xf32> to vector<256x8xf32>
    %175 = arith.mulf %94, %174 : vector<256x8xf32>
    %cst_54 = arith.constant dense<0.000000e+00> : vector<256xf32>
    %176 = vector.multi_reduction <add>, %175, %cst_54 [1] : vector<256x8xf32> to vector<256xf32>
    %177 = vector.shape_cast %176 : vector<256xf32> to vector<256x1xf32>
    %c8_i32 = arith.constant 8 : i32
    %178 = vector.broadcast %c8_i32 : i32 to vector<256x128xi32>
    %179 = arith.cmpi eq, %14, %178 : vector<256x128xi32>
    %cst_55 = arith.constant 0.000000e+00 : f32
    %180 = vector.broadcast %cst_55 : f32 to vector<256x128xf32>
    %181 = arith.select %179, %28, %180 : vector<256x128xi1>, vector<256x128xf32>
    %cst_56 = arith.constant dense<0.000000e+00> : vector<256xf32>
    %182 = vector.multi_reduction <add>, %181, %cst_56 [1] : vector<256x128xf32> to vector<256xf32>
    %183 = vector.shape_cast %182 : vector<256xf32> to vector<256x1xf32>
    %cst_57 = arith.constant 0.000000e+00 : f32
    %184 = vector.broadcast %cst_57 : f32 to vector<256x1xf32>
    %185 = arith.maximumf %177, %184 : vector<256x1xf32>
    %186 = arith.mulf %177, %183 : vector<256x1xf32>
    %187 = arith.subf %185, %186 : vector<256x1xf32>
    %188 = math.absf %177 : vector<256x1xf32>
    %cst_58 = arith.constant 0.000000e+00 : f32
    %189 = vector.broadcast %cst_58 : f32 to vector<256x1xf32>
    %190 = arith.subf %189, %188 : vector<256x1xf32>
    %191 = math.exp %190 : vector<256x1xf32>
    %192 = math.log1p %191 : vector<256x1xf32>
    %193 = arith.addf %187, %192 : vector<256x1xf32>
    %194 = vector.shape_cast %193 : vector<256x1xf32> to vector<1x256x1xf32>
    %cst_59 = arith.constant dense<0.000000e+00> : vector<1xf32>
    %195 = vector.multi_reduction <add>, %194, %cst_59 [1, 2] : vector<1x256x1xf32> to vector<1xf32>
    %196 = vector.shape_cast %195 : vector<1xf32> to vector<1x1x1xf32>
    %197 = vector.extract %196[0, 0, 0] : f32 from vector<1x1x1xf32>
    %198 = arith.addf %172, %197 : f32
    %199 = tpu.iota {dimensions = array<i32: 1>} : vector<8x128xi32>
    %c0_i32 = arith.constant 0 : i32
    %200 = vector.broadcast %c0_i32 : i32 to vector<8x128xi32>
    %201 = arith.cmpi eq, %199, %200 : vector<8x128xi32>
    %cst_60 = arith.constant 0.000000e+00 : f32
    %202 = vector.broadcast %63 : f32 to vector<8x128xf32>
    %203 = vector.broadcast %cst_60 : f32 to vector<8x128xf32>
    %204 = arith.select %201, %202, %203 : vector<8x128xi1>, vector<8x128xf32>
    %c1_i32 = arith.constant 1 : i32
    %205 = vector.broadcast %c1_i32 : i32 to vector<8x128xi32>
    %206 = arith.cmpi eq, %199, %205 : vector<8x128xi32>
    %207 = vector.broadcast %93 : f32 to vector<8x128xf32>
    %208 = arith.select %206, %207, %204 : vector<8x128xi1>, vector<8x128xf32>
    %c2_i32 = arith.constant 2 : i32
    %209 = vector.broadcast %c2_i32 : i32 to vector<8x128xi32>
    %210 = arith.cmpi eq, %199, %209 : vector<8x128xi32>
    %211 = vector.broadcast %198 : f32 to vector<8x128xf32>
    %212 = arith.select %210, %211, %208 : vector<8x128xi1>, vector<8x128xf32>
    %c3_i32 = arith.constant 3 : i32
    %213 = vector.broadcast %c3_i32 : i32 to vector<8x128xi32>
    %214 = arith.cmpi eq, %199, %213 : vector<8x128xi32>
    %215 = vector.broadcast %42 : f32 to vector<8x128xf32>
    %216 = arith.select %214, %215, %212 : vector<8x128xi1>, vector<8x128xf32>
    %c0_61 = arith.constant 0 : index
    %c0_62 = arith.constant 0 : index
    %217 = vector.load %arg8[%c0_61, %c0_62] : memref<8x128xf32, #tpu.memory_space<vmem>>, vector<8x128xf32>
    tpu.vector_store %arg8[%c0_61, %c0_62], %216 {strides = array<i32>} : memref<8x128xf32, #tpu.memory_space<vmem>>, vector<8x128xf32>,
    return
  }
  func.func @transform_0(%arg0: i32) -> (i32, i32) {
    %c0_i32 = arith.constant 0 : i32
    %c0_i32_0 = arith.constant 0 : i32
    return %arg0, %c0_i32 : i32, i32
  }
  func.func @transform_1(%arg0: i32) -> (i32, i32) {
    %c0_i32 = arith.constant 0 : i32
    %c0_i32_0 = arith.constant 0 : i32
    %c0_i32_1 = arith.constant 0 : i32
    return %c0_i32, %c0_i32_0 : i32, i32
  }
  func.func @transform_2(%arg0: i32) -> (i32, i32) {
    %c0_i32 = arith.constant 0 : i32
    %c0_i32_0 = arith.constant 0 : i32
    %c0_i32_1 = arith.constant 0 : i32
    return %c0_i32, %c0_i32_0 : i32, i32
  }
  func.func @transform_3(%arg0: i32) -> (i32, i32) {
    %c0_i32 = arith.constant 0 : i32
    %c0_i32_0 = arith.constant 0 : i32
    %c0_i32_1 = arith.constant 0 : i32
    return %c0_i32, %c0_i32_0 : i32, i32
  }
  func.func @transform_4(%arg0: i32) -> (i32, i32) {
    %c0_i32 = arith.constant 0 : i32
    %c0_i32_0 = arith.constant 0 : i32
    %c0_i32_1 = arith.constant 0 : i32
    return %c0_i32, %c0_i32_0 : i32, i32
  }
  func.func @transform_5(%arg0: i32) -> (i32, i32) {
    %c0_i32 = arith.constant 0 : i32
    %c0_i32_0 = arith.constant 0 : i32
    return %arg0, %c0_i32 : i32, i32
  }
  func.func @transform_6(%arg0: i32) -> (i32, i32) {
    %c0_i32 = arith.constant 0 : i32
    %c0_i32_0 = arith.constant 0 : i32
    return %arg0, %c0_i32 : i32, i32
  }
  func.func @transform_7(%arg0: i32) -> (i32, i32) {
    %c0_i32 = arith.constant 0 : i32
    %c0_i32_0 = arith.constant 0 : i32
    return %arg0, %c0_i32 : i32, i32
  }
}

</mosaic_0001>

<llo_original>
// kernel: net_with_loss_preds.1
$region0: #{net_with_loss_preds.1}
  #allocation0 [shape = 'u32[]', space=smem, size = 0x4, offset = 0x4, fixed_abs, tag = 'smem constant byte address 0x4 - core index']
  #allocation1 [shape = 'u32[144,128]{1,0:T(1,128)}', space=vmem, size = 0x12000, scoped, tag = 'internal scratch']
  %s0 = inlined_call_operand.vmem [shape: bf16[512,8], index: 0, kind: input, shape index: {}]
  %s1 = inlined_call_operand.vmem [shape: bf16[8,32], index: 1, kind: input, shape index: {}]
  %s2 = inlined_call_operand.vmem [shape: f32[1,32], index: 2, kind: input, shape index: {}]
  %s3 = inlined_call_operand.vmem [shape: bf16[32,128], index: 3, kind: input, shape index: {}]
  %s4 = inlined_call_operand.vmem [shape: f32[1,128], index: 4, kind: input, shape index: {}]
  %s5 = inlined_call_operand.hbm [shape: f32[512,128], index: 5, kind: input, shape index: {}]
  %s6 = inlined_call_operand.vmem [shape: f32[512,128], index: 6, kind: output, shape index: {0}]
  %s7 = inlined_call_operand.vmem [shape: f32[16,128], index: 7, kind: output, shape index: {1}]
  %8 = xla_tuple %s6, %s7
  %s9 = sld [smem:[#allocation0]]
  $region69: #{net_with_loss_preds.1} parent=0
    _
  %s11 = ssub.s32 1, %s9
  %s12 = scalar_select 0, %s11, %s9
  $region1: #{net_with_loss_preds.1} parent=0
    #allocation2 [shape = 'u8[262144]{0}', space=vmem, size = 0x40000, scoped, tag = 'input window, operand 5']
    #allocation3 [shape = 's32[2]{0}', space=sflag, size = 0x8, scoped, tag = 'scoped memory for net_with_loss_preds.1']
    %13 = vsyncpa [#allocation3], 0
    %s14 = scalar_lea.sflag [#allocation3], 1
    %15 = vsyncpa %s14, 0
    loop: start=0, step=1, limit=4
    $region2: #{net_with_loss_preds.1} parent=1 // loop_pre_header
      _
    $region3: #{net_with_loss_preds.1} parent=1 // loop_header
      %s17 = sphi 0, %s21
      %p18 = scmp.ge.s32.totalorder %s17, 4
      %s27 = sphi 0, %s29
      %s30 = sphi 0, %s27
      %s31 = sphi 0, %s30
      %s47 = sphi 0, %s31
      %s51 = sphi 0, %s51
      %s53 = sphi 0, %s51
      %s54 = sphi 0, %s53
      %s68 = sphi 0, %s54
      %s72 = sphi 0, %s72
      %s74 = sphi 0, %s72
      %s75 = sphi 0, %s74
      %s89 = sphi 0, %s75
      %s93 = sphi 0, %s93
      %s95 = sphi 0, %s93
      %s96 = sphi 0, %s95
      %s110 = sphi 0, %s96
      %s114 = sphi 0, %s114
      %s116 = sphi 0, %s114
      %s117 = sphi 0, %s116
      %s131 = sphi 0, %s117
      %s137 = sphi 0, %s139
      %s140 = sphi 0, %s137
      %s141 = sphi 0, %s140
      %s157 = sphi 0, %s141
      %s163 = sphi 0, %s165
      %s166 = sphi 0, %s163
      %s167 = sphi 0, %s166
      %s183 = sphi 0, %s167
      %s189 = sphi 0, %s191
      %s192 = sphi 0, %s189
      %s193 = sphi 0, %s192
      %s209 = sphi 0, %s193
    $region4: #{net_with_loss_preds.1} parent=1 // loop_header_branch
      %20 = sbr.rel (%p18) target = $region8
    $region5: #{net_with_loss_preds.1} parent=1 // loop_body
      %s22 = ssub.s32 %s17, 1
      %s23 = ssub.s32 %s17, 2
      %s24 = sadd.s32 %s17, 1
      %s25 = ssub.s32 %s17, %s24
      %p26 = scmp.eq.s32.totalorder %s25, 0
      %s28 = sadd.s32 %s27, 1
      %s29 = scalar_select %p26, %s27, %s28
      %p32 = pneg %p26
      %p33 = scmp.eq.s32.totalorder %s17, 1
      %p34 = por %p32, %p33
      %p35 = scmp.ne.s32.totalorder %s27, %s30
      %p36 = scmp.eq.s32.totalorder %s17, 0
      %p37 = por %p35, %p36
      %p38 = scmp.ne.s32.totalorder %s27, %s30
      %p39 = scmp.eq.s32.totalorder %s22, 1
      %p40 = por %p38, %p39
      %p41 = scmp.ne.s32.totalorder %s30, %s31
      %p42 = scmp.eq.s32.totalorder %s22, 0
      %p43 = por %p41, %p42
      %p44 = scmp.ne.s32.totalorder %s30, %s31
      %p45 = scmp.eq.s32.totalorder %s23, 1
      %p46 = por %p44, %p45
      %p48 = scmp.ne.s32.totalorder %s31, %s47
      %p49 = scmp.eq.s32.totalorder %s23, 0
      %p50 = por %p48, %p49
      %s52 = sadd.s32 %s51, 1
      %p55 = scmp.eq.s32.totalorder %s17, 1
      %p56 = scmp.ne.s32.totalorder %s51, %s53
      %p57 = scmp.eq.s32.totalorder %s17, 0
      %p58 = por %p56, %p57
      %p59 = scmp.ne.s32.totalorder %s51, %s53
      %p60 = scmp.eq.s32.totalorder %s22, 1
      %p61 = por %p59, %p60
      %p62 = scmp.ne.s32.totalorder %s53, %s54
      %p63 = scmp.eq.s32.totalorder %s22, 0
      %p64 = por %p62, %p63
      %p65 = scmp.ne.s32.totalorder %s53, %s54
      %p66 = scmp.eq.s32.totalorder %s23, 1
      %p67 = por %p65, %p66
      %p69 = scmp.ne.s32.totalorder %s54, %s68
      %p70 = scmp.eq.s32.totalorder %s23, 0
      %p71 = por %p69, %p70
      %s73 = sadd.s32 %s72, 1
      %p76 = scmp.eq.s32.totalorder %s17, 1
      %p77 = scmp.ne.s32.totalorder %s72, %s74
      %p78 = scmp.eq.s32.totalorder %s17, 0
      %p79 = por %p77, %p78
      %p80 = scmp.ne.s32.totalorder %s72, %s74
      %p81 = scmp.eq.s32.totalorder %s22, 1
      %p82 = por %p80, %p81
      %p83 = scmp.ne.s32.totalorder %s74, %s75
      %p84 = scmp.eq.s32.totalorder %s22, 0
      %p85 = por %p83, %p84
      %p86 = scmp.ne.s32.totalorder %s74, %s75
      %p87 = scmp.eq.s32.totalorder %s23, 1
      %p88 = por %p86, %p87
      %p90 = scmp.ne.s32.totalorder %s75, %s89
      %p91 = scmp.eq.s32.totalorder %s23, 0
      %p92 = por %p90, %p91
      %s94 = sadd.s32 %s93, 1
      %p97 = scmp.eq.s32.totalorder %s17, 1
      %p98 = scmp.ne.s32.totalorder %s93, %s95
      %p99 = scmp.eq.s32.totalorder %s17, 0
      %p100 = por %p98, %p99
      %p101 = scmp.ne.s32.totalorder %s93, %s95
      %p102 = scmp.eq.s32.totalorder %s22, 1
      %p103 = por %p101, %p102
      %p104 = scmp.ne.s32.totalorder %s95, %s96
      %p105 = scmp.eq.s32.totalorder %s22, 0
      %p106 = por %p104, %p105
      %p107 = scmp.ne.s32.totalorder %s95, %s96
      %p108 = scmp.eq.s32.totalorder %s23, 1
      %p109 = por %p107, %p108
      %p111 = scmp.ne.s32.totalorder %s96, %s110
      %p112 = scmp.eq.s32.totalorder %s23, 0
      %p113 = por %p111, %p112
      %s115 = sadd.s32 %s114, 1
      %p118 = scmp.eq.s32.totalorder %s17, 1
      %p119 = scmp.ne.s32.totalorder %s114, %s116
      %p120 = scmp.eq.s32.totalorder %s17, 0
      %p121 = por %p119, %p120
      %p122 = scmp.ne.s32.totalorder %s114, %s116
      %p123 = scmp.eq.s32.totalorder %s22, 1
      %p124 = por %p122, %p123
      %p125 = scmp.ne.s32.totalorder %s116, %s117
      %p126 = scmp.eq.s32.totalorder %s22, 0
      %p127 = por %p125, %p126
      %p128 = scmp.ne.s32.totalorder %s116, %s117
      %p129 = scmp.eq.s32.totalorder %s23, 1
      %p130 = por %p128, %p129
      %p132 = scmp.ne.s32.totalorder %s117, %s131
      %p133 = scmp.eq.s32.totalorder %s23, 0
      %p134 = por %p132, %p133
      %s135 = ssub.s32 %s17, %s24
      %p136 = scmp.eq.s32.totalorder %s135, 0
      %s138 = sadd.s32 %s137, 1
      %s139 = scalar_select %p136, %s137, %s138
      %p142 = pneg %p136
      %p143 = scmp.eq.s32.totalorder %s17, 1
      %p144 = por %p142, %p143
      %p145 = scmp.ne.s32.totalorder %s137, %s140
      %p146 = scmp.eq.s32.totalorder %s17, 0
      %p147 = por %p145, %p146
      %p148 = scmp.ne.s32.totalorder %s137, %s140
      %p149 = scmp.eq.s32.totalorder %s22, 1
      %p150 = por %p148, %p149
      %p151 = scmp.ne.s32.totalorder %s140, %s141
      %p152 = scmp.eq.s32.totalorder %s22, 0
      %p153 = por %p151, %p152
      %p154 = scmp.ne.s32.totalorder %s140, %s141
      %p155 = scmp.eq.s32.totalorder %s23, 1
      %p156 = por %p154, %p155
      %p158 = scmp.ne.s32.totalorder %s141, %s157
      %p159 = scmp.eq.s32.totalorder %s23, 0
      %p160 = por %p158, %p159
      %s161 = ssub.s32 %s17, %s24
      %p162 = scmp.eq.s32.totalorder %s161, 0
      %s164 = sadd.s32 %s163, 1
      %s165 = scalar_select %p162, %s163, %s164
      %p168 = pneg %p162
      %p169 = scmp.eq.s32.totalorder %s17, 1
      %p170 = por %p168, %p169
      %p171 = scmp.ne.s32.totalorder %s163, %s166
      %p172 = scmp.eq.s32.totalorder %s17, 0
      %p173 = por %p171, %p172
      %p174 = scmp.ne.s32.totalorder %s163, %s166
      %p175 = scmp.eq.s32.totalorder %s22, 1
      %p176 = por %p174, %p175
      %p177 = scmp.ne.s32.totalorder %s166, %s167
      %p178 = scmp.eq.s32.totalorder %s22, 0
      %p179 = por %p177, %p178
      %p180 = scmp.ne.s32.totalorder %s166, %s167
      %p181 = scmp.eq.s32.totalorder %s23, 1
      %p182 = por %p180, %p181
      %p184 = scmp.ne.s32.totalorder %s167, %s183
      %p185 = scmp.eq.s32.totalorder %s23, 0
      %p186 = por %p184, %p185
      %s187 = ssub.s32 %s17, %s24
      %p188 = scmp.eq.s32.totalorder %s187, 0
      %s190 = sadd.s32 %s189, 1
      %s191 = scalar_select %p188, %s189, %s190
      %p194 = pneg %p188
      %p195 = scmp.eq.s32.totalorder %s17, 1
      %p196 = por %p194, %p195
      %p197 = scmp.ne.s32.totalorder %s189, %s192
      %p198 = scmp.eq.s32.totalorder %s17, 0
      %p199 = por %p197, %p198
      %p200 = scmp.ne.s32.totalorder %s189, %s192
      %p201 = scmp.eq.s32.totalorder %s22, 1
      %p202 = por %p200, %p201
      %p203 = scmp.ne.s32.totalorder %s192, %s193
      %p204 = scmp.eq.s32.totalorder %s22, 0
      %p205 = por %p203, %p204
      %p206 = scmp.ne.s32.totalorder %s192, %s193
      %p207 = scmp.eq.s32.totalorder %s23, 1
      %p208 = por %p206, %p207
      %p210 = scmp.ne.s32.totalorder %s193, %s209
      %p211 = scmp.eq.s32.totalorder %s23, 0
      %p212 = por %p210, %p211
      %p213 = scmp.le.s32.totalorder 1, %s17
      %p214 = scmp.lt.s32.totalorder %s17, 3
      %p215 = pnand %p213, %p214
      %p216 = pneg %p215
      // Predicated region
      $region9: #{net_with_loss_preds.1} parent=5 // pred_check
        _
      $region10: #{net_with_loss_preds.1} parent=5 // pred_check_branch
        %218 = sbr.rel (%p215) target = $region12
      $region11: #{net_with_loss_preds.1} parent=5 // pred_region
        %s219 = ssub.s32 %s17, 1
        // Predicated region
        $region13: #{net_with_loss_preds.1} parent=11 // pred_check
          %p220 = pneg %p64
        $region14: #{net_with_loss_preds.1} parent=11 // pred_check_branch
          %222 = sbr.rel (%p220) target = $region16
        $region15: #{net_with_loss_preds.1} parent=11 // pred_region
          _
        $region16: #{net_with_loss_preds.1} parent=11 // pred_fallthru
          _
        // Predicated region
        $region17: #{net_with_loss_preds.1} parent=11 // pred_check
          %p223 = pneg %p85
        $region18: #{net_with_loss_preds.1} parent=11 // pred_check_branch
          %225 = sbr.rel (%p223) target = $region20
        $region19: #{net_with_loss_preds.1} parent=11 // pred_region
          _
        $region20: #{net_with_loss_preds.1} parent=11 // pred_fallthru
          _
        // Predicated region
        $region21: #{net_with_loss_preds.1} parent=11 // pred_check
          %p226 = pneg %p106
        $region22: #{net_with_loss_preds.1} parent=11 // pred_check_branch
          %228 = sbr.rel (%p226) target = $region24
        $region23: #{net_with_loss_preds.1} parent=11 // pred_region
          _
        $region24: #{net_with_loss_preds.1} parent=11 // pred_fallthru
          _
        // Predicated region
        $region25: #{net_with_loss_preds.1} parent=11 // pred_check
          %p229 = pneg %p127
        $region26: #{net_with_loss_preds.1} parent=11 // pred_check_branch
          %231 = sbr.rel (%p229) target = $region28
        $region27: #{net_with_loss_preds.1} parent=11 // pred_region
          _
        $region28: #{net_with_loss_preds.1} parent=11 // pred_fallthru
          _
      $region12: #{net_with_loss_preds.1} parent=5 // pred_fallthru
        _
      %p232 = scmp.lt.s32.totalorder %s17, 2
      // Predicated region
      $region29: #{net_with_loss_preds.1} parent=5 // pred_check
        %p233 = pneg %p232
      $region30: #{net_with_loss_preds.1} parent=5 // pred_check_branch
        %235 = sbr.rel (%p233) target = $region32
      $region31: #{net_with_loss_preds.1} parent=5 // pred_region
        // Predicated region
        $region33: #{net_with_loss_preds.1} parent=31 // pred_check
          %p236 = pneg %p37
        $region34: #{net_with_loss_preds.1} parent=31 // pred_check_branch
          %238 = sbr.rel (%p236) target = $region36
        $region35: #{net_with_loss_preds.1} parent=31 // pred_region
          %s239 = smul.u32 32, %s17
          %p240 = scmp.lt.s32.totalorder %s239, 63
          %s241 = scalar_select %p240, %s239, 63
          %s242 = smul.addr %s241, 4
          %s243 = scalar_lea.vmem %s0, %s242
          %s244 = smul.u32 32, %s17
        $region36: #{net_with_loss_preds.1} parent=31 // pred_fallthru
          _
        // Predicated region
        $region37: #{net_with_loss_preds.1} parent=31 // pred_check
          %p245 = pneg %p147
        $region38: #{net_with_loss_preds.1} parent=31 // pred_check_branch
          %247 = sbr.rel (%p245) target = $region40
        $region39: #{net_with_loss_preds.1} parent=31 // pred_region
          %s248 = sand.u32 %s137, 1
          %s249 = scalar_lea.sflag [#allocation3], %s248
          %s250 = sand.u32 %s137, 1
          %s251 = smul.addr %s250, 256
          %s252 = scalar_lea.vmem [#allocation2], %s251
          %s253 = smul.u32 32, %s17
          %s255 = ssub.s32 4096, 4096
          %256 = vsyncadd %s249, %s255
          %s257 = smul.addr %s253, 128
          %s258 = scalar_lea.hbm %s5, %s257
          %s259 = sshll.u32 %s252, 4
          %s260 = int_to_ptr.vmem [resolvable:$true] %s259
          %265 = dma.hbm_to_vmem [thread:$0]  %s258, 4096, %s260, %s249, 128, 128, 8
        $region40: #{net_with_loss_preds.1} parent=31 // pred_fallthru
          _
      $region32: #{net_with_loss_preds.1} parent=5 // pred_fallthru
        _
      %p266 = scmp.le.s32.totalorder 1, %s17
      %p267 = scmp.lt.s32.totalorder %s17, 3
      %p268 = pnand %p266, %p267
      %p269 = pneg %p268
      // Predicated region
      $region41: #{net_with_loss_preds.1} parent=5 // pred_check
        _
      $region42: #{net_with_loss_preds.1} parent=5 // pred_check_branch
        %271 = sbr.rel (%p268) target = $region44
      $region43: #{net_with_loss_preds.1} parent=5 // pred_region
        %s272 = ssub.s32 %s17, 1
        %s273 = sand.u32 %s140, 1
        %s274 = scalar_lea.sflag [#allocation3], %s273
        %s275 = sand.u32 %s140, 1
        %s276 = smul.addr %s275, 256
        %s277 = scalar_lea.vmem [#allocation2], %s276
        // Predicated region
        $region45: #{net_with_loss_preds.1} parent=43 // pred_check
          %p278 = pneg %p153
        $region46: #{net_with_loss_preds.1} parent=43 // pred_check_branch
          %280 = sbr.rel (%p278) target = $region48
        $region47: #{net_with_loss_preds.1} parent=43 // pred_region
          %281 = dma.done %s274, 4096
        $region48: #{net_with_loss_preds.1} parent=43 // pred_fallthru
          _
        %s282 = smul.u32 32, %s22
        %p283 = scmp.lt.s32.totalorder %s282, 63
        %s284 = scalar_select %p283, %s282, 63
        %s285 = smul.addr %s284, 4
        %s286 = scalar_lea.vmem %s0, %s285
        %p287 = pneg %p43
        %p288 = pneg %p40
        %p289 = pneg %p64
        %p290 = pneg %p61
        %p291 = pneg %p85
        %p292 = pneg %p82
        %p293 = pneg %p106
        %p294 = pneg %p103
        %p295 = pneg %p127
        %p296 = pneg %p124
        %s297 = sand.u32 %s140, 1
        %s298 = scalar_lea.sflag [#allocation3], %s297
        %s299 = sand.u32 %s140, 1
        %s300 = smul.addr %s299, 256
        %s301 = scalar_lea.vmem [#allocation2], %s300
        %p302 = pneg %p153
        %p303 = pneg %p150
        %p304 = pneg %p179
        %p305 = pneg %p176
        %s306 = smul.u32 32, %s22
        %p307 = scmp.lt.s32.totalorder %s306, 63
        %s308 = scalar_select %p307, %s306, 63
        %s309 = smul.addr %s308, 8
        %s310 = scalar_lea.vmem %s6, %s309
        %p311 = pneg %p205
        %p312 = pneg %p202
        %p313 = scmp.lt.s32.totalorder %s22, 1
        %s314 = scalar_select %p313, %s22, 1
        %s315 = smul.addr %s314, 8
        %s316 = scalar_lea.vmem %s7, %s315
        %s317 = smul.u32 32, %s22
        %p318 = scmp.lt.s32.totalorder %s317, 63
        %s319 = scalar_select %p318, %s317, 63
        %s320 = smul.addr %s319, 4
        %s321 = scalar_lea.vmem %s0, %s320
        %s322 = smul.u32 32, %s22
        %s323 = smul.u32 32, %s22
        %s324 = smul.u32 32, %s22
        %p325 = scmp.lt.s32.totalorder %s324, 63
        %s326 = scalar_select %p325, %s324, 63
        %s327 = smul.addr %s326, 8
        %s328 = scalar_lea.vmem %s6, %s327
        %s329 = smul.u32 32, %s22
        %p330 = scmp.lt.s32.totalorder %s22, 1
        %s331 = scalar_select %p330, %s22, 1
        %s332 = smul.addr %s331, 8
        %s333 = scalar_lea.vmem %s7, %s332
        %v335 = vld [vmem:[%s321] sm:$0xf]
        %v336 = vld [vmem:[%s321 + $0x4] sm:$0xf]
        %v337 = vld [vmem:[%s321 + $0x8] sm:$0xf]
        %v338 = vld [vmem:[%s321 + $0xc] sm:$0xf]
        %v339 = vld [vmem:[%s321 + $0x10] sm:$0xf]
        %v340 = vld [vmem:[%s321 + $0x14] sm:$0xf]
        %v341 = vld [vmem:[%s321 + $0x18] sm:$0xf]
        %v342 = vld [vmem:[%s321 + $0x1c] sm:$0xf]
        %v343 = vld [vmem:[%s321 + $0x20] sm:$0xf]
        %v344 = vld [vmem:[%s321 + $0x24] sm:$0xf]
        %v345 = vld [vmem:[%s321 + $0x28] sm:$0xf]
        %v346 = vld [vmem:[%s321 + $0x2c] sm:$0xf]
        %v347 = vld [vmem:[%s321 + $0x30] sm:$0xf]
        %v348 = vld [vmem:[%s321 + $0x34] sm:$0xf]
        %v349 = vld [vmem:[%s321 + $0x38] sm:$0xf]
        %v350 = vld [vmem:[%s321 + $0x3c] sm:$0xf]
        %v351 = vld [vmem:[%s321 + $0x40] sm:$0xf]
        %v352 = vld [vmem:[%s321 + $0x44] sm:$0xf]
        %v353 = vld [vmem:[%s321 + $0x48] sm:$0xf]
        %v354 = vld [vmem:[%s321 + $0x4c] sm:$0xf]
        %v355 = vld [vmem:[%s321 + $0x50] sm:$0xf]
        %v356 = vld [vmem:[%s321 + $0x54] sm:$0xf]
        %v357 = vld [vmem:[%s321 + $0x58] sm:$0xf]
        %v358 = vld [vmem:[%s321 + $0x5c] sm:$0xf]
        %v359 = vld [vmem:[%s321 + $0x60] sm:$0xf]
        %v360 = vld [vmem:[%s321 + $0x64] sm:$0xf]
        %v361 = vld [vmem:[%s321 + $0x68] sm:$0xf]
        %v362 = vld [vmem:[%s321 + $0x6c] sm:$0xf]
        %v363 = vld [vmem:[%s321 + $0x70] sm:$0xf]
        %v364 = vld [vmem:[%s321 + $0x74] sm:$0xf]
        %v365 = vld [vmem:[%s321 + $0x78] sm:$0xf]
        %v366 = vld [vmem:[%s321 + $0x7c] sm:$0xf]
        %v367 = vld [vmem:[%s1] sm:$0xf]
        %v368 = vld [vmem:[%s2] sm:$0x1]
        %v370 = vlaneseq
        %v371 = vshrl.u32 %v370, 7
        %v372 = vsub.s32 0, %v371
        %v373 = vrot.slane %v368, %v372
        %v407 = vunpack.c.l.b16 %v335
        %v408 = vunpack.c.l.b16 %v336
        %v409 = vunpack.c.l.b16 %v337
        %v410 = vunpack.c.l.b16 %v338
        %v411 = vunpack.c.l.b16 %v339
        %v412 = vunpack.c.l.b16 %v340
        %v413 = vunpack.c.l.b16 %v341
        %v414 = vunpack.c.l.b16 %v342
        %v415 = vunpack.c.l.b16 %v343
        %v416 = vunpack.c.l.b16 %v344
        %v417 = vunpack.c.l.b16 %v345
        %v418 = vunpack.c.l.b16 %v346
        %v419 = vunpack.c.l.b16 %v347
        %v420 = vunpack.c.l.b16 %v348
        %v421 = vunpack.c.l.b16 %v349
        %v422 = vunpack.c.l.b16 %v350
        %v423 = vunpack.c.l.b16 %v351
        %v424 = vunpack.c.l.b16 %v352
        %v425 = vunpack.c.l.b16 %v353
        %v426 = vunpack.c.l.b16 %v354
        %v427 = vunpack.c.l.b16 %v355
        %v428 = vunpack.c.l.b16 %v356
        %v429 = vunpack.c.l.b16 %v357
        %v430 = vunpack.c.l.b16 %v358
        %v431 = vunpack.c.l.b16 %v359
        %v432 = vunpack.c.l.b16 %v360
        %v433 = vunpack.c.l.b16 %v361
        %v434 = vunpack.c.l.b16 %v362
        %v435 = vunpack.c.l.b16 %v363
        %v436 = vunpack.c.l.b16 %v364
        %v437 = vunpack.c.l.b16 %v365
        %v438 = vunpack.c.l.b16 %v366
        %v439 = vpack.c.b16 %v408, %v407
        %v440 = vpack.c.b16 %v410, %v409
        %v441 = vpack.c.b16 %v412, %v411
        %v442 = vpack.c.b16 %v414, %v413
        %v443 = vpack.c.b16 %v416, %v415
        %v444 = vpack.c.b16 %v418, %v417
        %v445 = vpack.c.b16 %v420, %v419
        %v446 = vpack.c.b16 %v422, %v421
        %v447 = vpack.c.b16 %v424, %v423
        %v448 = vpack.c.b16 %v426, %v425
        %v449 = vpack.c.b16 %v428, %v427
        %v450 = vpack.c.b16 %v430, %v429
        %v451 = vpack.c.b16 %v432, %v431
        %v452 = vpack.c.b16 %v434, %v433
        %v453 = vpack.c.b16 %v436, %v435
        %v454 = vpack.c.b16 %v438, %v437
        %vm455 = vcmask 64512
        %v457 = vsel %vm455, %v439, 0
        %v460 = vsel %vm455, %v440, 0
        %v463 = vsel %vm455, %v441, 0
        %v466 = vsel %vm455, %v442, 0
        %v469 = vsel %vm455, %v443, 0
        %v472 = vsel %vm455, %v444, 0
        %v475 = vsel %vm455, %v445, 0
        %v478 = vsel %vm455, %v446, 0
        %v481 = vsel %vm455, %v447, 0
        %v484 = vsel %vm455, %v448, 0
        %v487 = vsel %vm455, %v449, 0
        %v490 = vsel %vm455, %v450, 0
        %v493 = vsel %vm455, %v451, 0
        %v496 = vsel %vm455, %v452, 0
        %v499 = vsel %vm455, %v453, 0
        %v502 = vsel %vm455, %v454, 0
        %vm504 = vcmask 1043456
        %v506 = vsel %vm504, %v367, 0
        %508 = vmatprep.subr.bf16.mxu0 0
        %509 = vmatpush1.bf16.msra.mxu0 %v506
        %510 = vmatprep.subr.bf16.mxu0 0
        %511 = vmatpush1.bf16.msra.mxu0 0
        %512 = vmatprep.subr.bf16.mxu0 0
        %513 = vmatpush1.bf16.msra.mxu0 0
        %514 = vmatprep.subr.bf16.mxu0 0
        %515 = vmatpush1.bf16.msra.mxu0 0
        %516 = vmatprep.subr.bf16.mxu0 0
        %517 = vmatpush1.bf16.msra.mxu0 0
        %518 = vmatprep.subr.bf16.mxu0 0
        %519 = vmatpush1.bf16.msra.mxu0 0
        %520 = vmatprep.subr.bf16.mxu0 0
        %521 = vmatpush1.bf16.msra.mxu0 0
        %522 = vmatprep.subr.bf16.mxu0 0
        %523 = vmatpush1.bf16.msra.mxu0 0
        %524 = vmatprep.subr.bf16.mxu0 0
        %525 = vmatpush1.bf16.msra.mxu0 0
        %526 = vmatprep.subr.bf16.mxu0 0
        %527 = vmatpush1.bf16.msra.mxu0 0
        %528 = vmatprep.subr.bf16.mxu0 0
        %529 = vmatpush1.bf16.msra.mxu0 0
        %530 = vmatprep.subr.bf16.mxu0 0
        %531 = vmatpush1.bf16.msra.mxu0 0
        %532 = vmatprep.subr.bf16.mxu0 0
        %533 = vmatpush1.bf16.msra.mxu0 0
        %534 = vmatprep.subr.bf16.mxu0 0
        %535 = vmatpush1.bf16.msra.mxu0 0
        %536 = vmatprep.subr.bf16.mxu0 0
        %537 = vmatpush1.bf16.msra.mxu0 0
        %538 = vmatprep.subr.bf16.mxu0 0
        %539 = vmatpush1.bf16.msra.mxu0 0
        %540 = vmatprep.mubr.bf16.mxu0 0
        %541 = vmatmul.mubr.bf16.gmra.mrb[0].mxu0 %v457
        %v542 = vpop.f32.mrb[0].mxu0
        %v543 = vadd.f32 %v373, %v542
        %v544 = vpop.f32.mrb[0].mxu0
        %v545 = vpop.f32.mrb[0].mxu0
        %v546 = vadd.f32 %v373, %v545
        %v547 = vpop.f32.mrb[0].mxu0
        %548 = vmatprep.mubr.bf16.mxu0 0
        %549 = vmatmul.mubr.bf16.gmra.mrb[0].mxu0 %v460
        %v550 = vpop.f32.mrb[0].mxu0
        %v551 = vadd.f32 %v373, %v550
        %v552 = vpop.f32.mrb[0].mxu0
        %v553 = vpop.f32.mrb[0].mxu0
        %v554 = vadd.f32 %v373, %v553
        %v555 = vpop.f32.mrb[0].mxu0
        %556 = vmatprep.mubr.bf16.mxu0 0
        %557 = vmatmul.mubr.bf16.gmra.mrb[0].mxu0 %v463
        %v558 = vpop.f32.mrb[0].mxu0
        %v559 = vadd.f32 %v373, %v558
        %v560 = vpop.f32.mrb[0].mxu0
        %v561 = vpop.f32.mrb[0].mxu0
        %v562 = vadd.f32 %v373, %v561
        %v563 = vpop.f32.mrb[0].mxu0
        %564 = vmatprep.mubr.bf16.mxu0 0
        %565 = vmatmul.mubr.bf16.gmra.mrb[0].mxu0 %v466
        %v566 = vpop.f32.mrb[0].mxu0
        %v567 = vadd.f32 %v373, %v566
        %v568 = vpop.f32.mrb[0].mxu0
        %v569 = vpop.f32.mrb[0].mxu0
        %v570 = vadd.f32 %v373, %v569
        %v571 = vpop.f32.mrb[0].mxu0
        %572 = vmatprep.mubr.bf16.mxu0 0
        %573 = vmatmul.mubr.bf16.gmra.mrb[0].mxu0 %v469
        %v574 = vpop.f32.mrb[0].mxu0
        %v575 = vadd.f32 %v373, %v574
        %v576 = vpop.f32.mrb[0].mxu0
        %v577 = vpop.f32.mrb[0].mxu0
        %v578 = vadd.f32 %v373, %v577
        %v579 = vpop.f32.mrb[0].mxu0
        %580 = vmatprep.mubr.bf16.mxu0 0
        %581 = vmatmul.mubr.bf16.gmra.mrb[0].mxu0 %v472
        %v582 = vpop.f32.mrb[0].mxu0
        %v583 = vadd.f32 %v373, %v582
        %v584 = vpop.f32.mrb[0].mxu0
        %v585 = vpop.f32.mrb[0].mxu0
        %v586 = vadd.f32 %v373, %v585
        %v587 = vpop.f32.mrb[0].mxu0
        %588 = vmatprep.mubr.bf16.mxu0 0
        %589 = vmatmul.mubr.bf16.gmra.mrb[0].mxu0 %v475
        %v590 = vpop.f32.mrb[0].mxu0
        %v591 = vadd.f32 %v373, %v590
        %v592 = vpop.f32.mrb[0].mxu0
        %v593 = vpop.f32.mrb[0].mxu0
        %v594 = vadd.f32 %v373, %v593
        %v595 = vpop.f32.mrb[0].mxu0
        %596 = vmatprep.mubr.bf16.mxu0 0
        %597 = vmatmul.mubr.bf16.gmra.mrb[0].mxu0 %v478
        %v598 = vpop.f32.mrb[0].mxu0
        %v599 = vadd.f32 %v373, %v598
        %v600 = vpop.f32.mrb[0].mxu0
        %v601 = vpop.f32.mrb[0].mxu0
        %v602 = vadd.f32 %v373, %v601
        %v603 = vpop.f32.mrb[0].mxu0
        %604 = vmatprep.mubr.bf16.mxu0 0
        %605 = vmatmul.mubr.bf16.gmra.mrb[0].mxu0 %v481
        %v606 = vpop.f32.mrb[0].mxu0
        %v607 = vadd.f32 %v373, %v606
        %v608 = vpop.f32.mrb[0].mxu0
        %v609 = vpop.f32.mrb[0].mxu0
        %v610 = vadd.f32 %v373, %v609
        %v611 = vpop.f32.mrb[0].mxu0
        %612 = vmatprep.mubr.bf16.mxu0 0
        %613 = vmatmul.mubr.bf16.gmra.mrb[0].mxu0 %v484
        %v614 = vpop.f32.mrb[0].mxu0
        %v615 = vadd.f32 %v373, %v614
        %v616 = vpop.f32.mrb[0].mxu0
        %v617 = vpop.f32.mrb[0].mxu0
        %v618 = vadd.f32 %v373, %v617
        %v619 = vpop.f32.mrb[0].mxu0
        %620 = vmatprep.mubr.bf16.mxu0 0
        %621 = vmatmul.mubr.bf16.gmra.mrb[0].mxu0 %v487
        %v622 = vpop.f32.mrb[0].mxu0
        %v623 = vadd.f32 %v373, %v622
        %v624 = vpop.f32.mrb[0].mxu0
        %v625 = vpop.f32.mrb[0].mxu0
        %v626 = vadd.f32 %v373, %v625
        %v627 = vpop.f32.mrb[0].mxu0
        %628 = vmatprep.mubr.bf16.mxu0 0
        %629 = vmatmul.mubr.bf16.gmra.mrb[0].mxu0 %v490
        %v630 = vpop.f32.mrb[0].mxu0
        %v631 = vadd.f32 %v373, %v630
        %v632 = vpop.f32.mrb[0].mxu0
        %v633 = vpop.f32.mrb[0].mxu0
        %v634 = vadd.f32 %v373, %v633
        %v635 = vpop.f32.mrb[0].mxu0
        %636 = vmatprep.mubr.bf16.mxu0 0
        %637 = vmatmul.mubr.bf16.gmra.mrb[0].mxu0 %v493
        %v638 = vpop.f32.mrb[0].mxu0
        %v639 = vadd.f32 %v373, %v638
        %v640 = vpop.f32.mrb[0].mxu0
        %v641 = vpop.f32.mrb[0].mxu0
        %v642 = vadd.f32 %v373, %v641
        %v643 = vpop.f32.mrb[0].mxu0
        %644 = vmatprep.mubr.bf16.mxu0 0
        %645 = vmatmul.mubr.bf16.gmra.mrb[0].mxu0 %v496
        %v646 = vpop.f32.mrb[0].mxu0
        %v647 = vadd.f32 %v373, %v646
        %v648 = vpop.f32.mrb[0].mxu0
        %v649 = vpop.f32.mrb[0].mxu0
        %v650 = vadd.f32 %v373, %v649
        %v651 = vpop.f32.mrb[0].mxu0
        %652 = vmatprep.mubr.bf16.mxu0 0
        %653 = vmatmul.mubr.bf16.gmra.mrb[0].mxu0 %v499
        %v654 = vpop.f32.mrb[0].mxu0
        %v655 = vadd.f32 %v373, %v654
        %v656 = vpop.f32.mrb[0].mxu0
        %v657 = vpop.f32.mrb[0].mxu0
        %v658 = vadd.f32 %v373, %v657
        %v659 = vpop.f32.mrb[0].mxu0
        %660 = vmatprep.mubr.bf16.mxu0 0
        %661 = vmatmul.mubr.bf16.gmra.mrb[0].mxu0 %v502
        %v662 = vpop.f32.mrb[0].mxu0
        %v663 = vadd.f32 %v373, %v662
        %v664 = vpop.f32.mrb[0].mxu0
        %v665 = vpop.f32.mrb[0].mxu0
        %v666 = vadd.f32 %v373, %v665
        %v667 = vpop.f32.mrb[0].mxu0
        %668 = vdwg.mxu0
        %v669 = vmax.f32 %v543, 0.0
        %v670 = vmax.f32 %v546, 0.0
        %v671 = vmax.f32 %v551, 0.0
        %v672 = vmax.f32 %v554, 0.0
        %v673 = vmax.f32 %v559, 0.0
        %v674 = vmax.f32 %v562, 0.0
        %v675 = vmax.f32 %v567, 0.0
        %v676 = vmax.f32 %v570, 0.0
        %v677 = vmax.f32 %v575, 0.0
        %v678 = vmax.f32 %v578, 0.0
        %v679 = vmax.f32 %v583, 0.0
        %v680 = vmax.f32 %v586, 0.0
        %v681 = vmax.f32 %v591, 0.0
        %v682 = vmax.f32 %v594, 0.0
        %v683 = vmax.f32 %v599, 0.0
        %v684 = vmax.f32 %v602, 0.0
        %v685 = vmax.f32 %v607, 0.0
        %v686 = vmax.f32 %v610, 0.0
        %v687 = vmax.f32 %v615, 0.0
        %v688 = vmax.f32 %v618, 0.0
        %v689 = vmax.f32 %v623, 0.0
        %v690 = vmax.f32 %v626, 0.0
        %v691 = vmax.f32 %v631, 0.0
        %v692 = vmax.f32 %v634, 0.0
        %v693 = vmax.f32 %v639, 0.0
        %v694 = vmax.f32 %v642, 0.0
        %v695 = vmax.f32 %v647, 0.0
        %v696 = vmax.f32 %v650, 0.0
        %v697 = vmax.f32 %v655, 0.0
        %v698 = vmax.f32 %v658, 0.0
        %v699 = vmax.f32 %v663, 0.0
        %v700 = vmax.f32 %v666, 0.0
        %v701 = vpack.c.bf16 %v670, %v669
        %v702 = vpack.c.bf16 %v672, %v671
        %v703 = vpack.c.bf16 %v674, %v673
        %v704 = vpack.c.bf16 %v676, %v675
        %v705 = vpack.c.bf16 %v678, %v677
        %v706 = vpack.c.bf16 %v680, %v679
        %v707 = vpack.c.bf16 %v682, %v681
        %v708 = vpack.c.bf16 %v684, %v683
        %v709 = vpack.c.bf16 %v686, %v685
        %v710 = vpack.c.bf16 %v688, %v687
        %v711 = vpack.c.bf16 %v690, %v689
        %v712 = vpack.c.bf16 %v692, %v691
        %v713 = vpack.c.bf16 %v694, %v693
        %v714 = vpack.c.bf16 %v696, %v695
        %v715 = vpack.c.bf16 %v698, %v697
        %v716 = vpack.c.bf16 %v700, %v699
        %v717 = vld [vmem:[%s3] sm:$0xf]
        %v718 = vld [vmem:[%s3 + $0x4] sm:$0xf]
        %v719 = vld [vmem:[%s3 + $0x8] sm:$0xf]
        %v720 = vld [vmem:[%s3 + $0xc] sm:$0xf]
        %v721 = vld [vmem:[%s4] sm:$0x1]
        %v723 = vlaneseq
        %v724 = vshrl.u32 %v723, 7
        %v725 = vsub.s32 0, %v724
        %v726 = vrot.slane %v721, %v725
        %v732 = vunpack.c.l.b16 %v717
        %v733 = vunpack.c.l.b16 %v718
        %v734 = vunpack.c.l.b16 %v719
        %v735 = vunpack.c.l.b16 %v720
        %v736 = vpack.c.b16 %v733, %v732
        %v737 = vpack.c.b16 %v735, %v734
        %vm740 = vcmask 261120
        %v742 = vsel %vm740, %v701, 0
        %v745 = vsel %vm740, %v702, 0
        %v748 = vsel %vm740, %v703, 0
        %v751 = vsel %vm740, %v704, 0
        %v754 = vsel %vm740, %v705, 0
        %v757 = vsel %vm740, %v706, 0
        %v760 = vsel %vm740, %v707, 0
        %v763 = vsel %vm740, %v708, 0
        %v766 = vsel %vm740, %v709, 0
        %v769 = vsel %vm740, %v710, 0
        %v772 = vsel %vm740, %v711, 0
        %v775 = vsel %vm740, %v712, 0
        %v778 = vsel %vm740, %v713, 0
        %v781 = vsel %vm740, %v714, 0
        %v784 = vsel %vm740, %v715, 0
        %v787 = vsel %vm740, %v716, 0
        %789 = vmatprep.subr.bf16.mxu0 0
        %790 = vmatpush1.bf16.msra.mxu0 %v736
        %791 = vmatprep.subr.bf16.mxu0 0
        %792 = vmatpush1.bf16.msra.mxu0 %v737
        %793 = vmatprep.subr.bf16.mxu0 0
        %794 = vmatpush1.bf16.msra.mxu0 0
        %795 = vmatprep.subr.bf16.mxu0 0
        %796 = vmatpush1.bf16.msra.mxu0 0
        %797 = vmatprep.subr.bf16.mxu0 0
        %798 = vmatpush1.bf16.msra.mxu0 0
        %799 = vmatprep.subr.bf16.mxu0 0
        %800 = vmatpush1.bf16.msra.mxu0 0
        %801 = vmatprep.subr.bf16.mxu0 0
        %802 = vmatpush1.bf16.msra.mxu0 0
        %803 = vmatprep.subr.bf16.mxu0 0
        %804 = vmatpush1.bf16.msra.mxu0 0
        %805 = vmatprep.subr.bf16.mxu0 0
        %806 = vmatpush1.bf16.msra.mxu0 0
        %807 = vmatprep.subr.bf16.mxu0 0
        %808 = vmatpush1.bf16.msra.mxu0 0
        %809 = vmatprep.subr.bf16.mxu0 0
        %810 = vmatpush1.bf16.msra.mxu0 0
        %811 = vmatprep.subr.bf16.mxu0 0
        %812 = vmatpush1.bf16.msra.mxu0 0
        %813 = vmatprep.subr.bf16.mxu0 0
        %814 = vmatpush1.bf16.msra.mxu0 0
        %815 = vmatprep.subr.bf16.mxu0 0
        %816 = vmatpush1.bf16.msra.mxu0 0
        %817 = vmatprep.subr.bf16.mxu0 0
        %818 = vmatpush1.bf16.msra.mxu0 0
        %819 = vmatprep.subr.bf16.mxu0 0
        %820 = vmatpush1.bf16.msra.mxu0 0
        %821 = vmatprep.mubr.bf16.mxu0 0
        %822 = vmatmul.mubr.bf16.gmra.mrb[0].mxu0 %v742
        %v823 = vpop.f32.mrb[0].mxu0
        %v824 = vadd.f32 %v726, %v823
        %v825 = vpop.f32.mrb[0].mxu0
        %v826 = vpop.f32.mrb[0].mxu0
        %v827 = vadd.f32 %v726, %v826
        %v828 = vpop.f32.mrb[0].mxu0
        %829 = vmatprep.mubr.bf16.mxu0 0
        %830 = vmatmul.mubr.bf16.gmra.mrb[0].mxu0 %v745
        %v831 = vpop.f32.mrb[0].mxu0
        %v832 = vadd.f32 %v726, %v831
        %v833 = vpop.f32.mrb[0].mxu0
        %v834 = vpop.f32.mrb[0].mxu0
        %v835 = vadd.f32 %v726, %v834
        %v836 = vpop.f32.mrb[0].mxu0
        %837 = vmatprep.mubr.bf16.mxu0 0
        %838 = vmatmul.mubr.bf16.gmra.mrb[0].mxu0 %v748
        %v839 = vpop.f32.mrb[0].mxu0
        %v840 = vadd.f32 %v726, %v839
        %v841 = vpop.f32.mrb[0].mxu0
        %v842 = vpop.f32.mrb[0].mxu0
        %v843 = vadd.f32 %v726, %v842
        %v844 = vpop.f32.mrb[0].mxu0
        %845 = vmatprep.mubr.bf16.mxu0 0
        %846 = vmatmul.mubr.bf16.gmra.mrb[0].mxu0 %v751
        %v847 = vpop.f32.mrb[0].mxu0
        %v848 = vadd.f32 %v726, %v847
        %v849 = vpop.f32.mrb[0].mxu0
        %v850 = vpop.f32.mrb[0].mxu0
        %v851 = vadd.f32 %v726, %v850
        %v852 = vpop.f32.mrb[0].mxu0
        %853 = vmatprep.mubr.bf16.mxu0 0
        %854 = vmatmul.mubr.bf16.gmra.mrb[0].mxu0 %v754
        %v855 = vpop.f32.mrb[0].mxu0
        %v856 = vadd.f32 %v726, %v855
        %v857 = vpop.f32.mrb[0].mxu0
        %v858 = vpop.f32.mrb[0].mxu0
        %v859 = vadd.f32 %v726, %v858
        %v860 = vpop.f32.mrb[0].mxu0
        %861 = vmatprep.mubr.bf16.mxu0 0
        %862 = vmatmul.mubr.bf16.gmra.mrb[0].mxu0 %v757
        %v863 = vpop.f32.mrb[0].mxu0
        %v864 = vadd.f32 %v726, %v863
        %v865 = vpop.f32.mrb[0].mxu0
        %v866 = vpop.f32.mrb[0].mxu0
        %v867 = vadd.f32 %v726, %v866
        %v868 = vpop.f32.mrb[0].mxu0
        %869 = vmatprep.mubr.bf16.mxu0 0
        %870 = vmatmul.mubr.bf16.gmra.mrb[0].mxu0 %v760
        %v871 = vpop.f32.mrb[0].mxu0
        %v872 = vadd.f32 %v726, %v871
        %v873 = vpop.f32.mrb[0].mxu0
        %v874 = vpop.f32.mrb[0].mxu0
        %v875 = vadd.f32 %v726, %v874
        %v876 = vpop.f32.mrb[0].mxu0
        %877 = vmatprep.mubr.bf16.mxu0 0
        %878 = vmatmul.mubr.bf16.gmra.mrb[0].mxu0 %v763
        %v879 = vpop.f32.mrb[0].mxu0
        %v880 = vadd.f32 %v726, %v879
        %v881 = vpop.f32.mrb[0].mxu0
        %v882 = vpop.f32.mrb[0].mxu0
        %v883 = vadd.f32 %v726, %v882
        %v884 = vpop.f32.mrb[0].mxu0
        %885 = vmatprep.mubr.bf16.mxu0 0
        %886 = vmatmul.mubr.bf16.gmra.mrb[0].mxu0 %v766
        %v887 = vpop.f32.mrb[0].mxu0
        %v888 = vadd.f32 %v726, %v887
        %v889 = vpop.f32.mrb[0].mxu0
        %v890 = vpop.f32.mrb[0].mxu0
        %v891 = vadd.f32 %v726, %v890
        %v892 = vpop.f32.mrb[0].mxu0
        %893 = vmatprep.mubr.bf16.mxu0 0
        %894 = vmatmul.mubr.bf16.gmra.mrb[0].mxu0 %v769
        %v895 = vpop.f32.mrb[0].mxu0
        %v896 = vadd.f32 %v726, %v895
        %v897 = vpop.f32.mrb[0].mxu0
        %v898 = vpop.f32.mrb[0].mxu0
        %v899 = vadd.f32 %v726, %v898
        %v900 = vpop.f32.mrb[0].mxu0
        %901 = vmatprep.mubr.bf16.mxu0 0
        %902 = vmatmul.mubr.bf16.gmra.mrb[0].mxu0 %v772
        %v903 = vpop.f32.mrb[0].mxu0
        %v904 = vadd.f32 %v726, %v903
        %v905 = vpop.f32.mrb[0].mxu0
        %v906 = vpop.f32.mrb[0].mxu0
        %v907 = vadd.f32 %v726, %v906
        %v908 = vpop.f32.mrb[0].mxu0
        %909 = vmatprep.mubr.bf16.mxu0 0
        %910 = vmatmul.mubr.bf16.gmra.mrb[0].mxu0 %v775
        %v911 = vpop.f32.mrb[0].mxu0
        %v912 = vadd.f32 %v726, %v911
        %v913 = vpop.f32.mrb[0].mxu0
        %v914 = vpop.f32.mrb[0].mxu0
        %v915 = vadd.f32 %v726, %v914
        %v916 = vpop.f32.mrb[0].mxu0
        %917 = vmatprep.mubr.bf16.mxu0 0
        %918 = vmatmul.mubr.bf16.gmra.mrb[0].mxu0 %v778
        %v919 = vpop.f32.mrb[0].mxu0
        %v920 = vadd.f32 %v726, %v919
        %v921 = vpop.f32.mrb[0].mxu0
        %v922 = vpop.f32.mrb[0].mxu0
        %v923 = vadd.f32 %v726, %v922
        %v924 = vpop.f32.mrb[0].mxu0
        %925 = vmatprep.mubr.bf16.mxu0 0
        %926 = vmatmul.mubr.bf16.gmra.mrb[0].mxu0 %v781
        %v927 = vpop.f32.mrb[0].mxu0
        %v928 = vadd.f32 %v726, %v927
        %v929 = vpop.f32.mrb[0].mxu0
        %v930 = vpop.f32.mrb[0].mxu0
        %v931 = vadd.f32 %v726, %v930
        %v932 = vpop.f32.mrb[0].mxu0
        %933 = vmatprep.mubr.bf16.mxu0 0
        %934 = vmatmul.mubr.bf16.gmra.mrb[0].mxu0 %v784
        %v935 = vpop.f32.mrb[0].mxu0
        %v936 = vadd.f32 %v726, %v935
        %v937 = vpop.f32.mrb[0].mxu0
        %v938 = vpop.f32.mrb[0].mxu0
        %v939 = vadd.f32 %v726, %v938
        %v940 = vpop.f32.mrb[0].mxu0
        %941 = vmatprep.mubr.bf16.mxu0 0
        %942 = vmatmul.mubr.bf16.gmra.mrb[0].mxu0 %v787
        %v943 = vpop.f32.mrb[0].mxu0
        %v944 = vadd.f32 %v726, %v943
        %v945 = vpop.f32.mrb[0].mxu0
        %v946 = vpop.f32.mrb[0].mxu0
        %v947 = vadd.f32 %v726, %v946
        %v948 = vpop.f32.mrb[0].mxu0
        %949 = vdwg.mxu0
        %v950 = vlaneseq
        %v951 = vand.u32 %v950, 127
        %vm952 = vcmp.ge.s32.totalorder %v951, 9
        %vm953 = vcmp.lt.s32.totalorder %v951, 17
        %vm954 = vmand %vm952, %vm953
        %v955 = vtanh.pop %v824
        %v956 = vtanh.pop %v827
        %v957 = vtanh.pop %v832
        %v958 = vtanh.pop %v835
        %v959 = vtanh.pop %v840
        %v960 = vtanh.pop %v843
        %v961 = vtanh.pop %v848
        %v962 = vtanh.pop %v851
        %v963 = vtanh.pop %v856
        %v964 = vtanh.pop %v859
        %v965 = vtanh.pop %v864
        %v966 = vtanh.pop %v867
        %v967 = vtanh.pop %v872
        %v968 = vtanh.pop %v875
        %v969 = vtanh.pop %v880
        %v970 = vtanh.pop %v883
        %v971 = vtanh.pop %v888
        %v972 = vtanh.pop %v891
        %v973 = vtanh.pop %v896
        %v974 = vtanh.pop %v899
        %v975 = vtanh.pop %v904
        %v976 = vtanh.pop %v907
        %v977 = vtanh.pop %v912
        %v978 = vtanh.pop %v915
        %v979 = vtanh.pop %v920
        %v980 = vtanh.pop %v923
        %v981 = vtanh.pop %v928
        %v982 = vtanh.pop %v931
        %v983 = vtanh.pop %v936
        %v984 = vtanh.pop %v939
        %v985 = vtanh.pop %v944
        %v986 = vtanh.pop %v947
        %v987 = vsel %vm954, %v955, %v824
        %v988 = vsel %vm954, %v956, %v827
        %v989 = vsel %vm954, %v957, %v832
        %v990 = vsel %vm954, %v958, %v835
        %v991 = vsel %vm954, %v959, %v840
        %v992 = vsel %vm954, %v960, %v843
        %v993 = vsel %vm954, %v961, %v848
        %v994 = vsel %vm954, %v962, %v851
        %v995 = vsel %vm954, %v963, %v856
        %v996 = vsel %vm954, %v964, %v859
        %v997 = vsel %vm954, %v965, %v864
        %v998 = vsel %vm954, %v966, %v867
        %v999 = vsel %vm954, %v967, %v872
        %v1000 = vsel %vm954, %v968, %v875
        %v1001 = vsel %vm954, %v969, %v880
        %v1002 = vsel %vm954, %v970, %v883
        %v1003 = vsel %vm954, %v971, %v888
        %v1004 = vsel %vm954, %v972, %v891
        %v1005 = vsel %vm954, %v973, %v896
        %v1006 = vsel %vm954, %v974, %v899
        %v1007 = vsel %vm954, %v975, %v904
        %v1008 = vsel %vm954, %v976, %v907
        %v1009 = vsel %vm954, %v977, %v912
        %v1010 = vsel %vm954, %v978, %v915
        %v1011 = vsel %vm954, %v979, %v920
        %v1012 = vsel %vm954, %v980, %v923
        %v1013 = vsel %vm954, %v981, %v928
        %v1014 = vsel %vm954, %v982, %v931
        %v1015 = vsel %vm954, %v983, %v936
        %v1016 = vsel %vm954, %v984, %v939
        %v1017 = vsel %vm954, %v985, %v944
        %v1018 = vsel %vm954, %v986, %v947
        %vm1019 = vcmp.ge.s32.totalorder %v951, 17
        %v1020 = vmax.f32 %v987, 0.0
        %v1021 = vmax.f32 %v988, 0.0
        %v1022 = vmax.f32 %v989, 0.0
        %v1023 = vmax.f32 %v990, 0.0
        %v1024 = vmax.f32 %v991, 0.0
        %v1025 = vmax.f32 %v992, 0.0
        %v1026 = vmax.f32 %v993, 0.0
        %v1027 = vmax.f32 %v994, 0.0
        %v1028 = vmax.f32 %v995, 0.0
        %v1029 = vmax.f32 %v996, 0.0
        %v1030 = vmax.f32 %v997, 0.0
        %v1031 = vmax.f32 %v998, 0.0
        %v1032 = vmax.f32 %v999, 0.0
        %v1033 = vmax.f32 %v1000, 0.0
        %v1034 = vmax.f32 %v1001, 0.0
        %v1035 = vmax.f32 %v1002, 0.0
        %v1036 = vmax.f32 %v1003, 0.0
        %v1037 = vmax.f32 %v1004, 0.0
        %v1038 = vmax.f32 %v1005, 0.0
        %v1039 = vmax.f32 %v1006, 0.0
        %v1040 = vmax.f32 %v1007, 0.0
        %v1041 = vmax.f32 %v1008, 0.0
        %v1042 = vmax.f32 %v1009, 0.0
        %v1043 = vmax.f32 %v1010, 0.0
        %v1044 = vmax.f32 %v1011, 0.0
        %v1045 = vmax.f32 %v1012, 0.0
        %v1046 = vmax.f32 %v1013, 0.0
        %v1047 = vmax.f32 %v1014, 0.0
        %v1048 = vmax.f32 %v1015, 0.0
        %v1049 = vmax.f32 %v1016, 0.0
        %v1050 = vmax.f32 %v1017, 0.0
        %v1051 = vmax.f32 %v1018, 0.0
        %v1052 = vsel %vm1019, %v1020, %v987
        %v1053 = vsel %vm1019, %v1021, %v988
        %v1054 = vsel %vm1019, %v1022, %v989
        %v1055 = vsel %vm1019, %v1023, %v990
        %v1056 = vsel %vm1019, %v1024, %v991
        %v1057 = vsel %vm1019, %v1025, %v992
        %v1058 = vsel %vm1019, %v1026, %v993
        %v1059 = vsel %vm1019, %v1027, %v994
        %v1060 = vsel %vm1019, %v1028, %v995
        %v1061 = vsel %vm1019, %v1029, %v996
        %v1062 = vsel %vm1019, %v1030, %v997
        %v1063 = vsel %vm1019, %v1031, %v998
        %v1064 = vsel %vm1019, %v1032, %v999
        %v1065 = vsel %vm1019, %v1033, %v1000
        %v1066 = vsel %vm1019, %v1034, %v1001
        %v1067 = vsel %vm1019, %v1035, %v1002
        %v1068 = vsel %vm1019, %v1036, %v1003
        %v1069 = vsel %vm1019, %v1037, %v1004
        %v1070 = vsel %vm1019, %v1038, %v1005
        %v1071 = vsel %vm1019, %v1039, %v1006
        %v1072 = vsel %vm1019, %v1040, %v1007
        %v1073 = vsel %vm1019, %v1041, %v1008
        %v1074 = vsel %vm1019, %v1042, %v1009
        %v1075 = vsel %vm1019, %v1043, %v1010
        %v1076 = vsel %vm1019, %v1044, %v1011
        %v1077 = vsel %vm1019, %v1045, %v1012
        %v1078 = vsel %vm1019, %v1046, %v1013
        %v1079 = vsel %vm1019, %v1047, %v1014
        %v1080 = vsel %vm1019, %v1048, %v1015
        %v1081 = vsel %vm1019, %v1049, %v1016
        %v1082 = vsel %vm1019, %v1050, %v1017
        %v1083 = vsel %vm1019, %v1051, %v1018
        %1084 = vst [vmem:[%s328] sm:$0xff] %v1052
        %1085 = vst [vmem:[%s328 + $0x8] sm:$0xff] %v1053
        %1086 = vst [vmem:[%s328 + $0x10] sm:$0xff] %v1054
        %1087 = vst [vmem:[%s328 + $0x18] sm:$0xff] %v1055
        %1088 = vst [vmem:[%s328 + $0x20] sm:$0xff] %v1056
        %1089 = vst [vmem:[%s328 + $0x28] sm:$0xff] %v1057
        %1090 = vst [vmem:[%s328 + $0x30] sm:$0xff] %v1058
        %1091 = vst [vmem:[%s328 + $0x38] sm:$0xff] %v1059
        %1092 = vst [vmem:[%s328 + $0x40] sm:$0xff] %v1060
        %1093 = vst [vmem:[%s328 + $0x48] sm:$0xff] %v1061
        %1094 = vst [vmem:[%s328 + $0x50] sm:$0xff] %v1062
        %1095 = vst [vmem:[%s328 + $0x58] sm:$0xff] %v1063
        %1096 = vst [vmem:[%s328 + $0x60] sm:$0xff] %v1064
        %1097 = vst [vmem:[%s328 + $0x68] sm:$0xff] %v1065
        %1098 = vst [vmem:[%s328 + $0x70] sm:$0xff] %v1066
        %1099 = vst [vmem:[%s328 + $0x78] sm:$0xff] %v1067
        %1100 = vst [vmem:[%s328 + $0x80] sm:$0xff] %v1068
        %1101 = vst [vmem:[%s328 + $0x88] sm:$0xff] %v1069
        %1102 = vst [vmem:[%s328 + $0x90] sm:$0xff] %v1070
        %1103 = vst [vmem:[%s328 + $0x98] sm:$0xff] %v1071
        %1104 = vst [vmem:[%s328 + $0xa0] sm:$0xff] %v1072
        %1105 = vst [vmem:[%s328 + $0xa8] sm:$0xff] %v1073
        %1106 = vst [vmem:[%s328 + $0xb0] sm:$0xff] %v1074
        %1107 = vst [vmem:[%s328 + $0xb8] sm:$0xff] %v1075
        %1108 = vst [vmem:[%s328 + $0xc0] sm:$0xff] %v1076
        %1109 = vst [vmem:[%s328 + $0xc8] sm:$0xff] %v1077
        %1110 = vst [vmem:[%s328 + $0xd0] sm:$0xff] %v1078
        %1111 = vst [vmem:[%s328 + $0xd8] sm:$0xff] %v1079
        %1112 = vst [vmem:[%s328 + $0xe0] sm:$0xff] %v1080
        %1113 = vst [vmem:[%s328 + $0xe8] sm:$0xff] %v1081
        %1114 = vst [vmem:[%s328 + $0xf0] sm:$0xff] %v1082
        %1115 = vst [vmem:[%s328 + $0xf8] sm:$0xff] %v1083
        %v1116 = vld [vmem:[%s277] sm:$0xff]
        %v1117 = vld [vmem:[%s277 + $0x8] sm:$0xff]
        %v1118 = vld [vmem:[%s277 + $0x10] sm:$0xff]
        %v1119 = vld [vmem:[%s277 + $0x18] sm:$0xff]
        %v1120 = vld [vmem:[%s277 + $0x20] sm:$0xff]
        %v1121 = vld [vmem:[%s277 + $0x28] sm:$0xff]
        %v1122 = vld [vmem:[%s277 + $0x30] sm:$0xff]
        %v1123 = vld [vmem:[%s277 + $0x38] sm:$0xff]
        %v1124 = vld [vmem:[%s277 + $0x40] sm:$0xff]
        %v1125 = vld [vmem:[%s277 + $0x48] sm:$0xff]
        %v1126 = vld [vmem:[%s277 + $0x50] sm:$0xff]
        %v1127 = vld [vmem:[%s277 + $0x58] sm:$0xff]
        %v1128 = vld [vmem:[%s277 + $0x60] sm:$0xff]
        %v1129 = vld [vmem:[%s277 + $0x68] sm:$0xff]
        %v1130 = vld [vmem:[%s277 + $0x70] sm:$0xff]
        %v1131 = vld [vmem:[%s277 + $0x78] sm:$0xff]
        %v1132 = vld [vmem:[%s277 + $0x80] sm:$0xff]
        %v1133 = vld [vmem:[%s277 + $0x88] sm:$0xff]
        %v1134 = vld [vmem:[%s277 + $0x90] sm:$0xff]
        %v1135 = vld [vmem:[%s277 + $0x98] sm:$0xff]
        %v1136 = vld [vmem:[%s277 + $0xa0] sm:$0xff]
        %v1137 = vld [vmem:[%s277 + $0xa8] sm:$0xff]
        %v1138 = vld [vmem:[%s277 + $0xb0] sm:$0xff]
        %v1139 = vld [vmem:[%s277 + $0xb8] sm:$0xff]
        %v1140 = vld [vmem:[%s277 + $0xc0] sm:$0xff]
        %v1141 = vld [vmem:[%s277 + $0xc8] sm:$0xff]
        %v1142 = vld [vmem:[%s277 + $0xd0] sm:$0xff]
        %v1143 = vld [vmem:[%s277 + $0xd8] sm:$0xff]
        %v1144 = vld [vmem:[%s277 + $0xe0] sm:$0xff]
        %v1145 = vld [vmem:[%s277 + $0xe8] sm:$0xff]
        %v1146 = vld [vmem:[%s277 + $0xf0] sm:$0xff]
        %v1147 = vld [vmem:[%s277 + $0xf8] sm:$0xff]
        %vm1148 = vcmp.eq.s32.totalorder %v951, 4
        %v1149 = vsel %vm1148, %v1116, 0.0
        %v1150 = vsel %vm1148, %v1117, 0.0
        %v1151 = vsel %vm1148, %v1118, 0.0
        %v1152 = vsel %vm1148, %v1119, 0.0
        %v1153 = vsel %vm1148, %v1120, 0.0
        %v1154 = vsel %vm1148, %v1121, 0.0
        %v1155 = vsel %vm1148, %v1122, 0.0
        %v1156 = vsel %vm1148, %v1123, 0.0
        %v1157 = vsel %vm1148, %v1124, 0.0
        %v1158 = vsel %vm1148, %v1125, 0.0
        %v1159 = vsel %vm1148, %v1126, 0.0
        %v1160 = vsel %vm1148, %v1127, 0.0
        %v1161 = vsel %vm1148, %v1128, 0.0
        %v1162 = vsel %vm1148, %v1129, 0.0
        %v1163 = vsel %vm1148, %v1130, 0.0
        %v1164 = vsel %vm1148, %v1131, 0.0
        %v1165 = vsel %vm1148, %v1132, 0.0
        %v1166 = vsel %vm1148, %v1133, 0.0
        %v1167 = vsel %vm1148, %v1134, 0.0
        %v1168 = vsel %vm1148, %v1135, 0.0
        %v1169 = vsel %vm1148, %v1136, 0.0
        %v1170 = vsel %vm1148, %v1137, 0.0
        %v1171 = vsel %vm1148, %v1138, 0.0
        %v1172 = vsel %vm1148, %v1139, 0.0
        %v1173 = vsel %vm1148, %v1140, 0.0
        %v1174 = vsel %vm1148, %v1141, 0.0
        %v1175 = vsel %vm1148, %v1142, 0.0
        %v1176 = vsel %vm1148, %v1143, 0.0
        %v1177 = vsel %vm1148, %v1144, 0.0
        %v1178 = vsel %vm1148, %v1145, 0.0
        %v1179 = vsel %vm1148, %v1146, 0.0
        %v1180 = vsel %vm1148, %v1147, 0.0
        %1181 = vadd.xlane.f32.xlu0 %v1149
        %v1182 = vpop.xlane.xlu0 %1181
        %1183 = vadd.xlane.f32.xlu0 %v1150
        %v1184 = vpop.xlane.xlu0 %1183
        %1185 = vadd.xlane.f32.xlu0 %v1151
        %v1186 = vpop.xlane.xlu0 %1185
        %1187 = vadd.xlane.f32.xlu0 %v1152
        %v1188 = vpop.xlane.xlu0 %1187
        %1189 = vadd.xlane.f32.xlu0 %v1153
        %v1190 = vpop.xlane.xlu0 %1189
        %1191 = vadd.xlane.f32.xlu0 %v1154
        %v1192 = vpop.xlane.xlu0 %1191
        %1193 = vadd.xlane.f32.xlu0 %v1155
        %v1194 = vpop.xlane.xlu0 %1193
        %1195 = vadd.xlane.f32.xlu0 %v1156
        %v1196 = vpop.xlane.xlu0 %1195
        %1197 = vadd.xlane.f32.xlu0 %v1157
        %v1198 = vpop.xlane.xlu0 %1197
        %1199 = vadd.xlane.f32.xlu0 %v1158
        %v1200 = vpop.xlane.xlu0 %1199
        %1201 = vadd.xlane.f32.xlu0 %v1159
        %v1202 = vpop.xlane.xlu0 %1201
        %1203 = vadd.xlane.f32.xlu0 %v1160
        %v1204 = vpop.xlane.xlu0 %1203
        %1205 = vadd.xlane.f32.xlu0 %v1161
        %v1206 = vpop.xlane.xlu0 %1205
        %1207 = vadd.xlane.f32.xlu0 %v1162
        %v1208 = vpop.xlane.xlu0 %1207
        %1209 = vadd.xlane.f32.xlu0 %v1163
        %v1210 = vpop.xlane.xlu0 %1209
        %1211 = vadd.xlane.f32.xlu0 %v1164
        %v1212 = vpop.xlane.xlu0 %1211
        %1213 = vadd.xlane.f32.xlu0 %v1165
        %v1214 = vpop.xlane.xlu0 %1213
        %1215 = vadd.xlane.f32.xlu0 %v1166
        %v1216 = vpop.xlane.xlu0 %1215
        %1217 = vadd.xlane.f32.xlu0 %v1167
        %v1218 = vpop.xlane.xlu0 %1217
        %1219 = vadd.xlane.f32.xlu0 %v1168
        %v1220 = vpop.xlane.xlu0 %1219
        %1221 = vadd.xlane.f32.xlu0 %v1169
        %v1222 = vpop.xlane.xlu0 %1221
        %1223 = vadd.xlane.f32.xlu0 %v1170
        %v1224 = vpop.xlane.xlu0 %1223
        %1225 = vadd.xlane.f32.xlu0 %v1171
        %v1226 = vpop.xlane.xlu0 %1225
        %1227 = vadd.xlane.f32.xlu0 %v1172
        %v1228 = vpop.xlane.xlu0 %1227
        %1229 = vadd.xlane.f32.xlu0 %v1173
        %v1230 = vpop.xlane.xlu0 %1229
        %1231 = vadd.xlane.f32.xlu0 %v1174
        %v1232 = vpop.xlane.xlu0 %1231
        %1233 = vadd.xlane.f32.xlu0 %v1175
        %v1234 = vpop.xlane.xlu0 %1233
        %1235 = vadd.xlane.f32.xlu0 %v1176
        %v1236 = vpop.xlane.xlu0 %1235
        %1237 = vadd.xlane.f32.xlu0 %v1177
        %v1238 = vpop.xlane.xlu0 %1237
        %1239 = vadd.xlane.f32.xlu0 %v1178
        %v1240 = vpop.xlane.xlu0 %1239
        %1241 = vadd.xlane.f32.xlu0 %v1179
        %v1242 = vpop.xlane.xlu0 %1241
        %1243 = vadd.xlane.f32.xlu0 %v1180
        %v1244 = vpop.xlane.xlu0 %1243
        %vm1245 = vcmp.gt.f32.partialorder %v1182, 0.5
        %vm1246 = vcmp.gt.f32.partialorder %v1184, 0.5
        %vm1247 = vcmp.gt.f32.partialorder %v1186, 0.5
        %vm1248 = vcmp.gt.f32.partialorder %v1188, 0.5
        %vm1249 = vcmp.gt.f32.partialorder %v1190, 0.5
        %vm1250 = vcmp.gt.f32.partialorder %v1192, 0.5
        %vm1251 = vcmp.gt.f32.partialorder %v1194, 0.5
        %vm1252 = vcmp.gt.f32.partialorder %v1196, 0.5
        %vm1253 = vcmp.gt.f32.partialorder %v1198, 0.5
        %vm1254 = vcmp.gt.f32.partialorder %v1200, 0.5
        %vm1255 = vcmp.gt.f32.partialorder %v1202, 0.5
        %vm1256 = vcmp.gt.f32.partialorder %v1204, 0.5
        %vm1257 = vcmp.gt.f32.partialorder %v1206, 0.5
        %vm1258 = vcmp.gt.f32.partialorder %v1208, 0.5
        %vm1259 = vcmp.gt.f32.partialorder %v1210, 0.5
        %vm1260 = vcmp.gt.f32.partialorder %v1212, 0.5
        %vm1261 = vcmp.gt.f32.partialorder %v1214, 0.5
        %vm1262 = vcmp.gt.f32.partialorder %v1216, 0.5
        %vm1263 = vcmp.gt.f32.partialorder %v1218, 0.5
        %vm1264 = vcmp.gt.f32.partialorder %v1220, 0.5
        %vm1265 = vcmp.gt.f32.partialorder %v1222, 0.5
        %vm1266 = vcmp.gt.f32.partialorder %v1224, 0.5
        %vm1267 = vcmp.gt.f32.partialorder %v1226, 0.5
        %vm1268 = vcmp.gt.f32.partialorder %v1228, 0.5
        %vm1269 = vcmp.gt.f32.partialorder %v1230, 0.5
        %vm1270 = vcmp.gt.f32.partialorder %v1232, 0.5
        %vm1271 = vcmp.gt.f32.partialorder %v1234, 0.5
        %vm1272 = vcmp.gt.f32.partialorder %v1236, 0.5
        %vm1273 = vcmp.gt.f32.partialorder %v1238, 0.5
        %vm1274 = vcmp.gt.f32.partialorder %v1240, 0.5
        %vm1275 = vcmp.gt.f32.partialorder %v1242, 0.5
        %vm1276 = vcmp.gt.f32.partialorder %v1244, 0.5
        %v1277 = vsel %vm1245, 1, 0
        %v1278 = vsel %vm1246, 1, 0
        %v1279 = vsel %vm1247, 1, 0
        %v1280 = vsel %vm1248, 1, 0
        %v1281 = vsel %vm1249, 1, 0
        %v1282 = vsel %vm1250, 1, 0
        %v1283 = vsel %vm1251, 1, 0
        %v1284 = vsel %vm1252, 1, 0
        %v1285 = vsel %vm1253, 1, 0
        %v1286 = vsel %vm1254, 1, 0
        %v1287 = vsel %vm1255, 1, 0
        %v1288 = vsel %vm1256, 1, 0
        %v1289 = vsel %vm1257, 1, 0
        %v1290 = vsel %vm1258, 1, 0
        %v1291 = vsel %vm1259, 1, 0
        %v1292 = vsel %vm1260, 1, 0
        %v1293 = vsel %vm1261, 1, 0
        %v1294 = vsel %vm1262, 1, 0
        %v1295 = vsel %vm1263, 1, 0
        %v1296 = vsel %vm1264, 1, 0
        %v1297 = vsel %vm1265, 1, 0
        %v1298 = vsel %vm1266, 1, 0
        %v1299 = vsel %vm1267, 1, 0
        %v1300 = vsel %vm1268, 1, 0
        %v1301 = vsel %vm1269, 1, 0
        %v1302 = vsel %vm1270, 1, 0
        %v1303 = vsel %vm1271, 1, 0
        %v1304 = vsel %vm1272, 1, 0
        %v1305 = vsel %vm1273, 1, 0
        %v1306 = vsel %vm1274, 1, 0
        %v1307 = vsel %vm1275, 1, 0
        %v1308 = vsel %vm1276, 1, 0
        %v1309 = vcvt.s32.f32 %v1277
        %v1310 = vcvt.s32.f32 %v1278
        %v1311 = vcvt.s32.f32 %v1279
        %v1312 = vcvt.s32.f32 %v1280
        %v1313 = vcvt.s32.f32 %v1281
        %v1314 = vcvt.s32.f32 %v1282
        %v1315 = vcvt.s32.f32 %v1283
        %v1316 = vcvt.s32.f32 %v1284
        %v1317 = vcvt.s32.f32 %v1285
        %v1318 = vcvt.s32.f32 %v1286
        %v1319 = vcvt.s32.f32 %v1287
        %v1320 = vcvt.s32.f32 %v1288
        %v1321 = vcvt.s32.f32 %v1289
        %v1322 = vcvt.s32.f32 %v1290
        %v1323 = vcvt.s32.f32 %v1291
        %v1324 = vcvt.s32.f32 %v1292
        %v1325 = vcvt.s32.f32 %v1293
        %v1326 = vcvt.s32.f32 %v1294
        %v1327 = vcvt.s32.f32 %v1295
        %v1328 = vcvt.s32.f32 %v1296
        %v1329 = vcvt.s32.f32 %v1297
        %v1330 = vcvt.s32.f32 %v1298
        %v1331 = vcvt.s32.f32 %v1299
        %v1332 = vcvt.s32.f32 %v1300
        %v1333 = vcvt.s32.f32 %v1301
        %v1334 = vcvt.s32.f32 %v1302
        %v1335 = vcvt.s32.f32 %v1303
        %v1336 = vcvt.s32.f32 %v1304
        %v1337 = vcvt.s32.f32 %v1305
        %v1338 = vcvt.s32.f32 %v1306
        %v1339 = vcvt.s32.f32 %v1307
        %v1340 = vcvt.s32.f32 %v1308
        %vm1341 = vcmask 7168
        %v1342 = vsel %vm1341, %v1309, 0.0
        %v1343 = vsel %vm1341, %v1310, 0.0
        %v1344 = vadd.f32 %v1342, %v1343
        %v1345 = vsel %vm1341, %v1311, 0.0
        %v1346 = vadd.f32 %v1344, %v1345
        %v1347 = vsel %vm1341, %v1312, 0.0
        %v1348 = vadd.f32 %v1346, %v1347
        %v1349 = vsel %vm1341, %v1313, 0.0
        %v1350 = vadd.f32 %v1348, %v1349
        %v1351 = vsel %vm1341, %v1314, 0.0
        %v1352 = vadd.f32 %v1350, %v1351
        %v1353 = vsel %vm1341, %v1315, 0.0
        %v1354 = vadd.f32 %v1352, %v1353
        %v1355 = vsel %vm1341, %v1316, 0.0
        %v1356 = vadd.f32 %v1354, %v1355
        %v1357 = vsel %vm1341, %v1317, 0.0
        %v1358 = vadd.f32 %v1356, %v1357
        %v1359 = vsel %vm1341, %v1318, 0.0
        %v1360 = vadd.f32 %v1358, %v1359
        %v1361 = vsel %vm1341, %v1319, 0.0
        %v1362 = vadd.f32 %v1360, %v1361
        %v1363 = vsel %vm1341, %v1320, 0.0
        %v1364 = vadd.f32 %v1362, %v1363
        %v1365 = vsel %vm1341, %v1321, 0.0
        %v1366 = vadd.f32 %v1364, %v1365
        %v1367 = vsel %vm1341, %v1322, 0.0
        %v1368 = vadd.f32 %v1366, %v1367
        %v1369 = vsel %vm1341, %v1323, 0.0
        %v1370 = vadd.f32 %v1368, %v1369
        %v1371 = vsel %vm1341, %v1324, 0.0
        %v1372 = vadd.f32 %v1370, %v1371
        %v1373 = vsel %vm1341, %v1325, 0.0
        %v1374 = vadd.f32 %v1372, %v1373
        %v1375 = vsel %vm1341, %v1326, 0.0
        %v1376 = vadd.f32 %v1374, %v1375
        %v1377 = vsel %vm1341, %v1327, 0.0
        %v1378 = vadd.f32 %v1376, %v1377
        %v1379 = vsel %vm1341, %v1328, 0.0
        %v1380 = vadd.f32 %v1378, %v1379
        %v1381 = vsel %vm1341, %v1329, 0.0
        %v1382 = vadd.f32 %v1380, %v1381
        %v1383 = vsel %vm1341, %v1330, 0.0
        %v1384 = vadd.f32 %v1382, %v1383
        %v1385 = vsel %vm1341, %v1331, 0.0
        %v1386 = vadd.f32 %v1384, %v1385
        %v1387 = vsel %vm1341, %v1332, 0.0
        %v1388 = vadd.f32 %v1386, %v1387
        %v1389 = vsel %vm1341, %v1333, 0.0
        %v1390 = vadd.f32 %v1388, %v1389
        %v1391 = vsel %vm1341, %v1334, 0.0
        %v1392 = vadd.f32 %v1390, %v1391
        %v1393 = vsel %vm1341, %v1335, 0.0
        %v1394 = vadd.f32 %v1392, %v1393
        %v1395 = vsel %vm1341, %v1336, 0.0
        %v1396 = vadd.f32 %v1394, %v1395
        %v1397 = vsel %vm1341, %v1337, 0.0
        %v1398 = vadd.f32 %v1396, %v1397
        %v1399 = vsel %vm1341, %v1338, 0.0
        %v1400 = vadd.f32 %v1398, %v1399
        %v1401 = vsel %vm1341, %v1339, 0.0
        %v1402 = vadd.f32 %v1400, %v1401
        %v1403 = vsel %vm1341, %v1340, 0.0
        %v1404 = vadd.f32 %v1402, %v1403
        %1405 = vadd.xlane.f32.xlu0 %v1404
        %v1406 = vpop.xlane.xlu0 %1405
        %v1407 = vrot.slane %v1406, 4
        %v1408 = vadd.f32 %v1406, %v1407
        %v1409 = vrot.slane %v1408, 2
        %v1410 = vadd.f32 %v1408, %v1409
        %v1411 = vrot.slane %v1410, 1
        %v1412 = vadd.f32 %v1410, %v1411
        %s1413 = vtos %v1412
        %v1414 = vsub.f32 %v1052, %v1116
        %v1415 = vsub.f32 %v1053, %v1117
        %v1416 = vsub.f32 %v1054, %v1118
        %v1417 = vsub.f32 %v1055, %v1119
        %v1418 = vsub.f32 %v1056, %v1120
        %v1419 = vsub.f32 %v1057, %v1121
        %v1420 = vsub.f32 %v1058, %v1122
        %v1421 = vsub.f32 %v1059, %v1123
        %v1422 = vsub.f32 %v1060, %v1124
        %v1423 = vsub.f32 %v1061, %v1125
        %v1424 = vsub.f32 %v1062, %v1126
        %v1425 = vsub.f32 %v1063, %v1127
        %v1426 = vsub.f32 %v1064, %v1128
        %v1427 = vsub.f32 %v1065, %v1129
        %v1428 = vsub.f32 %v1066, %v1130
        %v1429 = vsub.f32 %v1067, %v1131
        %v1430 = vsub.f32 %v1068, %v1132
        %v1431 = vsub.f32 %v1069, %v1133
        %v1432 = vsub.f32 %v1070, %v1134
        %v1433 = vsub.f32 %v1071, %v1135
        %v1434 = vsub.f32 %v1072, %v1136
        %v1435 = vsub.f32 %v1073, %v1137
        %v1436 = vsub.f32 %v1074, %v1138
        %v1437 = vsub.f32 %v1075, %v1139
        %v1438 = vsub.f32 %v1076, %v1140
        %v1439 = vsub.f32 %v1077, %v1141
        %v1440 = vsub.f32 %v1078, %v1142
        %v1441 = vsub.f32 %v1079, %v1143
        %v1442 = vsub.f32 %v1080, %v1144
        %v1443 = vsub.f32 %v1081, %v1145
        %v1444 = vsub.f32 %v1082, %v1146
        %v1445 = vsub.f32 %v1083, %v1147
        %v1446 = vand.u32 2147483647, %v1414
        %v1447 = vand.u32 2147483647, %v1415
        %v1448 = vand.u32 2147483647, %v1416
        %v1449 = vand.u32 2147483647, %v1417
        %v1450 = vand.u32 2147483647, %v1418
        %v1451 = vand.u32 2147483647, %v1419
        %v1452 = vand.u32 2147483647, %v1420
        %v1453 = vand.u32 2147483647, %v1421
        %v1454 = vand.u32 2147483647, %v1422
        %v1455 = vand.u32 2147483647, %v1423
        %v1456 = vand.u32 2147483647, %v1424
        %v1457 = vand.u32 2147483647, %v1425
        %v1458 = vand.u32 2147483647, %v1426
        %v1459 = vand.u32 2147483647, %v1427
        %v1460 = vand.u32 2147483647, %v1428
        %v1461 = vand.u32 2147483647, %v1429
        %v1462 = vand.u32 2147483647, %v1430
        %v1463 = vand.u32 2147483647, %v1431
        %v1464 = vand.u32 2147483647, %v1432
        %v1465 = vand.u32 2147483647, %v1433
        %v1466 = vand.u32 2147483647, %v1434
        %v1467 = vand.u32 2147483647, %v1435
        %v1468 = vand.u32 2147483647, %v1436
        %v1469 = vand.u32 2147483647, %v1437
        %v1470 = vand.u32 2147483647, %v1438
        %v1471 = vand.u32 2147483647, %v1439
        %v1472 = vand.u32 2147483647, %v1440
        %v1473 = vand.u32 2147483647, %v1441
        %v1474 = vand.u32 2147483647, %v1442
        %v1475 = vand.u32 2147483647, %v1443
        %v1476 = vand.u32 2147483647, %v1444
        %v1477 = vand.u32 2147483647, %v1445
        %vm1478 = vcmp.lt.f32.partialorder %v1446, 1.0
        %vm1479 = vcmp.lt.f32.partialorder %v1447, 1.0
        %vm1480 = vcmp.lt.f32.partialorder %v1448, 1.0
        %vm1481 = vcmp.lt.f32.partialorder %v1449, 1.0
        %vm1482 = vcmp.lt.f32.partialorder %v1450, 1.0
        %vm1483 = vcmp.lt.f32.partialorder %v1451, 1.0
        %vm1484 = vcmp.lt.f32.partialorder %v1452, 1.0
        %vm1485 = vcmp.lt.f32.partialorder %v1453, 1.0
        %vm1486 = vcmp.lt.f32.partialorder %v1454, 1.0
        %vm1487 = vcmp.lt.f32.partialorder %v1455, 1.0
        %vm1488 = vcmp.lt.f32.partialorder %v1456, 1.0
        %vm1489 = vcmp.lt.f32.partialorder %v1457, 1.0
        %vm1490 = vcmp.lt.f32.partialorder %v1458, 1.0
        %vm1491 = vcmp.lt.f32.partialorder %v1459, 1.0
        %vm1492 = vcmp.lt.f32.partialorder %v1460, 1.0
        %vm1493 = vcmp.lt.f32.partialorder %v1461, 1.0
        %vm1494 = vcmp.lt.f32.partialorder %v1462, 1.0
        %vm1495 = vcmp.lt.f32.partialorder %v1463, 1.0
        %vm1496 = vcmp.lt.f32.partialorder %v1464, 1.0
        %vm1497 = vcmp.lt.f32.partialorder %v1465, 1.0
        %vm1498 = vcmp.lt.f32.partialorder %v1466, 1.0
        %vm1499 = vcmp.lt.f32.partialorder %v1467, 1.0
        %vm1500 = vcmp.lt.f32.partialorder %v1468, 1.0
        %vm1501 = vcmp.lt.f32.partialorder %v1469, 1.0
        %vm1502 = vcmp.lt.f32.partialorder %v1470, 1.0
        %vm1503 = vcmp.lt.f32.partialorder %v1471, 1.0
        %vm1504 = vcmp.lt.f32.partialorder %v1472, 1.0
        %vm1505 = vcmp.lt.f32.partialorder %v1473, 1.0
        %vm1506 = vcmp.lt.f32.partialorder %v1474, 1.0
        %vm1507 = vcmp.lt.f32.partialorder %v1475, 1.0
        %vm1508 = vcmp.lt.f32.partialorder %v1476, 1.0
        %vm1509 = vcmp.lt.f32.partialorder %v1477, 1.0
        %v1510 = vmul.f32 %v1414, 0.5
        %v1511 = vmul.f32 %v1415, 0.5
        %v1512 = vmul.f32 %v1416, 0.5
        %v1513 = vmul.f32 %v1417, 0.5
        %v1514 = vmul.f32 %v1418, 0.5
        %v1515 = vmul.f32 %v1419, 0.5
        %v1516 = vmul.f32 %v1420, 0.5
        %v1517 = vmul.f32 %v1421, 0.5
        %v1518 = vmul.f32 %v1422, 0.5
        %v1519 = vmul.f32 %v1423, 0.5
        %v1520 = vmul.f32 %v1424, 0.5
        %v1521 = vmul.f32 %v1425, 0.5
        %v1522 = vmul.f32 %v1426, 0.5
        %v1523 = vmul.f32 %v1427, 0.5
        %v1524 = vmul.f32 %v1428, 0.5
        %v1525 = vmul.f32 %v1429, 0.5
        %v1526 = vmul.f32 %v1430, 0.5
        %v1527 = vmul.f32 %v1431, 0.5
        %v1528 = vmul.f32 %v1432, 0.5
        %v1529 = vmul.f32 %v1433, 0.5
        %v1530 = vmul.f32 %v1434, 0.5
        %v1531 = vmul.f32 %v1435, 0.5
        %v1532 = vmul.f32 %v1436, 0.5
        %v1533 = vmul.f32 %v1437, 0.5
        %v1534 = vmul.f32 %v1438, 0.5
        %v1535 = vmul.f32 %v1439, 0.5
        %v1536 = vmul.f32 %v1440, 0.5
        %v1537 = vmul.f32 %v1441, 0.5
        %v1538 = vmul.f32 %v1442, 0.5
        %v1539 = vmul.f32 %v1443, 0.5
        %v1540 = vmul.f32 %v1444, 0.5
        %v1541 = vmul.f32 %v1445, 0.5
        %v1542 = vmul.f32 %v1510, %v1414
        %v1543 = vmul.f32 %v1511, %v1415
        %v1544 = vmul.f32 %v1512, %v1416
        %v1545 = vmul.f32 %v1513, %v1417
        %v1546 = vmul.f32 %v1514, %v1418
        %v1547 = vmul.f32 %v1515, %v1419
        %v1548 = vmul.f32 %v1516, %v1420
        %v1549 = vmul.f32 %v1517, %v1421
        %v1550 = vmul.f32 %v1518, %v1422
        %v1551 = vmul.f32 %v1519, %v1423
        %v1552 = vmul.f32 %v1520, %v1424
        %v1553 = vmul.f32 %v1521, %v1425
        %v1554 = vmul.f32 %v1522, %v1426
        %v1555 = vmul.f32 %v1523, %v1427
        %v1556 = vmul.f32 %v1524, %v1428
        %v1557 = vmul.f32 %v1525, %v1429
        %v1558 = vmul.f32 %v1526, %v1430
        %v1559 = vmul.f32 %v1527, %v1431
        %v1560 = vmul.f32 %v1528, %v1432
        %v1561 = vmul.f32 %v1529, %v1433
        %v1562 = vmul.f32 %v1530, %v1434
        %v1563 = vmul.f32 %v1531, %v1435
        %v1564 = vmul.f32 %v1532, %v1436
        %v1565 = vmul.f32 %v1533, %v1437
        %v1566 = vmul.f32 %v1534, %v1438
        %v1567 = vmul.f32 %v1535, %v1439
        %v1568 = vmul.f32 %v1536, %v1440
        %v1569 = vmul.f32 %v1537, %v1441
        %v1570 = vmul.f32 %v1538, %v1442
        %v1571 = vmul.f32 %v1539, %v1443
        %v1572 = vmul.f32 %v1540, %v1444
        %v1573 = vmul.f32 %v1541, %v1445
        %v1574 = vsub.f32 %v1446, 0.5
        %v1575 = vsub.f32 %v1447, 0.5
        %v1576 = vsub.f32 %v1448, 0.5
        %v1577 = vsub.f32 %v1449, 0.5
        %v1578 = vsub.f32 %v1450, 0.5
        %v1579 = vsub.f32 %v1451, 0.5
        %v1580 = vsub.f32 %v1452, 0.5
        %v1581 = vsub.f32 %v1453, 0.5
        %v1582 = vsub.f32 %v1454, 0.5
        %v1583 = vsub.f32 %v1455, 0.5
        %v1584 = vsub.f32 %v1456, 0.5
        %v1585 = vsub.f32 %v1457, 0.5
        %v1586 = vsub.f32 %v1458, 0.5
        %v1587 = vsub.f32 %v1459, 0.5
        %v1588 = vsub.f32 %v1460, 0.5
        %v1589 = vsub.f32 %v1461, 0.5
        %v1590 = vsub.f32 %v1462, 0.5
        %v1591 = vsub.f32 %v1463, 0.5
        %v1592 = vsub.f32 %v1464, 0.5
        %v1593 = vsub.f32 %v1465, 0.5
        %v1594 = vsub.f32 %v1466, 0.5
        %v1595 = vsub.f32 %v1467, 0.5
        %v1596 = vsub.f32 %v1468, 0.5
        %v1597 = vsub.f32 %v1469, 0.5
        %v1598 = vsub.f32 %v1470, 0.5
        %v1599 = vsub.f32 %v1471, 0.5
        %v1600 = vsub.f32 %v1472, 0.5
        %v1601 = vsub.f32 %v1473, 0.5
        %v1602 = vsub.f32 %v1474, 0.5
        %v1603 = vsub.f32 %v1475, 0.5
        %v1604 = vsub.f32 %v1476, 0.5
        %v1605 = vsub.f32 %v1477, 0.5
        %v1606 = vsel %vm1478, %v1542, %v1574
        %v1607 = vsel %vm1479, %v1543, %v1575
        %v1608 = vsel %vm1480, %v1544, %v1576
        %v1609 = vsel %vm1481, %v1545, %v1577
        %v1610 = vsel %vm1482, %v1546, %v1578
        %v1611 = vsel %vm1483, %v1547, %v1579
        %v1612 = vsel %vm1484, %v1548, %v1580
        %v1613 = vsel %vm1485, %v1549, %v1581
        %v1614 = vsel %vm1486, %v1550, %v1582
        %v1615 = vsel %vm1487, %v1551, %v1583
        %v1616 = vsel %vm1488, %v1552, %v1584
        %v1617 = vsel %vm1489, %v1553, %v1585
        %v1618 = vsel %vm1490, %v1554, %v1586
        %v1619 = vsel %vm1491, %v1555, %v1587
        %v1620 = vsel %vm1492, %v1556, %v1588
        %v1621 = vsel %vm1493, %v1557, %v1589
        %v1622 = vsel %vm1494, %v1558, %v1590
        %v1623 = vsel %vm1495, %v1559, %v1591
        %v1624 = vsel %vm1496, %v1560, %v1592
        %v1625 = vsel %vm1497, %v1561, %v1593
        %v1626 = vsel %vm1498, %v1562, %v1594
        %v1627 = vsel %vm1499, %v1563, %v1595
        %v1628 = vsel %vm1500, %v1564, %v1596
        %v1629 = vsel %vm1501, %v1565, %v1597
        %v1630 = vsel %vm1502, %v1566, %v1598
        %v1631 = vsel %vm1503, %v1567, %v1599
        %v1632 = vsel %vm1504, %v1568, %v1600
        %v1633 = vsel %vm1505, %v1569, %v1601
        %v1634 = vsel %vm1506, %v1570, %v1602
        %v1635 = vsel %vm1507, %v1571, %v1603
        %v1636 = vsel %vm1508, %v1572, %v1604
        %v1637 = vsel %vm1509, %v1573, %v1605
        %vm1638 = vcmp.lt.s32.totalorder %v951, 4
        %v1639 = vsel %vm1638, 1, 0
        %v1640 = vcvt.s32.f32 %v1639
        %v1641 = vmul.f32 %v1606, %v1640
        %v1642 = vmul.f32 %v1607, %v1640
        %v1643 = vmul.f32 %v1608, %v1640
        %v1644 = vmul.f32 %v1609, %v1640
        %v1645 = vmul.f32 %v1610, %v1640
        %v1646 = vmul.f32 %v1611, %v1640
        %v1647 = vmul.f32 %v1612, %v1640
        %v1648 = vmul.f32 %v1613, %v1640
        %v1649 = vmul.f32 %v1614, %v1640
        %v1650 = vmul.f32 %v1615, %v1640
        %v1651 = vmul.f32 %v1616, %v1640
        %v1652 = vmul.f32 %v1617, %v1640
        %v1653 = vmul.f32 %v1618, %v1640
        %v1654 = vmul.f32 %v1619, %v1640
        %v1655 = vmul.f32 %v1620, %v1640
        %v1656 = vmul.f32 %v1621, %v1640
        %v1657 = vmul.f32 %v1622, %v1640
        %v1658 = vmul.f32 %v1623, %v1640
        %v1659 = vmul.f32 %v1624, %v1640
        %v1660 = vmul.f32 %v1625, %v1640
        %v1661 = vmul.f32 %v1626, %v1640
        %v1662 = vmul.f32 %v1627, %v1640
        %v1663 = vmul.f32 %v1628, %v1640
        %v1664 = vmul.f32 %v1629, %v1640
        %v1665 = vmul.f32 %v1630, %v1640
        %v1666 = vmul.f32 %v1631, %v1640
        %v1667 = vmul.f32 %v1632, %v1640
        %v1668 = vmul.f32 %v1633, %v1640
        %v1669 = vmul.f32 %v1634, %v1640
        %v1670 = vmul.f32 %v1635, %v1640
        %v1671 = vmul.f32 %v1636, %v1640
        %v1672 = vmul.f32 %v1637, %v1640
        %v1673 = vmul.f32 %v1641, %v1309
        %v1674 = vmul.f32 %v1642, %v1310
        %v1675 = vmul.f32 %v1643, %v1311
        %v1676 = vmul.f32 %v1644, %v1312
        %v1677 = vmul.f32 %v1645, %v1313
        %v1678 = vmul.f32 %v1646, %v1314
        %v1679 = vmul.f32 %v1647, %v1315
        %v1680 = vmul.f32 %v1648, %v1316
        %v1681 = vmul.f32 %v1649, %v1317
        %v1682 = vmul.f32 %v1650, %v1318
        %v1683 = vmul.f32 %v1651, %v1319
        %v1684 = vmul.f32 %v1652, %v1320
        %v1685 = vmul.f32 %v1653, %v1321
        %v1686 = vmul.f32 %v1654, %v1322
        %v1687 = vmul.f32 %v1655, %v1323
        %v1688 = vmul.f32 %v1656, %v1324
        %v1689 = vmul.f32 %v1657, %v1325
        %v1690 = vmul.f32 %v1658, %v1326
        %v1691 = vmul.f32 %v1659, %v1327
        %v1692 = vmul.f32 %v1660, %v1328
        %v1693 = vmul.f32 %v1661, %v1329
        %v1694 = vmul.f32 %v1662, %v1330
        %v1695 = vmul.f32 %v1663, %v1331
        %v1696 = vmul.f32 %v1664, %v1332
        %v1697 = vmul.f32 %v1665, %v1333
        %v1698 = vmul.f32 %v1666, %v1334
        %v1699 = vmul.f32 %v1667, %v1335
        %v1700 = vmul.f32 %v1668, %v1336
        %v1701 = vmul.f32 %v1669, %v1337
        %v1702 = vmul.f32 %v1670, %v1338
        %v1703 = vmul.f32 %v1671, %v1339
        %v1704 = vmul.f32 %v1672, %v1340
        %v1705 = vadd.f32 %v1673, %v1674
        %v1706 = vadd.f32 %v1705, %v1675
        %v1707 = vadd.f32 %v1706, %v1676
        %v1708 = vadd.f32 %v1707, %v1677
        %v1709 = vadd.f32 %v1708, %v1678
        %v1710 = vadd.f32 %v1709, %v1679
        %v1711 = vadd.f32 %v1710, %v1680
        %v1712 = vadd.f32 %v1711, %v1681
        %v1713 = vadd.f32 %v1712, %v1682
        %v1714 = vadd.f32 %v1713, %v1683
        %v1715 = vadd.f32 %v1714, %v1684
        %v1716 = vadd.f32 %v1715, %v1685
        %v1717 = vadd.f32 %v1716, %v1686
        %v1718 = vadd.f32 %v1717, %v1687
        %v1719 = vadd.f32 %v1718, %v1688
        %v1720 = vadd.f32 %v1719, %v1689
        %v1721 = vadd.f32 %v1720, %v1690
        %v1722 = vadd.f32 %v1721, %v1691
        %v1723 = vadd.f32 %v1722, %v1692
        %v1724 = vadd.f32 %v1723, %v1693
        %v1725 = vadd.f32 %v1724, %v1694
        %v1726 = vadd.f32 %v1725, %v1695
        %v1727 = vadd.f32 %v1726, %v1696
        %v1728 = vadd.f32 %v1727, %v1697
        %v1729 = vadd.f32 %v1728, %v1698
        %v1730 = vadd.f32 %v1729, %v1699
        %v1731 = vadd.f32 %v1730, %v1700
        %v1732 = vadd.f32 %v1731, %v1701
        %v1733 = vadd.f32 %v1732, %v1702
        %v1734 = vadd.f32 %v1733, %v1703
        %v1735 = vadd.f32 %v1734, %v1704
        %1736 = vadd.xlane.f32.xlu0 %v1735
        %v1737 = vpop.xlane.xlu0 %1736
        %v1738 = vrot.slane %v1737, 4
        %v1739 = vadd.f32 %v1737, %v1738
        %v1740 = vrot.slane %v1739, 2
        %v1741 = vadd.f32 %v1739, %v1740
        %v1742 = vrot.slane %v1741, 1
        %v1743 = vadd.f32 %v1741, %v1742
        %s1744 = vtos %v1743
        %vm1745 = vcmp.ge.s32.totalorder %v951, 4
        %vm1746 = vcmp.lt.s32.totalorder %v951, 9
        %vm1747 = vmand %vm1745, %vm1746
        %v1748 = vsel %vm1747, %v1052, -inf
        %v1749 = vsel %vm1747, %v1053, -inf
        %v1750 = vsel %vm1747, %v1054, -inf
        %v1751 = vsel %vm1747, %v1055, -inf
        %v1752 = vsel %vm1747, %v1056, -inf
        %v1753 = vsel %vm1747, %v1057, -inf
        %v1754 = vsel %vm1747, %v1058, -inf
        %v1755 = vsel %vm1747, %v1059, -inf
        %v1756 = vsel %vm1747, %v1060, -inf
        %v1757 = vsel %vm1747, %v1061, -inf
        %v1758 = vsel %vm1747, %v1062, -inf
        %v1759 = vsel %vm1747, %v1063, -inf
        %v1760 = vsel %vm1747, %v1064, -inf
        %v1761 = vsel %vm1747, %v1065, -inf
        %v1762 = vsel %vm1747, %v1066, -inf
        %v1763 = vsel %vm1747, %v1067, -inf
        %v1764 = vsel %vm1747, %v1068, -inf
        %v1765 = vsel %vm1747, %v1069, -inf
        %v1766 = vsel %vm1747, %v1070, -inf
        %v1767 = vsel %vm1747, %v1071, -inf
        %v1768 = vsel %vm1747, %v1072, -inf
        %v1769 = vsel %vm1747, %v1073, -inf
        %v1770 = vsel %vm1747, %v1074, -inf
        %v1771 = vsel %vm1747, %v1075, -inf
        %v1772 = vsel %vm1747, %v1076, -inf
        %v1773 = vsel %vm1747, %v1077, -inf
        %v1774 = vsel %vm1747, %v1078, -inf
        %v1775 = vsel %vm1747, %v1079, -inf
        %v1776 = vsel %vm1747, %v1080, -inf
        %v1777 = vsel %vm1747, %v1081, -inf
        %v1778 = vsel %vm1747, %v1082, -inf
        %v1779 = vsel %vm1747, %v1083, -inf
        %1780 = vmax.xlane.f32.xlu0 %v1748
        %v1781 = vpop.xlane.xlu0 %1780
        %1782 = vmax.xlane.f32.xlu0 %v1749
        %v1783 = vpop.xlane.xlu0 %1782
        %1784 = vmax.xlane.f32.xlu0 %v1750
        %v1785 = vpop.xlane.xlu0 %1784
        %1786 = vmax.xlane.f32.xlu0 %v1751
        %v1787 = vpop.xlane.xlu0 %1786
        %1788 = vmax.xlane.f32.xlu0 %v1752
        %v1789 = vpop.xlane.xlu0 %1788
        %1790 = vmax.xlane.f32.xlu0 %v1753
        %v1791 = vpop.xlane.xlu0 %1790
        %1792 = vmax.xlane.f32.xlu0 %v1754
        %v1793 = vpop.xlane.xlu0 %1792
        %1794 = vmax.xlane.f32.xlu0 %v1755
        %v1795 = vpop.xlane.xlu0 %1794
        %1796 = vmax.xlane.f32.xlu0 %v1756
        %v1797 = vpop.xlane.xlu0 %1796
        %1798 = vmax.xlane.f32.xlu0 %v1757
        %v1799 = vpop.xlane.xlu0 %1798
        %1800 = vmax.xlane.f32.xlu0 %v1758
        %v1801 = vpop.xlane.xlu0 %1800
        %1802 = vmax.xlane.f32.xlu0 %v1759
        %v1803 = vpop.xlane.xlu0 %1802
        %1804 = vmax.xlane.f32.xlu0 %v1760
        %v1805 = vpop.xlane.xlu0 %1804
        %1806 = vmax.xlane.f32.xlu0 %v1761
        %v1807 = vpop.xlane.xlu0 %1806
        %1808 = vmax.xlane.f32.xlu0 %v1762
        %v1809 = vpop.xlane.xlu0 %1808
        %1810 = vmax.xlane.f32.xlu0 %v1763
        %v1811 = vpop.xlane.xlu0 %1810
        %1812 = vmax.xlane.f32.xlu0 %v1764
        %v1813 = vpop.xlane.xlu0 %1812
        %1814 = vmax.xlane.f32.xlu0 %v1765
        %v1815 = vpop.xlane.xlu0 %1814
        %1816 = vmax.xlane.f32.xlu0 %v1766
        %v1817 = vpop.xlane.xlu0 %1816
        %1818 = vmax.xlane.f32.xlu0 %v1767
        %v1819 = vpop.xlane.xlu0 %1818
        %1820 = vmax.xlane.f32.xlu0 %v1768
        %v1821 = vpop.xlane.xlu0 %1820
        %1822 = vmax.xlane.f32.xlu0 %v1769
        %v1823 = vpop.xlane.xlu0 %1822
        %1824 = vmax.xlane.f32.xlu0 %v1770
        %v1825 = vpop.xlane.xlu0 %1824
        %1826 = vmax.xlane.f32.xlu0 %v1771
        %v1827 = vpop.xlane.xlu0 %1826
        %1828 = vmax.xlane.f32.xlu0 %v1772
        %v1829 = vpop.xlane.xlu0 %1828
        %1830 = vmax.xlane.f32.xlu0 %v1773
        %v1831 = vpop.xlane.xlu0 %1830
        %1832 = vmax.xlane.f32.xlu0 %v1774
        %v1833 = vpop.xlane.xlu0 %1832
        %1834 = vmax.xlane.f32.xlu0 %v1775
        %v1835 = vpop.xlane.xlu0 %1834
        %1836 = vmax.xlane.f32.xlu0 %v1776
        %v1837 = vpop.xlane.xlu0 %1836
        %1838 = vmax.xlane.f32.xlu0 %v1777
        %v1839 = vpop.xlane.xlu0 %1838
        %1840 = vmax.xlane.f32.xlu0 %v1778
        %v1841 = vpop.xlane.xlu0 %1840
        %1842 = vmax.xlane.f32.xlu0 %v1779
        %v1843 = vpop.xlane.xlu0 %1842
        %v1844 = vsub.f32 %v1748, %v1781
        %v1845 = vsub.f32 %v1749, %v1783
        %v1846 = vsub.f32 %v1750, %v1785
        %v1847 = vsub.f32 %v1751, %v1787
        %v1848 = vsub.f32 %v1752, %v1789
        %v1849 = vsub.f32 %v1753, %v1791
        %v1850 = vsub.f32 %v1754, %v1793
        %v1851 = vsub.f32 %v1755, %v1795
        %v1852 = vsub.f32 %v1756, %v1797
        %v1853 = vsub.f32 %v1757, %v1799
        %v1854 = vsub.f32 %v1758, %v1801
        %v1855 = vsub.f32 %v1759, %v1803
        %v1856 = vsub.f32 %v1760, %v1805
        %v1857 = vsub.f32 %v1761, %v1807
        %v1858 = vsub.f32 %v1762, %v1809
        %v1859 = vsub.f32 %v1763, %v1811
        %v1860 = vsub.f32 %v1764, %v1813
        %v1861 = vsub.f32 %v1765, %v1815
        %v1862 = vsub.f32 %v1766, %v1817
        %v1863 = vsub.f32 %v1767, %v1819
        %v1864 = vsub.f32 %v1768, %v1821
        %v1865 = vsub.f32 %v1769, %v1823
        %v1866 = vsub.f32 %v1770, %v1825
        %v1867 = vsub.f32 %v1771, %v1827
        %v1868 = vsub.f32 %v1772, %v1829
        %v1869 = vsub.f32 %v1773, %v1831
        %v1870 = vsub.f32 %v1774, %v1833
        %v1871 = vsub.f32 %v1775, %v1835
        %v1872 = vsub.f32 %v1776, %v1837
        %v1873 = vsub.f32 %v1777, %v1839
        %v1874 = vsub.f32 %v1778, %v1841
        %v1875 = vsub.f32 %v1779, %v1843
        %v1876 = vmul.f32 %v1844, 1.442695
        %v1877 = vpow.pop %v1876
        %v1878 = vmul.f32 %v1845, 1.442695
        %v1879 = vpow.pop %v1878
        %v1880 = vmul.f32 %v1846, 1.442695
        %v1881 = vpow.pop %v1880
        %v1882 = vmul.f32 %v1847, 1.442695
        %v1883 = vpow.pop %v1882
        %v1884 = vmul.f32 %v1848, 1.442695
        %v1885 = vpow.pop %v1884
        %v1886 = vmul.f32 %v1849, 1.442695
        %v1887 = vpow.pop %v1886
        %v1888 = vmul.f32 %v1850, 1.442695
        %v1889 = vpow.pop %v1888
        %v1890 = vmul.f32 %v1851, 1.442695
        %v1891 = vpow.pop %v1890
        %v1892 = vmul.f32 %v1852, 1.442695
        %v1893 = vpow.pop %v1892
        %v1894 = vmul.f32 %v1853, 1.442695
        %v1895 = vpow.pop %v1894
        %v1896 = vmul.f32 %v1854, 1.442695
        %v1897 = vpow.pop %v1896
        %v1898 = vmul.f32 %v1855, 1.442695
        %v1899 = vpow.pop %v1898
        %v1900 = vmul.f32 %v1856, 1.442695
        %v1901 = vpow.pop %v1900
        %v1902 = vmul.f32 %v1857, 1.442695
        %v1903 = vpow.pop %v1902
        %v1904 = vmul.f32 %v1858, 1.442695
        %v1905 = vpow.pop %v1904
        %v1906 = vmul.f32 %v1859, 1.442695
        %v1907 = vpow.pop %v1906
        %v1908 = vmul.f32 %v1860, 1.442695
        %v1909 = vpow.pop %v1908
        %v1910 = vmul.f32 %v1861, 1.442695
        %v1911 = vpow.pop %v1910
        %v1912 = vmul.f32 %v1862, 1.442695
        %v1913 = vpow.pop %v1912
        %v1914 = vmul.f32 %v1863, 1.442695
        %v1915 = vpow.pop %v1914
        %v1916 = vmul.f32 %v1864, 1.442695
        %v1917 = vpow.pop %v1916
        %v1918 = vmul.f32 %v1865, 1.442695
        %v1919 = vpow.pop %v1918
        %v1920 = vmul.f32 %v1866, 1.442695
        %v1921 = vpow.pop %v1920
        %v1922 = vmul.f32 %v1867, 1.442695
        %v1923 = vpow.pop %v1922
        %v1924 = vmul.f32 %v1868, 1.442695
        %v1925 = vpow.pop %v1924
        %v1926 = vmul.f32 %v1869, 1.442695
        %v1927 = vpow.pop %v1926
        %v1928 = vmul.f32 %v1870, 1.442695
        %v1929 = vpow.pop %v1928
        %v1930 = vmul.f32 %v1871, 1.442695
        %v1931 = vpow.pop %v1930
        %v1932 = vmul.f32 %v1872, 1.442695
        %v1933 = vpow.pop %v1932
        %v1934 = vmul.f32 %v1873, 1.442695
        %v1935 = vpow.pop %v1934
        %v1936 = vmul.f32 %v1874, 1.442695
        %v1937 = vpow.pop %v1936
        %v1938 = vmul.f32 %v1875, 1.442695
        %v1939 = vpow.pop %v1938
        %1940 = vadd.xlane.f32.xlu0 %v1877
        %v1941 = vpop.xlane.xlu0 %1940
        %1942 = vadd.xlane.f32.xlu0 %v1879
        %v1943 = vpop.xlane.xlu0 %1942
        %1944 = vadd.xlane.f32.xlu0 %v1881
        %v1945 = vpop.xlane.xlu0 %1944
        %1946 = vadd.xlane.f32.xlu0 %v1883
        %v1947 = vpop.xlane.xlu0 %1946
        %1948 = vadd.xlane.f32.xlu0 %v1885
        %v1949 = vpop.xlane.xlu0 %1948
        %1950 = vadd.xlane.f32.xlu0 %v1887
        %v1951 = vpop.xlane.xlu0 %1950
        %1952 = vadd.xlane.f32.xlu0 %v1889
        %v1953 = vpop.xlane.xlu0 %1952
        %1954 = vadd.xlane.f32.xlu0 %v1891
        %v1955 = vpop.xlane.xlu0 %1954
        %1956 = vadd.xlane.f32.xlu0 %v1893
        %v1957 = vpop.xlane.xlu0 %1956
        %1958 = vadd.xlane.f32.xlu0 %v1895
        %v1959 = vpop.xlane.xlu0 %1958
        %1960 = vadd.xlane.f32.xlu0 %v1897
        %v1961 = vpop.xlane.xlu0 %1960
        %1962 = vadd.xlane.f32.xlu0 %v1899
        %v1963 = vpop.xlane.xlu0 %1962
        %1964 = vadd.xlane.f32.xlu0 %v1901
        %v1965 = vpop.xlane.xlu0 %1964
        %1966 = vadd.xlane.f32.xlu0 %v1903
        %v1967 = vpop.xlane.xlu0 %1966
        %1968 = vadd.xlane.f32.xlu0 %v1905
        %v1969 = vpop.xlane.xlu0 %1968
        %1970 = vadd.xlane.f32.xlu0 %v1907
        %v1971 = vpop.xlane.xlu0 %1970
        %1972 = vadd.xlane.f32.xlu0 %v1909
        %v1973 = vpop.xlane.xlu0 %1972
        %1974 = vadd.xlane.f32.xlu0 %v1911
        %v1975 = vpop.xlane.xlu0 %1974
        %1976 = vadd.xlane.f32.xlu0 %v1913
        %v1977 = vpop.xlane.xlu0 %1976
        %1978 = vadd.xlane.f32.xlu0 %v1915
        %v1979 = vpop.xlane.xlu0 %1978
        %1980 = vadd.xlane.f32.xlu0 %v1917
        %v1981 = vpop.xlane.xlu0 %1980
        %1982 = vadd.xlane.f32.xlu0 %v1919
        %v1983 = vpop.xlane.xlu0 %1982
        %1984 = vadd.xlane.f32.xlu0 %v1921
        %v1985 = vpop.xlane.xlu0 %1984
        %1986 = vadd.xlane.f32.xlu0 %v1923
        %v1987 = vpop.xlane.xlu0 %1986
        %1988 = vadd.xlane.f32.xlu0 %v1925
        %v1989 = vpop.xlane.xlu0 %1988
        %1990 = vadd.xlane.f32.xlu0 %v1927
        %v1991 = vpop.xlane.xlu0 %1990
        %1992 = vadd.xlane.f32.xlu0 %v1929
        %v1993 = vpop.xlane.xlu0 %1992
        %1994 = vadd.xlane.f32.xlu0 %v1931
        %v1995 = vpop.xlane.xlu0 %1994
        %1996 = vadd.xlane.f32.xlu0 %v1933
        %v1997 = vpop.xlane.xlu0 %1996
        %1998 = vadd.xlane.f32.xlu0 %v1935
        %v1999 = vpop.xlane.xlu0 %1998
        %2000 = vadd.xlane.f32.xlu0 %v1937
        %v2001 = vpop.xlane.xlu0 %2000
        %2002 = vadd.xlane.f32.xlu0 %v1939
        %v2003 = vpop.xlane.xlu0 %2002
        %v2004 = vlog2.pop %v1941
        %v2005 = vmul.f32 %v2004, 0.6931472
        %v2006 = vlog2.pop %v1943
        %v2007 = vmul.f32 %v2006, 0.6931472
        %v2008 = vlog2.pop %v1945
        %v2009 = vmul.f32 %v2008, 0.6931472
        %v2010 = vlog2.pop %v1947
        %v2011 = vmul.f32 %v2010, 0.6931472
        %v2012 = vlog2.pop %v1949
        %v2013 = vmul.f32 %v2012, 0.6931472
        %v2014 = vlog2.pop %v1951
        %v2015 = vmul.f32 %v2014, 0.6931472
        %v2016 = vlog2.pop %v1953
        %v2017 = vmul.f32 %v2016, 0.6931472
        %v2018 = vlog2.pop %v1955
        %v2019 = vmul.f32 %v2018, 0.6931472
        %v2020 = vlog2.pop %v1957
        %v2021 = vmul.f32 %v2020, 0.6931472
        %v2022 = vlog2.pop %v1959
        %v2023 = vmul.f32 %v2022, 0.6931472
        %v2024 = vlog2.pop %v1961
        %v2025 = vmul.f32 %v2024, 0.6931472
        %v2026 = vlog2.pop %v1963
        %v2027 = vmul.f32 %v2026, 0.6931472
        %v2028 = vlog2.pop %v1965
        %v2029 = vmul.f32 %v2028, 0.6931472
        %v2030 = vlog2.pop %v1967
        %v2031 = vmul.f32 %v2030, 0.6931472
        %v2032 = vlog2.pop %v1969
        %v2033 = vmul.f32 %v2032, 0.6931472
        %v2034 = vlog2.pop %v1971
        %v2035 = vmul.f32 %v2034, 0.6931472
        %v2036 = vlog2.pop %v1973
        %v2037 = vmul.f32 %v2036, 0.6931472
        %v2038 = vlog2.pop %v1975
        %v2039 = vmul.f32 %v2038, 0.6931472
        %v2040 = vlog2.pop %v1977
        %v2041 = vmul.f32 %v2040, 0.6931472
        %v2042 = vlog2.pop %v1979
        %v2043 = vmul.f32 %v2042, 0.6931472
        %v2044 = vlog2.pop %v1981
        %v2045 = vmul.f32 %v2044, 0.6931472
        %v2046 = vlog2.pop %v1983
        %v2047 = vmul.f32 %v2046, 0.6931472
        %v2048 = vlog2.pop %v1985
        %v2049 = vmul.f32 %v2048, 0.6931472
        %v2050 = vlog2.pop %v1987
        %v2051 = vmul.f32 %v2050, 0.6931472
        %v2052 = vlog2.pop %v1989
        %v2053 = vmul.f32 %v2052, 0.6931472
        %v2054 = vlog2.pop %v1991
        %v2055 = vmul.f32 %v2054, 0.6931472
        %v2056 = vlog2.pop %v1993
        %v2057 = vmul.f32 %v2056, 0.6931472
        %v2058 = vlog2.pop %v1995
        %v2059 = vmul.f32 %v2058, 0.6931472
        %v2060 = vlog2.pop %v1997
        %v2061 = vmul.f32 %v2060, 0.6931472
        %v2062 = vlog2.pop %v1999
        %v2063 = vmul.f32 %v2062, 0.6931472
        %v2064 = vlog2.pop %v2001
        %v2065 = vmul.f32 %v2064, 0.6931472
        %v2066 = vlog2.pop %v2003
        %v2067 = vmul.f32 %v2066, 0.6931472
        %v2068 = vadd.f32 %v1781, %v2005
        %v2069 = vadd.f32 %v1783, %v2007
        %v2070 = vadd.f32 %v1785, %v2009
        %v2071 = vadd.f32 %v1787, %v2011
        %v2072 = vadd.f32 %v1789, %v2013
        %v2073 = vadd.f32 %v1791, %v2015
        %v2074 = vadd.f32 %v1793, %v2017
        %v2075 = vadd.f32 %v1795, %v2019
        %v2076 = vadd.f32 %v1797, %v2021
        %v2077 = vadd.f32 %v1799, %v2023
        %v2078 = vadd.f32 %v1801, %v2025
        %v2079 = vadd.f32 %v1803, %v2027
        %v2080 = vadd.f32 %v1805, %v2029
        %v2081 = vadd.f32 %v1807, %v2031
        %v2082 = vadd.f32 %v1809, %v2033
        %v2083 = vadd.f32 %v1811, %v2035
        %v2084 = vadd.f32 %v1813, %v2037
        %v2085 = vadd.f32 %v1815, %v2039
        %v2086 = vadd.f32 %v1817, %v2041
        %v2087 = vadd.f32 %v1819, %v2043
        %v2088 = vadd.f32 %v1821, %v2045
        %v2089 = vadd.f32 %v1823, %v2047
        %v2090 = vadd.f32 %v1825, %v2049
        %v2091 = vadd.f32 %v1827, %v2051
        %v2092 = vadd.f32 %v1829, %v2053
        %v2093 = vadd.f32 %v1831, %v2055
        %v2094 = vadd.f32 %v1833, %v2057
        %v2095 = vadd.f32 %v1835, %v2059
        %v2096 = vadd.f32 %v1837, %v2061
        %v2097 = vadd.f32 %v1839, %v2063
        %v2098 = vadd.f32 %v1841, %v2065
        %v2099 = vadd.f32 %v1843, %v2067
        %v2100 = vcvt.f32.s32.to.zero.pseudo %v1182
        %v2101 = vcvt.f32.s32.to.zero.pseudo %v1184
        %v2102 = vcvt.f32.s32.to.zero.pseudo %v1186
        %v2103 = vcvt.f32.s32.to.zero.pseudo %v1188
        %v2104 = vcvt.f32.s32.to.zero.pseudo %v1190
        %v2105 = vcvt.f32.s32.to.zero.pseudo %v1192
        %v2106 = vcvt.f32.s32.to.zero.pseudo %v1194
        %v2107 = vcvt.f32.s32.to.zero.pseudo %v1196
        %v2108 = vcvt.f32.s32.to.zero.pseudo %v1198
        %v2109 = vcvt.f32.s32.to.zero.pseudo %v1200
        %v2110 = vcvt.f32.s32.to.zero.pseudo %v1202
        %v2111 = vcvt.f32.s32.to.zero.pseudo %v1204
        %v2112 = vcvt.f32.s32.to.zero.pseudo %v1206
        %v2113 = vcvt.f32.s32.to.zero.pseudo %v1208
        %v2114 = vcvt.f32.s32.to.zero.pseudo %v1210
        %v2115 = vcvt.f32.s32.to.zero.pseudo %v1212
        %v2116 = vcvt.f32.s32.to.zero.pseudo %v1214
        %v2117 = vcvt.f32.s32.to.zero.pseudo %v1216
        %v2118 = vcvt.f32.s32.to.zero.pseudo %v1218
        %v2119 = vcvt.f32.s32.to.zero.pseudo %v1220
        %v2120 = vcvt.f32.s32.to.zero.pseudo %v1222
        %v2121 = vcvt.f32.s32.to.zero.pseudo %v1224
        %v2122 = vcvt.f32.s32.to.zero.pseudo %v1226
        %v2123 = vcvt.f32.s32.to.zero.pseudo %v1228
        %v2124 = vcvt.f32.s32.to.zero.pseudo %v1230
        %v2125 = vcvt.f32.s32.to.zero.pseudo %v1232
        %v2126 = vcvt.f32.s32.to.zero.pseudo %v1234
        %v2127 = vcvt.f32.s32.to.zero.pseudo %v1236
        %v2128 = vcvt.f32.s32.to.zero.pseudo %v1238
        %v2129 = vcvt.f32.s32.to.zero.pseudo %v1240
        %v2130 = vcvt.f32.s32.to.zero.pseudo %v1242
        %v2131 = vcvt.f32.s32.to.zero.pseudo %v1244
        %v2132 = vadd.s32 %v2100, 4
        %v2133 = vadd.s32 %v2101, 4
        %v2134 = vadd.s32 %v2102, 4
        %v2135 = vadd.s32 %v2103, 4
        %v2136 = vadd.s32 %v2104, 4
        %v2137 = vadd.s32 %v2105, 4
        %v2138 = vadd.s32 %v2106, 4
        %v2139 = vadd.s32 %v2107, 4
        %v2140 = vadd.s32 %v2108, 4
        %v2141 = vadd.s32 %v2109, 4
        %v2142 = vadd.s32 %v2110, 4
        %v2143 = vadd.s32 %v2111, 4
        %v2144 = vadd.s32 %v2112, 4
        %v2145 = vadd.s32 %v2113, 4
        %v2146 = vadd.s32 %v2114, 4
        %v2147 = vadd.s32 %v2115, 4
        %v2148 = vadd.s32 %v2116, 4
        %v2149 = vadd.s32 %v2117, 4
        %v2150 = vadd.s32 %v2118, 4
        %v2151 = vadd.s32 %v2119, 4
        %v2152 = vadd.s32 %v2120, 4
        %v2153 = vadd.s32 %v2121, 4
        %v2154 = vadd.s32 %v2122, 4
        %v2155 = vadd.s32 %v2123, 4
        %v2156 = vadd.s32 %v2124, 4
        %v2157 = vadd.s32 %v2125, 4
        %v2158 = vadd.s32 %v2126, 4
        %v2159 = vadd.s32 %v2127, 4
        %v2160 = vadd.s32 %v2128, 4
        %v2161 = vadd.s32 %v2129, 4
        %v2162 = vadd.s32 %v2130, 4
        %v2163 = vadd.s32 %v2131, 4
        %vm2164 = vcmp.eq.s32.totalorder %v951, %v2132
        %vm2165 = vcmp.eq.s32.totalorder %v951, %v2133
        %vm2166 = vcmp.eq.s32.totalorder %v951, %v2134
        %vm2167 = vcmp.eq.s32.totalorder %v951, %v2135
        %vm2168 = vcmp.eq.s32.totalorder %v951, %v2136
        %vm2169 = vcmp.eq.s32.totalorder %v951, %v2137
        %vm2170 = vcmp.eq.s32.totalorder %v951, %v2138
        %vm2171 = vcmp.eq.s32.totalorder %v951, %v2139
        %vm2172 = vcmp.eq.s32.totalorder %v951, %v2140
        %vm2173 = vcmp.eq.s32.totalorder %v951, %v2141
        %vm2174 = vcmp.eq.s32.totalorder %v951, %v2142
        %vm2175 = vcmp.eq.s32.totalorder %v951, %v2143
        %vm2176 = vcmp.eq.s32.totalorder %v951, %v2144
        %vm2177 = vcmp.eq.s32.totalorder %v951, %v2145
        %vm2178 = vcmp.eq.s32.totalorder %v951, %v2146
        %vm2179 = vcmp.eq.s32.totalorder %v951, %v2147
        %vm2180 = vcmp.eq.s32.totalorder %v951, %v2148
        %vm2181 = vcmp.eq.s32.totalorder %v951, %v2149
        %vm2182 = vcmp.eq.s32.totalorder %v951, %v2150
        %vm2183 = vcmp.eq.s32.totalorder %v951, %v2151
        %vm2184 = vcmp.eq.s32.totalorder %v951, %v2152
        %vm2185 = vcmp.eq.s32.totalorder %v951, %v2153
        %vm2186 = vcmp.eq.s32.totalorder %v951, %v2154
        %vm2187 = vcmp.eq.s32.totalorder %v951, %v2155
        %vm2188 = vcmp.eq.s32.totalorder %v951, %v2156
        %vm2189 = vcmp.eq.s32.totalorder %v951, %v2157
        %vm2190 = vcmp.eq.s32.totalorder %v951, %v2158
        %vm2191 = vcmp.eq.s32.totalorder %v951, %v2159
        %vm2192 = vcmp.eq.s32.totalorder %v951, %v2160
        %vm2193 = vcmp.eq.s32.totalorder %v951, %v2161
        %vm2194 = vcmp.eq.s32.totalorder %v951, %v2162
        %vm2195 = vcmp.eq.s32.totalorder %v951, %v2163
        %v2196 = vsel %vm2164, %v1052, 0.0
        %v2197 = vsel %vm2165, %v1053, 0.0
        %v2198 = vsel %vm2166, %v1054, 0.0
        %v2199 = vsel %vm2167, %v1055, 0.0
        %v2200 = vsel %vm2168, %v1056, 0.0
        %v2201 = vsel %vm2169, %v1057, 0.0
        %v2202 = vsel %vm2170, %v1058, 0.0
        %v2203 = vsel %vm2171, %v1059, 0.0
        %v2204 = vsel %vm2172, %v1060, 0.0
        %v2205 = vsel %vm2173, %v1061, 0.0
        %v2206 = vsel %vm2174, %v1062, 0.0
        %v2207 = vsel %vm2175, %v1063, 0.0
        %v2208 = vsel %vm2176, %v1064, 0.0
        %v2209 = vsel %vm2177, %v1065, 0.0
        %v2210 = vsel %vm2178, %v1066, 0.0
        %v2211 = vsel %vm2179, %v1067, 0.0
        %v2212 = vsel %vm2180, %v1068, 0.0
        %v2213 = vsel %vm2181, %v1069, 0.0
        %v2214 = vsel %vm2182, %v1070, 0.0
        %v2215 = vsel %vm2183, %v1071, 0.0
        %v2216 = vsel %vm2184, %v1072, 0.0
        %v2217 = vsel %vm2185, %v1073, 0.0
        %v2218 = vsel %vm2186, %v1074, 0.0
        %v2219 = vsel %vm2187, %v1075, 0.0
        %v2220 = vsel %vm2188, %v1076, 0.0
        %v2221 = vsel %vm2189, %v1077, 0.0
        %v2222 = vsel %vm2190, %v1078, 0.0
        %v2223 = vsel %vm2191, %v1079, 0.0
        %v2224 = vsel %vm2192, %v1080, 0.0
        %v2225 = vsel %vm2193, %v1081, 0.0
        %v2226 = vsel %vm2194, %v1082, 0.0
        %v2227 = vsel %vm2195, %v1083, 0.0
        %2228 = vadd.xlane.f32.xlu0 %v2196
        %v2229 = vpop.xlane.xlu0 %2228
        %2230 = vadd.xlane.f32.xlu0 %v2197
        %v2231 = vpop.xlane.xlu0 %2230
        %2232 = vadd.xlane.f32.xlu0 %v2198
        %v2233 = vpop.xlane.xlu0 %2232
        %2234 = vadd.xlane.f32.xlu0 %v2199
        %v2235 = vpop.xlane.xlu0 %2234
        %2236 = vadd.xlane.f32.xlu0 %v2200
        %v2237 = vpop.xlane.xlu0 %2236
        %2238 = vadd.xlane.f32.xlu0 %v2201
        %v2239 = vpop.xlane.xlu0 %2238
        %2240 = vadd.xlane.f32.xlu0 %v2202
        %v2241 = vpop.xlane.xlu0 %2240
        %2242 = vadd.xlane.f32.xlu0 %v2203
        %v2243 = vpop.xlane.xlu0 %2242
        %2244 = vadd.xlane.f32.xlu0 %v2204
        %v2245 = vpop.xlane.xlu0 %2244
        %2246 = vadd.xlane.f32.xlu0 %v2205
        %v2247 = vpop.xlane.xlu0 %2246
        %2248 = vadd.xlane.f32.xlu0 %v2206
        %v2249 = vpop.xlane.xlu0 %2248
        %2250 = vadd.xlane.f32.xlu0 %v2207
        %v2251 = vpop.xlane.xlu0 %2250
        %2252 = vadd.xlane.f32.xlu0 %v2208
        %v2253 = vpop.xlane.xlu0 %2252
        %2254 = vadd.xlane.f32.xlu0 %v2209
        %v2255 = vpop.xlane.xlu0 %2254
        %2256 = vadd.xlane.f32.xlu0 %v2210
        %v2257 = vpop.xlane.xlu0 %2256
        %2258 = vadd.xlane.f32.xlu0 %v2211
        %v2259 = vpop.xlane.xlu0 %2258
        %2260 = vadd.xlane.f32.xlu0 %v2212
        %v2261 = vpop.xlane.xlu0 %2260
        %2262 = vadd.xlane.f32.xlu0 %v2213
        %v2263 = vpop.xlane.xlu0 %2262
        %2264 = vadd.xlane.f32.xlu0 %v2214
        %v2265 = vpop.xlane.xlu0 %2264
        %2266 = vadd.xlane.f32.xlu0 %v2215
        %v2267 = vpop.xlane.xlu0 %2266
        %2268 = vadd.xlane.f32.xlu0 %v2216
        %v2269 = vpop.xlane.xlu0 %2268
        %2270 = vadd.xlane.f32.xlu0 %v2217
        %v2271 = vpop.xlane.xlu0 %2270
        %2272 = vadd.xlane.f32.xlu0 %v2218
        %v2273 = vpop.xlane.xlu0 %2272
        %2274 = vadd.xlane.f32.xlu0 %v2219
        %v2275 = vpop.xlane.xlu0 %2274
        %2276 = vadd.xlane.f32.xlu0 %v2220
        %v2277 = vpop.xlane.xlu0 %2276
        %2278 = vadd.xlane.f32.xlu0 %v2221
        %v2279 = vpop.xlane.xlu0 %2278
        %2280 = vadd.xlane.f32.xlu0 %v2222
        %v2281 = vpop.xlane.xlu0 %2280
        %2282 = vadd.xlane.f32.xlu0 %v2223
        %v2283 = vpop.xlane.xlu0 %2282
        %2284 = vadd.xlane.f32.xlu0 %v2224
        %v2285 = vpop.xlane.xlu0 %2284
        %2286 = vadd.xlane.f32.xlu0 %v2225
        %v2287 = vpop.xlane.xlu0 %2286
        %2288 = vadd.xlane.f32.xlu0 %v2226
        %v2289 = vpop.xlane.xlu0 %2288
        %2290 = vadd.xlane.f32.xlu0 %v2227
        %v2291 = vpop.xlane.xlu0 %2290
        %v2292 = vsub.f32 %v2068, %v2229
        %v2293 = vsub.f32 %v2069, %v2231
        %v2294 = vsub.f32 %v2070, %v2233
        %v2295 = vsub.f32 %v2071, %v2235
        %v2296 = vsub.f32 %v2072, %v2237
        %v2297 = vsub.f32 %v2073, %v2239
        %v2298 = vsub.f32 %v2074, %v2241
        %v2299 = vsub.f32 %v2075, %v2243
        %v2300 = vsub.f32 %v2076, %v2245
        %v2301 = vsub.f32 %v2077, %v2247
        %v2302 = vsub.f32 %v2078, %v2249
        %v2303 = vsub.f32 %v2079, %v2251
        %v2304 = vsub.f32 %v2080, %v2253
        %v2305 = vsub.f32 %v2081, %v2255
        %v2306 = vsub.f32 %v2082, %v2257
        %v2307 = vsub.f32 %v2083, %v2259
        %v2308 = vsub.f32 %v2084, %v2261
        %v2309 = vsub.f32 %v2085, %v2263
        %v2310 = vsub.f32 %v2086, %v2265
        %v2311 = vsub.f32 %v2087, %v2267
        %v2312 = vsub.f32 %v2088, %v2269
        %v2313 = vsub.f32 %v2089, %v2271
        %v2314 = vsub.f32 %v2090, %v2273
        %v2315 = vsub.f32 %v2091, %v2275
        %v2316 = vsub.f32 %v2092, %v2277
        %v2317 = vsub.f32 %v2093, %v2279
        %v2318 = vsub.f32 %v2094, %v2281
        %v2319 = vsub.f32 %v2095, %v2283
        %v2320 = vsub.f32 %v2096, %v2285
        %v2321 = vsub.f32 %v2097, %v2287
        %v2322 = vsub.f32 %v2098, %v2289
        %v2323 = vsub.f32 %v2099, %v2291
        %v2324 = vsel %vm1341, %v2292, 0.0
        %v2325 = vsel %vm1341, %v2293, 0.0
        %v2326 = vadd.f32 %v2324, %v2325
        %v2327 = vsel %vm1341, %v2294, 0.0
        %v2328 = vadd.f32 %v2326, %v2327
        %v2329 = vsel %vm1341, %v2295, 0.0
        %v2330 = vadd.f32 %v2328, %v2329
        %v2331 = vsel %vm1341, %v2296, 0.0
        %v2332 = vadd.f32 %v2330, %v2331
        %v2333 = vsel %vm1341, %v2297, 0.0
        %v2334 = vadd.f32 %v2332, %v2333
        %v2335 = vsel %vm1341, %v2298, 0.0
        %v2336 = vadd.f32 %v2334, %v2335
        %v2337 = vsel %vm1341, %v2299, 0.0
        %v2338 = vadd.f32 %v2336, %v2337
        %v2339 = vsel %vm1341, %v2300, 0.0
        %v2340 = vadd.f32 %v2338, %v2339
        %v2341 = vsel %vm1341, %v2301, 0.0
        %v2342 = vadd.f32 %v2340, %v2341
        %v2343 = vsel %vm1341, %v2302, 0.0
        %v2344 = vadd.f32 %v2342, %v2343
        %v2345 = vsel %vm1341, %v2303, 0.0
        %v2346 = vadd.f32 %v2344, %v2345
        %v2347 = vsel %vm1341, %v2304, 0.0
        %v2348 = vadd.f32 %v2346, %v2347
        %v2349 = vsel %vm1341, %v2305, 0.0
        %v2350 = vadd.f32 %v2348, %v2349
        %v2351 = vsel %vm1341, %v2306, 0.0
        %v2352 = vadd.f32 %v2350, %v2351
        %v2353 = vsel %vm1341, %v2307, 0.0
        %v2354 = vadd.f32 %v2352, %v2353
        %v2355 = vsel %vm1341, %v2308, 0.0
        %v2356 = vadd.f32 %v2354, %v2355
        %v2357 = vsel %vm1341, %v2309, 0.0
        %v2358 = vadd.f32 %v2356, %v2357
        %v2359 = vsel %vm1341, %v2310, 0.0
        %v2360 = vadd.f32 %v2358, %v2359
        %v2361 = vsel %vm1341, %v2311, 0.0
        %v2362 = vadd.f32 %v2360, %v2361
        %v2363 = vsel %vm1341, %v2312, 0.0
        %v2364 = vadd.f32 %v2362, %v2363
        %v2365 = vsel %vm1341, %v2313, 0.0
        %v2366 = vadd.f32 %v2364, %v2365
        %v2367 = vsel %vm1341, %v2314, 0.0
        %v2368 = vadd.f32 %v2366, %v2367
        %v2369 = vsel %vm1341, %v2315, 0.0
        %v2370 = vadd.f32 %v2368, %v2369
        %v2371 = vsel %vm1341, %v2316, 0.0
        %v2372 = vadd.f32 %v2370, %v2371
        %v2373 = vsel %vm1341, %v2317, 0.0
        %v2374 = vadd.f32 %v2372, %v2373
        %v2375 = vsel %vm1341, %v2318, 0.0
        %v2376 = vadd.f32 %v2374, %v2375
        %v2377 = vsel %vm1341, %v2319, 0.0
        %v2378 = vadd.f32 %v2376, %v2377
        %v2379 = vsel %vm1341, %v2320, 0.0
        %v2380 = vadd.f32 %v2378, %v2379
        %v2381 = vsel %vm1341, %v2321, 0.0
        %v2382 = vadd.f32 %v2380, %v2381
        %v2383 = vsel %vm1341, %v2322, 0.0
        %v2384 = vadd.f32 %v2382, %v2383
        %v2385 = vsel %vm1341, %v2323, 0.0
        %v2386 = vadd.f32 %v2384, %v2385
        %2387 = vadd.xlane.f32.xlu0 %v2386
        %v2388 = vpop.xlane.xlu0 %2387
        %v2389 = vrot.slane %v2388, 4
        %v2390 = vadd.f32 %v2388, %v2389
        %v2391 = vrot.slane %v2390, 2
        %v2392 = vadd.f32 %v2390, %v2391
        %v2393 = vrot.slane %v2392, 1
        %v2394 = vadd.f32 %v2392, %v2393
        %s2395 = vtos %v2394
        %v2396 = vlaneseq
        %v2397 = vshrl.u32 %v2396, 7
        %v2398 = vsub.s32 0, %v2397
        %v2399 = vrot.slane %v1052, %v2398
        %2401 = vrot.lane.b32.xlu0 %v2399, 8
        %v2402 = vpop.permute.xlu0 %2401
        %v2404 = vmul.f32 %v1052, %v2402
        %v2405 = vmul.f32 %v1053, %v2402
        %v2406 = vmul.f32 %v1054, %v2402
        %v2407 = vmul.f32 %v1055, %v2402
        %v2408 = vmul.f32 %v1056, %v2402
        %v2409 = vmul.f32 %v1057, %v2402
        %v2410 = vmul.f32 %v1058, %v2402
        %v2411 = vmul.f32 %v1059, %v2402
        %v2412 = vmul.f32 %v1060, %v2402
        %v2413 = vmul.f32 %v1061, %v2402
        %v2414 = vmul.f32 %v1062, %v2402
        %v2415 = vmul.f32 %v1063, %v2402
        %v2416 = vmul.f32 %v1064, %v2402
        %v2417 = vmul.f32 %v1065, %v2402
        %v2418 = vmul.f32 %v1066, %v2402
        %v2419 = vmul.f32 %v1067, %v2402
        %v2420 = vmul.f32 %v1068, %v2402
        %v2421 = vmul.f32 %v1069, %v2402
        %v2422 = vmul.f32 %v1070, %v2402
        %v2423 = vmul.f32 %v1071, %v2402
        %v2424 = vmul.f32 %v1072, %v2402
        %v2425 = vmul.f32 %v1073, %v2402
        %v2426 = vmul.f32 %v1074, %v2402
        %v2427 = vmul.f32 %v1075, %v2402
        %v2428 = vmul.f32 %v1076, %v2402
        %v2429 = vmul.f32 %v1077, %v2402
        %v2430 = vmul.f32 %v1078, %v2402
        %v2431 = vmul.f32 %v1079, %v2402
        %v2432 = vmul.f32 %v1080, %v2402
        %v2433 = vmul.f32 %v1081, %v2402
        %v2434 = vmul.f32 %v1082, %v2402
        %v2435 = vmul.f32 %v1083, %v2402
        %2468 = vrot.lane.b32.xlu0 %v2404, 111
        %v2469 = vpop.permute.xlu0 %2468
        %2470 = vrot.lane.b32.xlu0 %v2405, 111
        %v2471 = vpop.permute.xlu0 %2470
        %2472 = vrot.lane.b32.xlu0 %v2406, 111
        %v2473 = vpop.permute.xlu0 %2472
        %2474 = vrot.lane.b32.xlu0 %v2407, 111
        %v2475 = vpop.permute.xlu0 %2474
        %2476 = vrot.lane.b32.xlu0 %v2408, 111
        %v2477 = vpop.permute.xlu0 %2476
        %2478 = vrot.lane.b32.xlu0 %v2409, 111
        %v2479 = vpop.permute.xlu0 %2478
        %2480 = vrot.lane.b32.xlu0 %v2410, 111
        %v2481 = vpop.permute.xlu0 %2480
        %2482 = vrot.lane.b32.xlu0 %v2411, 111
        %v2483 = vpop.permute.xlu0 %2482
        %2484 = vrot.lane.b32.xlu0 %v2412, 111
        %v2485 = vpop.permute.xlu0 %2484
        %2486 = vrot.lane.b32.xlu0 %v2413, 111
        %v2487 = vpop.permute.xlu0 %2486
        %2488 = vrot.lane.b32.xlu0 %v2414, 111
        %v2489 = vpop.permute.xlu0 %2488
        %2490 = vrot.lane.b32.xlu0 %v2415, 111
        %v2491 = vpop.permute.xlu0 %2490
        %2492 = vrot.lane.b32.xlu0 %v2416, 111
        %v2493 = vpop.permute.xlu0 %2492
        %2494 = vrot.lane.b32.xlu0 %v2417, 111
        %v2495 = vpop.permute.xlu0 %2494
        %2496 = vrot.lane.b32.xlu0 %v2418, 111
        %v2497 = vpop.permute.xlu0 %2496
        %2498 = vrot.lane.b32.xlu0 %v2419, 111
        %v2499 = vpop.permute.xlu0 %2498
        %2500 = vrot.lane.b32.xlu0 %v2420, 111
        %v2501 = vpop.permute.xlu0 %2500
        %2502 = vrot.lane.b32.xlu0 %v2421, 111
        %v2503 = vpop.permute.xlu0 %2502
        %2504 = vrot.lane.b32.xlu0 %v2422, 111
        %v2505 = vpop.permute.xlu0 %2504
        %2506 = vrot.lane.b32.xlu0 %v2423, 111
        %v2507 = vpop.permute.xlu0 %2506
        %2508 = vrot.lane.b32.xlu0 %v2424, 111
        %v2509 = vpop.permute.xlu0 %2508
        %2510 = vrot.lane.b32.xlu0 %v2425, 111
        %v2511 = vpop.permute.xlu0 %2510
        %2512 = vrot.lane.b32.xlu0 %v2426, 111
        %v2513 = vpop.permute.xlu0 %2512
        %2514 = vrot.lane.b32.xlu0 %v2427, 111
        %v2515 = vpop.permute.xlu0 %2514
        %2516 = vrot.lane.b32.xlu0 %v2428, 111
        %v2517 = vpop.permute.xlu0 %2516
        %2518 = vrot.lane.b32.xlu0 %v2429, 111
        %v2519 = vpop.permute.xlu0 %2518
        %2520 = vrot.lane.b32.xlu0 %v2430, 111
        %v2521 = vpop.permute.xlu0 %2520
        %2522 = vrot.lane.b32.xlu0 %v2431, 111
        %v2523 = vpop.permute.xlu0 %2522
        %2524 = vrot.lane.b32.xlu0 %v2432, 111
        %v2525 = vpop.permute.xlu0 %2524
        %2526 = vrot.lane.b32.xlu0 %v2433, 111
        %v2527 = vpop.permute.xlu0 %2526
        %2528 = vrot.lane.b32.xlu0 %v2434, 111
        %v2529 = vpop.permute.xlu0 %2528
        %2530 = vrot.lane.b32.xlu0 %v2435, 111
        %v2531 = vpop.permute.xlu0 %2530
        %v2564 = vsel %vm455, %v2469, 0.0
        %2565 = vadd.xlane.f32.xlu0 %v2564
        %v2566 = vpop.xlane.xlu0 %2565
        %v2567 = vsel %vm455, %v2471, 0.0
        %2568 = vadd.xlane.f32.xlu0 %v2567
        %v2569 = vpop.xlane.xlu0 %2568
        %v2570 = vsel %vm455, %v2473, 0.0
        %2571 = vadd.xlane.f32.xlu0 %v2570
        %v2572 = vpop.xlane.xlu0 %2571
        %v2573 = vsel %vm455, %v2475, 0.0
        %2574 = vadd.xlane.f32.xlu0 %v2573
        %v2575 = vpop.xlane.xlu0 %2574
        %v2576 = vsel %vm455, %v2477, 0.0
        %2577 = vadd.xlane.f32.xlu0 %v2576
        %v2578 = vpop.xlane.xlu0 %2577
        %v2579 = vsel %vm455, %v2479, 0.0
        %2580 = vadd.xlane.f32.xlu0 %v2579
        %v2581 = vpop.xlane.xlu0 %2580
        %v2582 = vsel %vm455, %v2481, 0.0
        %2583 = vadd.xlane.f32.xlu0 %v2582
        %v2584 = vpop.xlane.xlu0 %2583
        %v2585 = vsel %vm455, %v2483, 0.0
        %2586 = vadd.xlane.f32.xlu0 %v2585
        %v2587 = vpop.xlane.xlu0 %2586
        %v2588 = vsel %vm455, %v2485, 0.0
        %2589 = vadd.xlane.f32.xlu0 %v2588
        %v2590 = vpop.xlane.xlu0 %2589
        %v2591 = vsel %vm455, %v2487, 0.0
        %2592 = vadd.xlane.f32.xlu0 %v2591
        %v2593 = vpop.xlane.xlu0 %2592
        %v2594 = vsel %vm455, %v2489, 0.0
        %2595 = vadd.xlane.f32.xlu0 %v2594
        %v2596 = vpop.xlane.xlu0 %2595
        %v2597 = vsel %vm455, %v2491, 0.0
        %2598 = vadd.xlane.f32.xlu0 %v2597
        %v2599 = vpop.xlane.xlu0 %2598
        %v2600 = vsel %vm455, %v2493, 0.0
        %2601 = vadd.xlane.f32.xlu0 %v2600
        %v2602 = vpop.xlane.xlu0 %2601
        %v2603 = vsel %vm455, %v2495, 0.0
        %2604 = vadd.xlane.f32.xlu0 %v2603
        %v2605 = vpop.xlane.xlu0 %2604
        %v2606 = vsel %vm455, %v2497, 0.0
        %2607 = vadd.xlane.f32.xlu0 %v2606
        %v2608 = vpop.xlane.xlu0 %2607
        %v2609 = vsel %vm455, %v2499, 0.0
        %2610 = vadd.xlane.f32.xlu0 %v2609
        %v2611 = vpop.xlane.xlu0 %2610
        %v2612 = vsel %vm455, %v2501, 0.0
        %2613 = vadd.xlane.f32.xlu0 %v2612
        %v2614 = vpop.xlane.xlu0 %2613
        %v2615 = vsel %vm455, %v2503, 0.0
        %2616 = vadd.xlane.f32.xlu0 %v2615
        %v2617 = vpop.xlane.xlu0 %2616
        %v2618 = vsel %vm455, %v2505, 0.0
        %2619 = vadd.xlane.f32.xlu0 %v2618
        %v2620 = vpop.xlane.xlu0 %2619
        %v2621 = vsel %vm455, %v2507, 0.0
        %2622 = vadd.xlane.f32.xlu0 %v2621
        %v2623 = vpop.xlane.xlu0 %2622
        %v2624 = vsel %vm455, %v2509, 0.0
        %2625 = vadd.xlane.f32.xlu0 %v2624
        %v2626 = vpop.xlane.xlu0 %2625
        %v2627 = vsel %vm455, %v2511, 0.0
        %2628 = vadd.xlane.f32.xlu0 %v2627
        %v2629 = vpop.xlane.xlu0 %2628
        %v2630 = vsel %vm455, %v2513, 0.0
        %2631 = vadd.xlane.f32.xlu0 %v2630
        %v2632 = vpop.xlane.xlu0 %2631
        %v2633 = vsel %vm455, %v2515, 0.0
        %2634 = vadd.xlane.f32.xlu0 %v2633
        %v2635 = vpop.xlane.xlu0 %2634
        %v2636 = vsel %vm455, %v2517, 0.0
        %2637 = vadd.xlane.f32.xlu0 %v2636
        %v2638 = vpop.xlane.xlu0 %2637
        %v2639 = vsel %vm455, %v2519, 0.0
        %2640 = vadd.xlane.f32.xlu0 %v2639
        %v2641 = vpop.xlane.xlu0 %2640
        %v2642 = vsel %vm455, %v2521, 0.0
        %2643 = vadd.xlane.f32.xlu0 %v2642
        %v2644 = vpop.xlane.xlu0 %2643
        %v2645 = vsel %vm455, %v2523, 0.0
        %2646 = vadd.xlane.f32.xlu0 %v2645
        %v2647 = vpop.xlane.xlu0 %2646
        %v2648 = vsel %vm455, %v2525, 0.0
        %2649 = vadd.xlane.f32.xlu0 %v2648
        %v2650 = vpop.xlane.xlu0 %2649
        %v2651 = vsel %vm455, %v2527, 0.0
        %2652 = vadd.xlane.f32.xlu0 %v2651
        %v2653 = vpop.xlane.xlu0 %2652
        %v2654 = vsel %vm455, %v2529, 0.0
        %2655 = vadd.xlane.f32.xlu0 %v2654
        %v2656 = vpop.xlane.xlu0 %2655
        %v2657 = vsel %vm455, %v2531, 0.0
        %2658 = vadd.xlane.f32.xlu0 %v2657
        %v2659 = vpop.xlane.xlu0 %2658
        %vm2660 = vcmp.eq.s32.totalorder %v951, 5
        %v2661 = vsel %vm2660, %v1116, 0.0
        %v2662 = vsel %vm2660, %v1117, 0.0
        %v2663 = vsel %vm2660, %v1118, 0.0
        %v2664 = vsel %vm2660, %v1119, 0.0
        %v2665 = vsel %vm2660, %v1120, 0.0
        %v2666 = vsel %vm2660, %v1121, 0.0
        %v2667 = vsel %vm2660, %v1122, 0.0
        %v2668 = vsel %vm2660, %v1123, 0.0
        %v2669 = vsel %vm2660, %v1124, 0.0
        %v2670 = vsel %vm2660, %v1125, 0.0
        %v2671 = vsel %vm2660, %v1126, 0.0
        %v2672 = vsel %vm2660, %v1127, 0.0
        %v2673 = vsel %vm2660, %v1128, 0.0
        %v2674 = vsel %vm2660, %v1129, 0.0
        %v2675 = vsel %vm2660, %v1130, 0.0
        %v2676 = vsel %vm2660, %v1131, 0.0
        %v2677 = vsel %vm2660, %v1132, 0.0
        %v2678 = vsel %vm2660, %v1133, 0.0
        %v2679 = vsel %vm2660, %v1134, 0.0
        %v2680 = vsel %vm2660, %v1135, 0.0
        %v2681 = vsel %vm2660, %v1136, 0.0
        %v2682 = vsel %vm2660, %v1137, 0.0
        %v2683 = vsel %vm2660, %v1138, 0.0
        %v2684 = vsel %vm2660, %v1139, 0.0
        %v2685 = vsel %vm2660, %v1140, 0.0
        %v2686 = vsel %vm2660, %v1141, 0.0
        %v2687 = vsel %vm2660, %v1142, 0.0
        %v2688 = vsel %vm2660, %v1143, 0.0
        %v2689 = vsel %vm2660, %v1144, 0.0
        %v2690 = vsel %vm2660, %v1145, 0.0
        %v2691 = vsel %vm2660, %v1146, 0.0
        %v2692 = vsel %vm2660, %v1147, 0.0
        %2693 = vadd.xlane.f32.xlu0 %v2661
        %v2694 = vpop.xlane.xlu0 %2693
        %2695 = vadd.xlane.f32.xlu0 %v2662
        %v2696 = vpop.xlane.xlu0 %2695
        %2697 = vadd.xlane.f32.xlu0 %v2663
        %v2698 = vpop.xlane.xlu0 %2697
        %2699 = vadd.xlane.f32.xlu0 %v2664
        %v2700 = vpop.xlane.xlu0 %2699
        %2701 = vadd.xlane.f32.xlu0 %v2665
        %v2702 = vpop.xlane.xlu0 %2701
        %2703 = vadd.xlane.f32.xlu0 %v2666
        %v2704 = vpop.xlane.xlu0 %2703
        %2705 = vadd.xlane.f32.xlu0 %v2667
        %v2706 = vpop.xlane.xlu0 %2705
        %2707 = vadd.xlane.f32.xlu0 %v2668
        %v2708 = vpop.xlane.xlu0 %2707
        %2709 = vadd.xlane.f32.xlu0 %v2669
        %v2710 = vpop.xlane.xlu0 %2709
        %2711 = vadd.xlane.f32.xlu0 %v2670
        %v2712 = vpop.xlane.xlu0 %2711
        %2713 = vadd.xlane.f32.xlu0 %v2671
        %v2714 = vpop.xlane.xlu0 %2713
        %2715 = vadd.xlane.f32.xlu0 %v2672
        %v2716 = vpop.xlane.xlu0 %2715
        %2717 = vadd.xlane.f32.xlu0 %v2673
        %v2718 = vpop.xlane.xlu0 %2717
        %2719 = vadd.xlane.f32.xlu0 %v2674
        %v2720 = vpop.xlane.xlu0 %2719
        %2721 = vadd.xlane.f32.xlu0 %v2675
        %v2722 = vpop.xlane.xlu0 %2721
        %2723 = vadd.xlane.f32.xlu0 %v2676
        %v2724 = vpop.xlane.xlu0 %2723
        %2725 = vadd.xlane.f32.xlu0 %v2677
        %v2726 = vpop.xlane.xlu0 %2725
        %2727 = vadd.xlane.f32.xlu0 %v2678
        %v2728 = vpop.xlane.xlu0 %2727
        %2729 = vadd.xlane.f32.xlu0 %v2679
        %v2730 = vpop.xlane.xlu0 %2729
        %2731 = vadd.xlane.f32.xlu0 %v2680
        %v2732 = vpop.xlane.xlu0 %2731
        %2733 = vadd.xlane.f32.xlu0 %v2681
        %v2734 = vpop.xlane.xlu0 %2733
        %2735 = vadd.xlane.f32.xlu0 %v2682
        %v2736 = vpop.xlane.xlu0 %2735
        %2737 = vadd.xlane.f32.xlu0 %v2683
        %v2738 = vpop.xlane.xlu0 %2737
        %2739 = vadd.xlane.f32.xlu0 %v2684
        %v2740 = vpop.xlane.xlu0 %2739
        %2741 = vadd.xlane.f32.xlu0 %v2685
        %v2742 = vpop.xlane.xlu0 %2741
        %2743 = vadd.xlane.f32.xlu0 %v2686
        %v2744 = vpop.xlane.xlu0 %2743
        %2745 = vadd.xlane.f32.xlu0 %v2687
        %v2746 = vpop.xlane.xlu0 %2745
        %2747 = vadd.xlane.f32.xlu0 %v2688
        %v2748 = vpop.xlane.xlu0 %2747
        %2749 = vadd.xlane.f32.xlu0 %v2689
        %v2750 = vpop.xlane.xlu0 %2749
        %2751 = vadd.xlane.f32.xlu0 %v2690
        %v2752 = vpop.xlane.xlu0 %2751
        %2753 = vadd.xlane.f32.xlu0 %v2691
        %v2754 = vpop.xlane.xlu0 %2753
        %2755 = vadd.xlane.f32.xlu0 %v2692
        %v2756 = vpop.xlane.xlu0 %2755
        %v2757 = vmax.f32 %v2566, 0.0
        %v2758 = vmax.f32 %v2569, 0.0
        %v2759 = vmax.f32 %v2572, 0.0
        %v2760 = vmax.f32 %v2575, 0.0
        %v2761 = vmax.f32 %v2578, 0.0
        %v2762 = vmax.f32 %v2581, 0.0
        %v2763 = vmax.f32 %v2584, 0.0
        %v2764 = vmax.f32 %v2587, 0.0
        %v2765 = vmax.f32 %v2590, 0.0
        %v2766 = vmax.f32 %v2593, 0.0
        %v2767 = vmax.f32 %v2596, 0.0
        %v2768 = vmax.f32 %v2599, 0.0
        %v2769 = vmax.f32 %v2602, 0.0
        %v2770 = vmax.f32 %v2605, 0.0
        %v2771 = vmax.f32 %v2608, 0.0
        %v2772 = vmax.f32 %v2611, 0.0
        %v2773 = vmax.f32 %v2614, 0.0
        %v2774 = vmax.f32 %v2617, 0.0
        %v2775 = vmax.f32 %v2620, 0.0
        %v2776 = vmax.f32 %v2623, 0.0
        %v2777 = vmax.f32 %v2626, 0.0
        %v2778 = vmax.f32 %v2629, 0.0
        %v2779 = vmax.f32 %v2632, 0.0
        %v2780 = vmax.f32 %v2635, 0.0
        %v2781 = vmax.f32 %v2638, 0.0
        %v2782 = vmax.f32 %v2641, 0.0
        %v2783 = vmax.f32 %v2644, 0.0
        %v2784 = vmax.f32 %v2647, 0.0
        %v2785 = vmax.f32 %v2650, 0.0
        %v2786 = vmax.f32 %v2653, 0.0
        %v2787 = vmax.f32 %v2656, 0.0
        %v2788 = vmax.f32 %v2659, 0.0
        %v2789 = vmul.f32 %v2566, %v2694
        %v2790 = vmul.f32 %v2569, %v2696
        %v2791 = vmul.f32 %v2572, %v2698
        %v2792 = vmul.f32 %v2575, %v2700
        %v2793 = vmul.f32 %v2578, %v2702
        %v2794 = vmul.f32 %v2581, %v2704
        %v2795 = vmul.f32 %v2584, %v2706
        %v2796 = vmul.f32 %v2587, %v2708
        %v2797 = vmul.f32 %v2590, %v2710
        %v2798 = vmul.f32 %v2593, %v2712
        %v2799 = vmul.f32 %v2596, %v2714
        %v2800 = vmul.f32 %v2599, %v2716
        %v2801 = vmul.f32 %v2602, %v2718
        %v2802 = vmul.f32 %v2605, %v2720
        %v2803 = vmul.f32 %v2608, %v2722
        %v2804 = vmul.f32 %v2611, %v2724
        %v2805 = vmul.f32 %v2614, %v2726
        %v2806 = vmul.f32 %v2617, %v2728
        %v2807 = vmul.f32 %v2620, %v2730
        %v2808 = vmul.f32 %v2623, %v2732
        %v2809 = vmul.f32 %v2626, %v2734
        %v2810 = vmul.f32 %v2629, %v2736
        %v2811 = vmul.f32 %v2632, %v2738
        %v2812 = vmul.f32 %v2635, %v2740
        %v2813 = vmul.f32 %v2638, %v2742
        %v2814 = vmul.f32 %v2641, %v2744
        %v2815 = vmul.f32 %v2644, %v2746
        %v2816 = vmul.f32 %v2647, %v2748
        %v2817 = vmul.f32 %v2650, %v2750
        %v2818 = vmul.f32 %v2653, %v2752
        %v2819 = vmul.f32 %v2656, %v2754
        %v2820 = vmul.f32 %v2659, %v2756
        %v2821 = vsub.f32 %v2757, %v2789
        %v2822 = vsub.f32 %v2758, %v2790
        %v2823 = vsub.f32 %v2759, %v2791
        %v2824 = vsub.f32 %v2760, %v2792
        %v2825 = vsub.f32 %v2761, %v2793
        %v2826 = vsub.f32 %v2762, %v2794
        %v2827 = vsub.f32 %v2763, %v2795
        %v2828 = vsub.f32 %v2764, %v2796
        %v2829 = vsub.f32 %v2765, %v2797
        %v2830 = vsub.f32 %v2766, %v2798
        %v2831 = vsub.f32 %v2767, %v2799
        %v2832 = vsub.f32 %v2768, %v2800
        %v2833 = vsub.f32 %v2769, %v2801
        %v2834 = vsub.f32 %v2770, %v2802
        %v2835 = vsub.f32 %v2771, %v2803
        %v2836 = vsub.f32 %v2772, %v2804
        %v2837 = vsub.f32 %v2773, %v2805
        %v2838 = vsub.f32 %v2774, %v2806
        %v2839 = vsub.f32 %v2775, %v2807
        %v2840 = vsub.f32 %v2776, %v2808
        %v2841 = vsub.f32 %v2777, %v2809
        %v2842 = vsub.f32 %v2778, %v2810
        %v2843 = vsub.f32 %v2779, %v2811
        %v2844 = vsub.f32 %v2780, %v2812
        %v2845 = vsub.f32 %v2781, %v2813
        %v2846 = vsub.f32 %v2782, %v2814
        %v2847 = vsub.f32 %v2783, %v2815
        %v2848 = vsub.f32 %v2784, %v2816
        %v2849 = vsub.f32 %v2785, %v2817
        %v2850 = vsub.f32 %v2786, %v2818
        %v2851 = vsub.f32 %v2787, %v2819
        %v2852 = vsub.f32 %v2788, %v2820
        %v2853 = vand.u32 2147483647, %v2566
        %v2854 = vand.u32 2147483647, %v2569
        %v2855 = vand.u32 2147483647, %v2572
        %v2856 = vand.u32 2147483647, %v2575
        %v2857 = vand.u32 2147483647, %v2578
        %v2858 = vand.u32 2147483647, %v2581
        %v2859 = vand.u32 2147483647, %v2584
        %v2860 = vand.u32 2147483647, %v2587
        %v2861 = vand.u32 2147483647, %v2590
        %v2862 = vand.u32 2147483647, %v2593
        %v2863 = vand.u32 2147483647, %v2596
        %v2864 = vand.u32 2147483647, %v2599
        %v2865 = vand.u32 2147483647, %v2602
        %v2866 = vand.u32 2147483647, %v2605
        %v2867 = vand.u32 2147483647, %v2608
        %v2868 = vand.u32 2147483647, %v2611
        %v2869 = vand.u32 2147483647, %v2614
        %v2870 = vand.u32 2147483647, %v2617
        %v2871 = vand.u32 2147483647, %v2620
        %v2872 = vand.u32 2147483647, %v2623
        %v2873 = vand.u32 2147483647, %v2626
        %v2874 = vand.u32 2147483647, %v2629
        %v2875 = vand.u32 2147483647, %v2632
        %v2876 = vand.u32 2147483647, %v2635
        %v2877 = vand.u32 2147483647, %v2638
        %v2878 = vand.u32 2147483647, %v2641
        %v2879 = vand.u32 2147483647, %v2644
        %v2880 = vand.u32 2147483647, %v2647
        %v2881 = vand.u32 2147483647, %v2650
        %v2882 = vand.u32 2147483647, %v2653
        %v2883 = vand.u32 2147483647, %v2656
        %v2884 = vand.u32 2147483647, %v2659
        %v2885 = vsub.f32 0.0, %v2853
        %v2886 = vsub.f32 0.0, %v2854
        %v2887 = vsub.f32 0.0, %v2855
        %v2888 = vsub.f32 0.0, %v2856
        %v2889 = vsub.f32 0.0, %v2857
        %v2890 = vsub.f32 0.0, %v2858
        %v2891 = vsub.f32 0.0, %v2859
        %v2892 = vsub.f32 0.0, %v2860
        %v2893 = vsub.f32 0.0, %v2861
        %v2894 = vsub.f32 0.0, %v2862
        %v2895 = vsub.f32 0.0, %v2863
        %v2896 = vsub.f32 0.0, %v2864
        %v2897 = vsub.f32 0.0, %v2865
        %v2898 = vsub.f32 0.0, %v2866
        %v2899 = vsub.f32 0.0, %v2867
        %v2900 = vsub.f32 0.0, %v2868
        %v2901 = vsub.f32 0.0, %v2869
        %v2902 = vsub.f32 0.0, %v2870
        %v2903 = vsub.f32 0.0, %v2871
        %v2904 = vsub.f32 0.0, %v2872
        %v2905 = vsub.f32 0.0, %v2873
        %v2906 = vsub.f32 0.0, %v2874
        %v2907 = vsub.f32 0.0, %v2875
        %v2908 = vsub.f32 0.0, %v2876
        %v2909 = vsub.f32 0.0, %v2877
        %v2910 = vsub.f32 0.0, %v2878
        %v2911 = vsub.f32 0.0, %v2879
        %v2912 = vsub.f32 0.0, %v2880
        %v2913 = vsub.f32 0.0, %v2881
        %v2914 = vsub.f32 0.0, %v2882
        %v2915 = vsub.f32 0.0, %v2883
        %v2916 = vsub.f32 0.0, %v2884
        %v2917 = vmul.f32 %v2885, 1.442695
        %v2918 = vpow.pop %v2917
        %v2919 = vmul.f32 %v2886, 1.442695
        %v2920 = vpow.pop %v2919
        %v2921 = vmul.f32 %v2887, 1.442695
        %v2922 = vpow.pop %v2921
        %v2923 = vmul.f32 %v2888, 1.442695
        %v2924 = vpow.pop %v2923
        %v2925 = vmul.f32 %v2889, 1.442695
        %v2926 = vpow.pop %v2925
        %v2927 = vmul.f32 %v2890, 1.442695
        %v2928 = vpow.pop %v2927
        %v2929 = vmul.f32 %v2891, 1.442695
        %v2930 = vpow.pop %v2929
        %v2931 = vmul.f32 %v2892, 1.442695
        %v2932 = vpow.pop %v2931
        %v2933 = vmul.f32 %v2893, 1.442695
        %v2934 = vpow.pop %v2933
        %v2935 = vmul.f32 %v2894, 1.442695
        %v2936 = vpow.pop %v2935
        %v2937 = vmul.f32 %v2895, 1.442695
        %v2938 = vpow.pop %v2937
        %v2939 = vmul.f32 %v2896, 1.442695
        %v2940 = vpow.pop %v2939
        %v2941 = vmul.f32 %v2897, 1.442695
        %v2942 = vpow.pop %v2941
        %v2943 = vmul.f32 %v2898, 1.442695
        %v2944 = vpow.pop %v2943
        %v2945 = vmul.f32 %v2899, 1.442695
        %v2946 = vpow.pop %v2945
        %v2947 = vmul.f32 %v2900, 1.442695
        %v2948 = vpow.pop %v2947
        %v2949 = vmul.f32 %v2901, 1.442695
        %v2950 = vpow.pop %v2949
        %v2951 = vmul.f32 %v2902, 1.442695
        %v2952 = vpow.pop %v2951
        %v2953 = vmul.f32 %v2903, 1.442695
        %v2954 = vpow.pop %v2953
        %v2955 = vmul.f32 %v2904, 1.442695
        %v2956 = vpow.pop %v2955
        %v2957 = vmul.f32 %v2905, 1.442695
        %v2958 = vpow.pop %v2957
        %v2959 = vmul.f32 %v2906, 1.442695
        %v2960 = vpow.pop %v2959
        %v2961 = vmul.f32 %v2907, 1.442695
        %v2962 = vpow.pop %v2961
        %v2963 = vmul.f32 %v2908, 1.442695
        %v2964 = vpow.pop %v2963
        %v2965 = vmul.f32 %v2909, 1.442695
        %v2966 = vpow.pop %v2965
        %v2967 = vmul.f32 %v2910, 1.442695
        %v2968 = vpow.pop %v2967
        %v2969 = vmul.f32 %v2911, 1.442695
        %v2970 = vpow.pop %v2969
        %v2971 = vmul.f32 %v2912, 1.442695
        %v2972 = vpow.pop %v2971
        %v2973 = vmul.f32 %v2913, 1.442695
        %v2974 = vpow.pop %v2973
        %v2975 = vmul.f32 %v2914, 1.442695
        %v2976 = vpow.pop %v2975
        %v2977 = vmul.f32 %v2915, 1.442695
        %v2978 = vpow.pop %v2977
        %v2979 = vmul.f32 %v2916, 1.442695
        %v2980 = vpow.pop %v2979
        %v2981 = vadd.f32 %v2918, 1.0
        %v2982 = vlog2.pop %v2981
        %v2983 = vmul.f32 %v2982, 0.6931472
        %v2984 = vmul.f32 -0.5, %v2918
        %v2985 = vadd.f32 %v2984, 1.0
        %v2986 = vmul.f32 %v2985, %v2918
        %v2987 = vand.u32 2147483647, %v2918
        %vm2988 = vcmp.lt.f32.partialorder %v2987, 0.0004427343
        %v2989 = vsel %vm2988, %v2986, %v2983
        %v2990 = vadd.f32 %v2920, 1.0
        %v2991 = vlog2.pop %v2990
        %v2992 = vmul.f32 %v2991, 0.6931472
        %v2993 = vmul.f32 -0.5, %v2920
        %v2994 = vadd.f32 %v2993, 1.0
        %v2995 = vmul.f32 %v2994, %v2920
        %v2996 = vand.u32 2147483647, %v2920
        %vm2997 = vcmp.lt.f32.partialorder %v2996, 0.0004427343
        %v2998 = vsel %vm2997, %v2995, %v2992
        %v2999 = vadd.f32 %v2922, 1.0
        %v3000 = vlog2.pop %v2999
        %v3001 = vmul.f32 %v3000, 0.6931472
        %v3002 = vmul.f32 -0.5, %v2922
        %v3003 = vadd.f32 %v3002, 1.0
        %v3004 = vmul.f32 %v3003, %v2922
        %v3005 = vand.u32 2147483647, %v2922
        %vm3006 = vcmp.lt.f32.partialorder %v3005, 0.0004427343
        %v3007 = vsel %vm3006, %v3004, %v3001
        %v3008 = vadd.f32 %v2924, 1.0
        %v3009 = vlog2.pop %v3008
        %v3010 = vmul.f32 %v3009, 0.6931472
        %v3011 = vmul.f32 -0.5, %v2924
        %v3012 = vadd.f32 %v3011, 1.0
        %v3013 = vmul.f32 %v3012, %v2924
        %v3014 = vand.u32 2147483647, %v2924
        %vm3015 = vcmp.lt.f32.partialorder %v3014, 0.0004427343
        %v3016 = vsel %vm3015, %v3013, %v3010
        %v3017 = vadd.f32 %v2926, 1.0
        %v3018 = vlog2.pop %v3017
        %v3019 = vmul.f32 %v3018, 0.6931472
        %v3020 = vmul.f32 -0.5, %v2926
        %v3021 = vadd.f32 %v3020, 1.0
        %v3022 = vmul.f32 %v3021, %v2926
        %v3023 = vand.u32 2147483647, %v2926
        %vm3024 = vcmp.lt.f32.partialorder %v3023, 0.0004427343
        %v3025 = vsel %vm3024, %v3022, %v3019
        %v3026 = vadd.f32 %v2928, 1.0
        %v3027 = vlog2.pop %v3026
        %v3028 = vmul.f32 %v3027, 0.6931472
        %v3029 = vmul.f32 -0.5, %v2928
        %v3030 = vadd.f32 %v3029, 1.0
        %v3031 = vmul.f32 %v3030, %v2928
        %v3032 = vand.u32 2147483647, %v2928
        %vm3033 = vcmp.lt.f32.partialorder %v3032, 0.0004427343
        %v3034 = vsel %vm3033, %v3031, %v3028
        %v3035 = vadd.f32 %v2930, 1.0
        %v3036 = vlog2.pop %v3035
        %v3037 = vmul.f32 %v3036, 0.6931472
        %v3038 = vmul.f32 -0.5, %v2930
        %v3039 = vadd.f32 %v3038, 1.0
        %v3040 = vmul.f32 %v3039, %v2930
        %v3041 = vand.u32 2147483647, %v2930
        %vm3042 = vcmp.lt.f32.partialorder %v3041, 0.0004427343
        %v3043 = vsel %vm3042, %v3040, %v3037
        %v3044 = vadd.f32 %v2932, 1.0
        %v3045 = vlog2.pop %v3044
        %v3046 = vmul.f32 %v3045, 0.6931472
        %v3047 = vmul.f32 -0.5, %v2932
        %v3048 = vadd.f32 %v3047, 1.0
        %v3049 = vmul.f32 %v3048, %v2932
        %v3050 = vand.u32 2147483647, %v2932
        %vm3051 = vcmp.lt.f32.partialorder %v3050, 0.0004427343
        %v3052 = vsel %vm3051, %v3049, %v3046
        %v3053 = vadd.f32 %v2934, 1.0
        %v3054 = vlog2.pop %v3053
        %v3055 = vmul.f32 %v3054, 0.6931472
        %v3056 = vmul.f32 -0.5, %v2934
        %v3057 = vadd.f32 %v3056, 1.0
        %v3058 = vmul.f32 %v3057, %v2934
        %v3059 = vand.u32 2147483647, %v2934
        %vm3060 = vcmp.lt.f32.partialorder %v3059, 0.0004427343
        %v3061 = vsel %vm3060, %v3058, %v3055
        %v3062 = vadd.f32 %v2936, 1.0
        %v3063 = vlog2.pop %v3062
        %v3064 = vmul.f32 %v3063, 0.6931472
        %v3065 = vmul.f32 -0.5, %v2936
        %v3066 = vadd.f32 %v3065, 1.0
        %v3067 = vmul.f32 %v3066, %v2936
        %v3068 = vand.u32 2147483647, %v2936
        %vm3069 = vcmp.lt.f32.partialorder %v3068, 0.0004427343
        %v3070 = vsel %vm3069, %v3067, %v3064
        %v3071 = vadd.f32 %v2938, 1.0
        %v3072 = vlog2.pop %v3071
        %v3073 = vmul.f32 %v3072, 0.6931472
        %v3074 = vmul.f32 -0.5, %v2938
        %v3075 = vadd.f32 %v3074, 1.0
        %v3076 = vmul.f32 %v3075, %v2938
        %v3077 = vand.u32 2147483647, %v2938
        %vm3078 = vcmp.lt.f32.partialorder %v3077, 0.0004427343
        %v3079 = vsel %vm3078, %v3076, %v3073
        %v3080 = vadd.f32 %v2940, 1.0
        %v3081 = vlog2.pop %v3080
        %v3082 = vmul.f32 %v3081, 0.6931472
        %v3083 = vmul.f32 -0.5, %v2940
        %v3084 = vadd.f32 %v3083, 1.0
        %v3085 = vmul.f32 %v3084, %v2940
        %v3086 = vand.u32 2147483647, %v2940
        %vm3087 = vcmp.lt.f32.partialorder %v3086, 0.0004427343
        %v3088 = vsel %vm3087, %v3085, %v3082
        %v3089 = vadd.f32 %v2942, 1.0
        %v3090 = vlog2.pop %v3089
        %v3091 = vmul.f32 %v3090, 0.6931472
        %v3092 = vmul.f32 -0.5, %v2942
        %v3093 = vadd.f32 %v3092, 1.0
        %v3094 = vmul.f32 %v3093, %v2942
        %v3095 = vand.u32 2147483647, %v2942
        %vm3096 = vcmp.lt.f32.partialorder %v3095, 0.0004427343
        %v3097 = vsel %vm3096, %v3094, %v3091
        %v3098 = vadd.f32 %v2944, 1.0
        %v3099 = vlog2.pop %v3098
        %v3100 = vmul.f32 %v3099, 0.6931472
        %v3101 = vmul.f32 -0.5, %v2944
        %v3102 = vadd.f32 %v3101, 1.0
        %v3103 = vmul.f32 %v3102, %v2944
        %v3104 = vand.u32 2147483647, %v2944
        %vm3105 = vcmp.lt.f32.partialorder %v3104, 0.0004427343
        %v3106 = vsel %vm3105, %v3103, %v3100
        %v3107 = vadd.f32 %v2946, 1.0
        %v3108 = vlog2.pop %v3107
        %v3109 = vmul.f32 %v3108, 0.6931472
        %v3110 = vmul.f32 -0.5, %v2946
        %v3111 = vadd.f32 %v3110, 1.0
        %v3112 = vmul.f32 %v3111, %v2946
        %v3113 = vand.u32 2147483647, %v2946
        %vm3114 = vcmp.lt.f32.partialorder %v3113, 0.0004427343
        %v3115 = vsel %vm3114, %v3112, %v3109
        %v3116 = vadd.f32 %v2948, 1.0
        %v3117 = vlog2.pop %v3116
        %v3118 = vmul.f32 %v3117, 0.6931472
        %v3119 = vmul.f32 -0.5, %v2948
        %v3120 = vadd.f32 %v3119, 1.0
        %v3121 = vmul.f32 %v3120, %v2948
        %v3122 = vand.u32 2147483647, %v2948
        %vm3123 = vcmp.lt.f32.partialorder %v3122, 0.0004427343
        %v3124 = vsel %vm3123, %v3121, %v3118
        %v3125 = vadd.f32 %v2950, 1.0
        %v3126 = vlog2.pop %v3125
        %v3127 = vmul.f32 %v3126, 0.6931472
        %v3128 = vmul.f32 -0.5, %v2950
        %v3129 = vadd.f32 %v3128, 1.0
        %v3130 = vmul.f32 %v3129, %v2950
        %v3131 = vand.u32 2147483647, %v2950
        %vm3132 = vcmp.lt.f32.partialorder %v3131, 0.0004427343
        %v3133 = vsel %vm3132, %v3130, %v3127
        %v3134 = vadd.f32 %v2952, 1.0
        %v3135 = vlog2.pop %v3134
        %v3136 = vmul.f32 %v3135, 0.6931472
        %v3137 = vmul.f32 -0.5, %v2952
        %v3138 = vadd.f32 %v3137, 1.0
        %v3139 = vmul.f32 %v3138, %v2952
        %v3140 = vand.u32 2147483647, %v2952
        %vm3141 = vcmp.lt.f32.partialorder %v3140, 0.0004427343
        %v3142 = vsel %vm3141, %v3139, %v3136
        %v3143 = vadd.f32 %v2954, 1.0
        %v3144 = vlog2.pop %v3143
        %v3145 = vmul.f32 %v3144, 0.6931472
        %v3146 = vmul.f32 -0.5, %v2954
        %v3147 = vadd.f32 %v3146, 1.0
        %v3148 = vmul.f32 %v3147, %v2954
        %v3149 = vand.u32 2147483647, %v2954
        %vm3150 = vcmp.lt.f32.partialorder %v3149, 0.0004427343
        %v3151 = vsel %vm3150, %v3148, %v3145
        %v3152 = vadd.f32 %v2956, 1.0
        %v3153 = vlog2.pop %v3152
        %v3154 = vmul.f32 %v3153, 0.6931472
        %v3155 = vmul.f32 -0.5, %v2956
        %v3156 = vadd.f32 %v3155, 1.0
        %v3157 = vmul.f32 %v3156, %v2956
        %v3158 = vand.u32 2147483647, %v2956
        %vm3159 = vcmp.lt.f32.partialorder %v3158, 0.0004427343
        %v3160 = vsel %vm3159, %v3157, %v3154
        %v3161 = vadd.f32 %v2958, 1.0
        %v3162 = vlog2.pop %v3161
        %v3163 = vmul.f32 %v3162, 0.6931472
        %v3164 = vmul.f32 -0.5, %v2958
        %v3165 = vadd.f32 %v3164, 1.0
        %v3166 = vmul.f32 %v3165, %v2958
        %v3167 = vand.u32 2147483647, %v2958
        %vm3168 = vcmp.lt.f32.partialorder %v3167, 0.0004427343
        %v3169 = vsel %vm3168, %v3166, %v3163
        %v3170 = vadd.f32 %v2960, 1.0
        %v3171 = vlog2.pop %v3170
        %v3172 = vmul.f32 %v3171, 0.6931472
        %v3173 = vmul.f32 -0.5, %v2960
        %v3174 = vadd.f32 %v3173, 1.0
        %v3175 = vmul.f32 %v3174, %v2960
        %v3176 = vand.u32 2147483647, %v2960
        %vm3177 = vcmp.lt.f32.partialorder %v3176, 0.0004427343
        %v3178 = vsel %vm3177, %v3175, %v3172
        %v3179 = vadd.f32 %v2962, 1.0
        %v3180 = vlog2.pop %v3179
        %v3181 = vmul.f32 %v3180, 0.6931472
        %v3182 = vmul.f32 -0.5, %v2962
        %v3183 = vadd.f32 %v3182, 1.0
        %v3184 = vmul.f32 %v3183, %v2962
        %v3185 = vand.u32 2147483647, %v2962
        %vm3186 = vcmp.lt.f32.partialorder %v3185, 0.0004427343
        %v3187 = vsel %vm3186, %v3184, %v3181
        %v3188 = vadd.f32 %v2964, 1.0
        %v3189 = vlog2.pop %v3188
        %v3190 = vmul.f32 %v3189, 0.6931472
        %v3191 = vmul.f32 -0.5, %v2964
        %v3192 = vadd.f32 %v3191, 1.0
        %v3193 = vmul.f32 %v3192, %v2964
        %v3194 = vand.u32 2147483647, %v2964
        %vm3195 = vcmp.lt.f32.partialorder %v3194, 0.0004427343
        %v3196 = vsel %vm3195, %v3193, %v3190
        %v3197 = vadd.f32 %v2966, 1.0
        %v3198 = vlog2.pop %v3197
        %v3199 = vmul.f32 %v3198, 0.6931472
        %v3200 = vmul.f32 -0.5, %v2966
        %v3201 = vadd.f32 %v3200, 1.0
        %v3202 = vmul.f32 %v3201, %v2966
        %v3203 = vand.u32 2147483647, %v2966
        %vm3204 = vcmp.lt.f32.partialorder %v3203, 0.0004427343
        %v3205 = vsel %vm3204, %v3202, %v3199
        %v3206 = vadd.f32 %v2968, 1.0
        %v3207 = vlog2.pop %v3206
        %v3208 = vmul.f32 %v3207, 0.6931472
        %v3209 = vmul.f32 -0.5, %v2968
        %v3210 = vadd.f32 %v3209, 1.0
        %v3211 = vmul.f32 %v3210, %v2968
        %v3212 = vand.u32 2147483647, %v2968
        %vm3213 = vcmp.lt.f32.partialorder %v3212, 0.0004427343
        %v3214 = vsel %vm3213, %v3211, %v3208
        %v3215 = vadd.f32 %v2970, 1.0
        %v3216 = vlog2.pop %v3215
        %v3217 = vmul.f32 %v3216, 0.6931472
        %v3218 = vmul.f32 -0.5, %v2970
        %v3219 = vadd.f32 %v3218, 1.0
        %v3220 = vmul.f32 %v3219, %v2970
        %v3221 = vand.u32 2147483647, %v2970
        %vm3222 = vcmp.lt.f32.partialorder %v3221, 0.0004427343
        %v3223 = vsel %vm3222, %v3220, %v3217
        %v3224 = vadd.f32 %v2972, 1.0
        %v3225 = vlog2.pop %v3224
        %v3226 = vmul.f32 %v3225, 0.6931472
        %v3227 = vmul.f32 -0.5, %v2972
        %v3228 = vadd.f32 %v3227, 1.0
        %v3229 = vmul.f32 %v3228, %v2972
        %v3230 = vand.u32 2147483647, %v2972
        %vm3231 = vcmp.lt.f32.partialorder %v3230, 0.0004427343
        %v3232 = vsel %vm3231, %v3229, %v3226
        %v3233 = vadd.f32 %v2974, 1.0
        %v3234 = vlog2.pop %v3233
        %v3235 = vmul.f32 %v3234, 0.6931472
        %v3236 = vmul.f32 -0.5, %v2974
        %v3237 = vadd.f32 %v3236, 1.0
        %v3238 = vmul.f32 %v3237, %v2974
        %v3239 = vand.u32 2147483647, %v2974
        %vm3240 = vcmp.lt.f32.partialorder %v3239, 0.0004427343
        %v3241 = vsel %vm3240, %v3238, %v3235
        %v3242 = vadd.f32 %v2976, 1.0
        %v3243 = vlog2.pop %v3242
        %v3244 = vmul.f32 %v3243, 0.6931472
        %v3245 = vmul.f32 -0.5, %v2976
        %v3246 = vadd.f32 %v3245, 1.0
        %v3247 = vmul.f32 %v3246, %v2976
        %v3248 = vand.u32 2147483647, %v2976
        %vm3249 = vcmp.lt.f32.partialorder %v3248, 0.0004427343
        %v3250 = vsel %vm3249, %v3247, %v3244
        %v3251 = vadd.f32 %v2978, 1.0
        %v3252 = vlog2.pop %v3251
        %v3253 = vmul.f32 %v3252, 0.6931472
        %v3254 = vmul.f32 -0.5, %v2978
        %v3255 = vadd.f32 %v3254, 1.0
        %v3256 = vmul.f32 %v3255, %v2978
        %v3257 = vand.u32 2147483647, %v2978
        %vm3258 = vcmp.lt.f32.partialorder %v3257, 0.0004427343
        %v3259 = vsel %vm3258, %v3256, %v3253
        %v3260 = vadd.f32 %v2980, 1.0
        %v3261 = vlog2.pop %v3260
        %v3262 = vmul.f32 %v3261, 0.6931472
        %v3263 = vmul.f32 -0.5, %v2980
        %v3264 = vadd.f32 %v3263, 1.0
        %v3265 = vmul.f32 %v3264, %v2980
        %v3266 = vand.u32 2147483647, %v2980
        %vm3267 = vcmp.lt.f32.partialorder %v3266, 0.0004427343
        %v3268 = vsel %vm3267, %v3265, %v3262
        %v3269 = vadd.f32 %v2821, %v2989
        %v3270 = vadd.f32 %v2822, %v2998
        %v3271 = vadd.f32 %v2823, %v3007
        %v3272 = vadd.f32 %v2824, %v3016
        %v3273 = vadd.f32 %v2825, %v3025
        %v3274 = vadd.f32 %v2826, %v3034
        %v3275 = vadd.f32 %v2827, %v3043
        %v3276 = vadd.f32 %v2828, %v3052
        %v3277 = vadd.f32 %v2829, %v3061
        %v3278 = vadd.f32 %v2830, %v3070
        %v3279 = vadd.f32 %v2831, %v3079
        %v3280 = vadd.f32 %v2832, %v3088
        %v3281 = vadd.f32 %v2833, %v3097
        %v3282 = vadd.f32 %v2834, %v3106
        %v3283 = vadd.f32 %v2835, %v3115
        %v3284 = vadd.f32 %v2836, %v3124
        %v3285 = vadd.f32 %v2837, %v3133
        %v3286 = vadd.f32 %v2838, %v3142
        %v3287 = vadd.f32 %v2839, %v3151
        %v3288 = vadd.f32 %v2840, %v3160
        %v3289 = vadd.f32 %v2841, %v3169
        %v3290 = vadd.f32 %v2842, %v3178
        %v3291 = vadd.f32 %v2843, %v3187
        %v3292 = vadd.f32 %v2844, %v3196
        %v3293 = vadd.f32 %v2845, %v3205
        %v3294 = vadd.f32 %v2846, %v3214
        %v3295 = vadd.f32 %v2847, %v3223
        %v3296 = vadd.f32 %v2848, %v3232
        %v3297 = vadd.f32 %v2849, %v3241
        %v3298 = vadd.f32 %v2850, %v3250
        %v3299 = vadd.f32 %v2851, %v3259
        %v3300 = vadd.f32 %v2852, %v3268
        %v3301 = vsel %vm1341, %v3269, 0.0
        %v3302 = vsel %vm1341, %v3270, 0.0
        %v3303 = vadd.f32 %v3301, %v3302
        %v3304 = vsel %vm1341, %v3271, 0.0
        %v3305 = vadd.f32 %v3303, %v3304
        %v3306 = vsel %vm1341, %v3272, 0.0
        %v3307 = vadd.f32 %v3305, %v3306
        %v3308 = vsel %vm1341, %v3273, 0.0
        %v3309 = vadd.f32 %v3307, %v3308
        %v3310 = vsel %vm1341, %v3274, 0.0
        %v3311 = vadd.f32 %v3309, %v3310
        %v3312 = vsel %vm1341, %v3275, 0.0
        %v3313 = vadd.f32 %v3311, %v3312
        %v3314 = vsel %vm1341, %v3276, 0.0
        %v3315 = vadd.f32 %v3313, %v3314
        %v3316 = vsel %vm1341, %v3277, 0.0
        %v3317 = vadd.f32 %v3315, %v3316
        %v3318 = vsel %vm1341, %v3278, 0.0
        %v3319 = vadd.f32 %v3317, %v3318
        %v3320 = vsel %vm1341, %v3279, 0.0
        %v3321 = vadd.f32 %v3319, %v3320
        %v3322 = vsel %vm1341, %v3280, 0.0
        %v3323 = vadd.f32 %v3321, %v3322
        %v3324 = vsel %vm1341, %v3281, 0.0
        %v3325 = vadd.f32 %v3323, %v3324
        %v3326 = vsel %vm1341, %v3282, 0.0
        %v3327 = vadd.f32 %v3325, %v3326
        %v3328 = vsel %vm1341, %v3283, 0.0
        %v3329 = vadd.f32 %v3327, %v3328
        %v3330 = vsel %vm1341, %v3284, 0.0
        %v3331 = vadd.f32 %v3329, %v3330
        %v3332 = vsel %vm1341, %v3285, 0.0
        %v3333 = vadd.f32 %v3331, %v3332
        %v3334 = vsel %vm1341, %v3286, 0.0
        %v3335 = vadd.f32 %v3333, %v3334
        %v3336 = vsel %vm1341, %v3287, 0.0
        %v3337 = vadd.f32 %v3335, %v3336
        %v3338 = vsel %vm1341, %v3288, 0.0
        %v3339 = vadd.f32 %v3337, %v3338
        %v3340 = vsel %vm1341, %v3289, 0.0
        %v3341 = vadd.f32 %v3339, %v3340
        %v3342 = vsel %vm1341, %v3290, 0.0
        %v3343 = vadd.f32 %v3341, %v3342
        %v3344 = vsel %vm1341, %v3291, 0.0
        %v3345 = vadd.f32 %v3343, %v3344
        %v3346 = vsel %vm1341, %v3292, 0.0
        %v3347 = vadd.f32 %v3345, %v3346
        %v3348 = vsel %vm1341, %v3293, 0.0
        %v3349 = vadd.f32 %v3347, %v3348
        %v3350 = vsel %vm1341, %v3294, 0.0
        %v3351 = vadd.f32 %v3349, %v3350
        %v3352 = vsel %vm1341, %v3295, 0.0
        %v3353 = vadd.f32 %v3351, %v3352
        %v3354 = vsel %vm1341, %v3296, 0.0
        %v3355 = vadd.f32 %v3353, %v3354
        %v3356 = vsel %vm1341, %v3297, 0.0
        %v3357 = vadd.f32 %v3355, %v3356
        %v3358 = vsel %vm1341, %v3298, 0.0
        %v3359 = vadd.f32 %v3357, %v3358
        %v3360 = vsel %vm1341, %v3299, 0.0
        %v3361 = vadd.f32 %v3359, %v3360
        %v3362 = vsel %vm1341, %v3300, 0.0
        %v3363 = vadd.f32 %v3361, %v3362
        %3364 = vadd.xlane.f32.xlu0 %v3363
        %v3365 = vpop.xlane.xlu0 %3364
        %v3366 = vrot.slane %v3365, 4
        %v3367 = vadd.f32 %v3365, %v3366
        %v3368 = vrot.slane %v3367, 2
        %v3369 = vadd.f32 %v3367, %v3368
        %v3370 = vrot.slane %v3369, 1
        %v3371 = vadd.f32 %v3369, %v3370
        %s3372 = vtos %v3371
        %s3373 = sadd.f32 %s3372, 0.0
        %v3374 = vlaneseq
        %v3375 = vshrl.u32 %v3374, 7
        %v3376 = vsub.s32 1, %v3375
        %v3377 = vrot.slane %v1052, %v3376
        %3379 = vrot.lane.b32.xlu0 %v3377, 8
        %v3380 = vpop.permute.xlu0 %3379
        %v3382 = vmul.f32 %v1052, %v3380
        %v3383 = vmul.f32 %v1053, %v3380
        %v3384 = vmul.f32 %v1054, %v3380
        %v3385 = vmul.f32 %v1055, %v3380
        %v3386 = vmul.f32 %v1056, %v3380
        %v3387 = vmul.f32 %v1057, %v3380
        %v3388 = vmul.f32 %v1058, %v3380
        %v3389 = vmul.f32 %v1059, %v3380
        %v3390 = vmul.f32 %v1060, %v3380
        %v3391 = vmul.f32 %v1061, %v3380
        %v3392 = vmul.f32 %v1062, %v3380
        %v3393 = vmul.f32 %v1063, %v3380
        %v3394 = vmul.f32 %v1064, %v3380
        %v3395 = vmul.f32 %v1065, %v3380
        %v3396 = vmul.f32 %v1066, %v3380
        %v3397 = vmul.f32 %v1067, %v3380
        %v3398 = vmul.f32 %v1068, %v3380
        %v3399 = vmul.f32 %v1069, %v3380
        %v3400 = vmul.f32 %v1070, %v3380
        %v3401 = vmul.f32 %v1071, %v3380
        %v3402 = vmul.f32 %v1072, %v3380
        %v3403 = vmul.f32 %v1073, %v3380
        %v3404 = vmul.f32 %v1074, %v3380
        %v3405 = vmul.f32 %v1075, %v3380
        %v3406 = vmul.f32 %v1076, %v3380
        %v3407 = vmul.f32 %v1077, %v3380
        %v3408 = vmul.f32 %v1078, %v3380
        %v3409 = vmul.f32 %v1079, %v3380
        %v3410 = vmul.f32 %v1080, %v3380
        %v3411 = vmul.f32 %v1081, %v3380
        %v3412 = vmul.f32 %v1082, %v3380
        %v3413 = vmul.f32 %v1083, %v3380
        %3446 = vrot.lane.b32.xlu0 %v3382, 111
        %v3447 = vpop.permute.xlu0 %3446
        %3448 = vrot.lane.b32.xlu0 %v3383, 111
        %v3449 = vpop.permute.xlu0 %3448
        %3450 = vrot.lane.b32.xlu0 %v3384, 111
        %v3451 = vpop.permute.xlu0 %3450
        %3452 = vrot.lane.b32.xlu0 %v3385, 111
        %v3453 = vpop.permute.xlu0 %3452
        %3454 = vrot.lane.b32.xlu0 %v3386, 111
        %v3455 = vpop.permute.xlu0 %3454
        %3456 = vrot.lane.b32.xlu0 %v3387, 111
        %v3457 = vpop.permute.xlu0 %3456
        %3458 = vrot.lane.b32.xlu0 %v3388, 111
        %v3459 = vpop.permute.xlu0 %3458
        %3460 = vrot.lane.b32.xlu0 %v3389, 111
        %v3461 = vpop.permute.xlu0 %3460
        %3462 = vrot.lane.b32.xlu0 %v3390, 111
        %v3463 = vpop.permute.xlu0 %3462
        %3464 = vrot.lane.b32.xlu0 %v3391, 111
        %v3465 = vpop.permute.xlu0 %3464
        %3466 = vrot.lane.b32.xlu0 %v3392, 111
        %v3467 = vpop.permute.xlu0 %3466
        %3468 = vrot.lane.b32.xlu0 %v3393, 111
        %v3469 = vpop.permute.xlu0 %3468
        %3470 = vrot.lane.b32.xlu0 %v3394, 111
        %v3471 = vpop.permute.xlu0 %3470
        %3472 = vrot.lane.b32.xlu0 %v3395, 111
        %v3473 = vpop.permute.xlu0 %3472
        %3474 = vrot.lane.b32.xlu0 %v3396, 111
        %v3475 = vpop.permute.xlu0 %3474
        %3476 = vrot.lane.b32.xlu0 %v3397, 111
        %v3477 = vpop.permute.xlu0 %3476
        %3478 = vrot.lane.b32.xlu0 %v3398, 111
        %v3479 = vpop.permute.xlu0 %3478
        %3480 = vrot.lane.b32.xlu0 %v3399, 111
        %v3481 = vpop.permute.xlu0 %3480
        %3482 = vrot.lane.b32.xlu0 %v3400, 111
        %v3483 = vpop.permute.xlu0 %3482
        %3484 = vrot.lane.b32.xlu0 %v3401, 111
        %v3485 = vpop.permute.xlu0 %3484
        %3486 = vrot.lane.b32.xlu0 %v3402, 111
        %v3487 = vpop.permute.xlu0 %3486
        %3488 = vrot.lane.b32.xlu0 %v3403, 111
        %v3489 = vpop.permute.xlu0 %3488
        %3490 = vrot.lane.b32.xlu0 %v3404, 111
        %v3491 = vpop.permute.xlu0 %3490
        %3492 = vrot.lane.b32.xlu0 %v3405, 111
        %v3493 = vpop.permute.xlu0 %3492
        %3494 = vrot.lane.b32.xlu0 %v3406, 111
        %v3495 = vpop.permute.xlu0 %3494
        %3496 = vrot.lane.b32.xlu0 %v3407, 111
        %v3497 = vpop.permute.xlu0 %3496
        %3498 = vrot.lane.b32.xlu0 %v3408, 111
        %v3499 = vpop.permute.xlu0 %3498
        %3500 = vrot.lane.b32.xlu0 %v3409, 111
        %v3501 = vpop.permute.xlu0 %3500
        %3502 = vrot.lane.b32.xlu0 %v3410, 111
        %v3503 = vpop.permute.xlu0 %3502
        %3504 = vrot.lane.b32.xlu0 %v3411, 111
        %v3505 = vpop.permute.xlu0 %3504
        %3506 = vrot.lane.b32.xlu0 %v3412, 111
        %v3507 = vpop.permute.xlu0 %3506
        %3508 = vrot.lane.b32.xlu0 %v3413, 111
        %v3509 = vpop.permute.xlu0 %3508
        %v3542 = vsel %vm455, %v3447, 0.0
        %3543 = vadd.xlane.f32.xlu0 %v3542
        %v3544 = vpop.xlane.xlu0 %3543
        %v3545 = vsel %vm455, %v3449, 0.0
        %3546 = vadd.xlane.f32.xlu0 %v3545
        %v3547 = vpop.xlane.xlu0 %3546
        %v3548 = vsel %vm455, %v3451, 0.0
        %3549 = vadd.xlane.f32.xlu0 %v3548
        %v3550 = vpop.xlane.xlu0 %3549
        %v3551 = vsel %vm455, %v3453, 0.0
        %3552 = vadd.xlane.f32.xlu0 %v3551
        %v3553 = vpop.xlane.xlu0 %3552
        %v3554 = vsel %vm455, %v3455, 0.0
        %3555 = vadd.xlane.f32.xlu0 %v3554
        %v3556 = vpop.xlane.xlu0 %3555
        %v3557 = vsel %vm455, %v3457, 0.0
        %3558 = vadd.xlane.f32.xlu0 %v3557
        %v3559 = vpop.xlane.xlu0 %3558
        %v3560 = vsel %vm455, %v3459, 0.0
        %3561 = vadd.xlane.f32.xlu0 %v3560
        %v3562 = vpop.xlane.xlu0 %3561
        %v3563 = vsel %vm455, %v3461, 0.0
        %3564 = vadd.xlane.f32.xlu0 %v3563
        %v3565 = vpop.xlane.xlu0 %3564
        %v3566 = vsel %vm455, %v3463, 0.0
        %3567 = vadd.xlane.f32.xlu0 %v3566
        %v3568 = vpop.xlane.xlu0 %3567
        %v3569 = vsel %vm455, %v3465, 0.0
        %3570 = vadd.xlane.f32.xlu0 %v3569
        %v3571 = vpop.xlane.xlu0 %3570
        %v3572 = vsel %vm455, %v3467, 0.0
        %3573 = vadd.xlane.f32.xlu0 %v3572
        %v3574 = vpop.xlane.xlu0 %3573
        %v3575 = vsel %vm455, %v3469, 0.0
        %3576 = vadd.xlane.f32.xlu0 %v3575
        %v3577 = vpop.xlane.xlu0 %3576
        %v3578 = vsel %vm455, %v3471, 0.0
        %3579 = vadd.xlane.f32.xlu0 %v3578
        %v3580 = vpop.xlane.xlu0 %3579
        %v3581 = vsel %vm455, %v3473, 0.0
        %3582 = vadd.xlane.f32.xlu0 %v3581
        %v3583 = vpop.xlane.xlu0 %3582
        %v3584 = vsel %vm455, %v3475, 0.0
        %3585 = vadd.xlane.f32.xlu0 %v3584
        %v3586 = vpop.xlane.xlu0 %3585
        %v3587 = vsel %vm455, %v3477, 0.0
        %3588 = vadd.xlane.f32.xlu0 %v3587
        %v3589 = vpop.xlane.xlu0 %3588
        %v3590 = vsel %vm455, %v3479, 0.0
        %3591 = vadd.xlane.f32.xlu0 %v3590
        %v3592 = vpop.xlane.xlu0 %3591
        %v3593 = vsel %vm455, %v3481, 0.0
        %3594 = vadd.xlane.f32.xlu0 %v3593
        %v3595 = vpop.xlane.xlu0 %3594
        %v3596 = vsel %vm455, %v3483, 0.0
        %3597 = vadd.xlane.f32.xlu0 %v3596
        %v3598 = vpop.xlane.xlu0 %3597
        %v3599 = vsel %vm455, %v3485, 0.0
        %3600 = vadd.xlane.f32.xlu0 %v3599
        %v3601 = vpop.xlane.xlu0 %3600
        %v3602 = vsel %vm455, %v3487, 0.0
        %3603 = vadd.xlane.f32.xlu0 %v3602
        %v3604 = vpop.xlane.xlu0 %3603
        %v3605 = vsel %vm455, %v3489, 0.0
        %3606 = vadd.xlane.f32.xlu0 %v3605
        %v3607 = vpop.xlane.xlu0 %3606
        %v3608 = vsel %vm455, %v3491, 0.0
        %3609 = vadd.xlane.f32.xlu0 %v3608
        %v3610 = vpop.xlane.xlu0 %3609
        %v3611 = vsel %vm455, %v3493, 0.0
        %3612 = vadd.xlane.f32.xlu0 %v3611
        %v3613 = vpop.xlane.xlu0 %3612
        %v3614 = vsel %vm455, %v3495, 0.0
        %3615 = vadd.xlane.f32.xlu0 %v3614
        %v3616 = vpop.xlane.xlu0 %3615
        %v3617 = vsel %vm455, %v3497, 0.0
        %3618 = vadd.xlane.f32.xlu0 %v3617
        %v3619 = vpop.xlane.xlu0 %3618
        %v3620 = vsel %vm455, %v3499, 0.0
        %3621 = vadd.xlane.f32.xlu0 %v3620
        %v3622 = vpop.xlane.xlu0 %3621
        %v3623 = vsel %vm455, %v3501, 0.0
        %3624 = vadd.xlane.f32.xlu0 %v3623
        %v3625 = vpop.xlane.xlu0 %3624
        %v3626 = vsel %vm455, %v3503, 0.0
        %3627 = vadd.xlane.f32.xlu0 %v3626
        %v3628 = vpop.xlane.xlu0 %3627
        %v3629 = vsel %vm455, %v3505, 0.0
        %3630 = vadd.xlane.f32.xlu0 %v3629
        %v3631 = vpop.xlane.xlu0 %3630
        %v3632 = vsel %vm455, %v3507, 0.0
        %3633 = vadd.xlane.f32.xlu0 %v3632
        %v3634 = vpop.xlane.xlu0 %3633
        %v3635 = vsel %vm455, %v3509, 0.0
        %3636 = vadd.xlane.f32.xlu0 %v3635
        %v3637 = vpop.xlane.xlu0 %3636
        %vm3638 = vcmp.eq.s32.totalorder %v951, 6
        %v3639 = vsel %vm3638, %v1116, 0.0
        %v3640 = vsel %vm3638, %v1117, 0.0
        %v3641 = vsel %vm3638, %v1118, 0.0
        %v3642 = vsel %vm3638, %v1119, 0.0
        %v3643 = vsel %vm3638, %v1120, 0.0
        %v3644 = vsel %vm3638, %v1121, 0.0
        %v3645 = vsel %vm3638, %v1122, 0.0
        %v3646 = vsel %vm3638, %v1123, 0.0
        %v3647 = vsel %vm3638, %v1124, 0.0
        %v3648 = vsel %vm3638, %v1125, 0.0
        %v3649 = vsel %vm3638, %v1126, 0.0
        %v3650 = vsel %vm3638, %v1127, 0.0
        %v3651 = vsel %vm3638, %v1128, 0.0
        %v3652 = vsel %vm3638, %v1129, 0.0
        %v3653 = vsel %vm3638, %v1130, 0.0
        %v3654 = vsel %vm3638, %v1131, 0.0
        %v3655 = vsel %vm3638, %v1132, 0.0
        %v3656 = vsel %vm3638, %v1133, 0.0
        %v3657 = vsel %vm3638, %v1134, 0.0
        %v3658 = vsel %vm3638, %v1135, 0.0
        %v3659 = vsel %vm3638, %v1136, 0.0
        %v3660 = vsel %vm3638, %v1137, 0.0
        %v3661 = vsel %vm3638, %v1138, 0.0
        %v3662 = vsel %vm3638, %v1139, 0.0
        %v3663 = vsel %vm3638, %v1140, 0.0
        %v3664 = vsel %vm3638, %v1141, 0.0
        %v3665 = vsel %vm3638, %v1142, 0.0
        %v3666 = vsel %vm3638, %v1143, 0.0
        %v3667 = vsel %vm3638, %v1144, 0.0
        %v3668 = vsel %vm3638, %v1145, 0.0
        %v3669 = vsel %vm3638, %v1146, 0.0
        %v3670 = vsel %vm3638, %v1147, 0.0
        %3671 = vadd.xlane.f32.xlu0 %v3639
        %v3672 = vpop.xlane.xlu0 %3671
        %3673 = vadd.xlane.f32.xlu0 %v3640
        %v3674 = vpop.xlane.xlu0 %3673
        %3675 = vadd.xlane.f32.xlu0 %v3641
        %v3676 = vpop.xlane.xlu0 %3675
        %3677 = vadd.xlane.f32.xlu0 %v3642
        %v3678 = vpop.xlane.xlu0 %3677
        %3679 = vadd.xlane.f32.xlu0 %v3643
        %v3680 = vpop.xlane.xlu0 %3679
        %3681 = vadd.xlane.f32.xlu0 %v3644
        %v3682 = vpop.xlane.xlu0 %3681
        %3683 = vadd.xlane.f32.xlu0 %v3645
        %v3684 = vpop.xlane.xlu0 %3683
        %3685 = vadd.xlane.f32.xlu0 %v3646
        %v3686 = vpop.xlane.xlu0 %3685
        %3687 = vadd.xlane.f32.xlu0 %v3647
        %v3688 = vpop.xlane.xlu0 %3687
        %3689 = vadd.xlane.f32.xlu0 %v3648
        %v3690 = vpop.xlane.xlu0 %3689
        %3691 = vadd.xlane.f32.xlu0 %v3649
        %v3692 = vpop.xlane.xlu0 %3691
        %3693 = vadd.xlane.f32.xlu0 %v3650
        %v3694 = vpop.xlane.xlu0 %3693
        %3695 = vadd.xlane.f32.xlu0 %v3651
        %v3696 = vpop.xlane.xlu0 %3695
        %3697 = vadd.xlane.f32.xlu0 %v3652
        %v3698 = vpop.xlane.xlu0 %3697
        %3699 = vadd.xlane.f32.xlu0 %v3653
        %v3700 = vpop.xlane.xlu0 %3699
        %3701 = vadd.xlane.f32.xlu0 %v3654
        %v3702 = vpop.xlane.xlu0 %3701
        %3703 = vadd.xlane.f32.xlu0 %v3655
        %v3704 = vpop.xlane.xlu0 %3703
        %3705 = vadd.xlane.f32.xlu0 %v3656
        %v3706 = vpop.xlane.xlu0 %3705
        %3707 = vadd.xlane.f32.xlu0 %v3657
        %v3708 = vpop.xlane.xlu0 %3707
        %3709 = vadd.xlane.f32.xlu0 %v3658
        %v3710 = vpop.xlane.xlu0 %3709
        %3711 = vadd.xlane.f32.xlu0 %v3659
        %v3712 = vpop.xlane.xlu0 %3711
        %3713 = vadd.xlane.f32.xlu0 %v3660
        %v3714 = vpop.xlane.xlu0 %3713
        %3715 = vadd.xlane.f32.xlu0 %v3661
        %v3716 = vpop.xlane.xlu0 %3715
        %3717 = vadd.xlane.f32.xlu0 %v3662
        %v3718 = vpop.xlane.xlu0 %3717
        %3719 = vadd.xlane.f32.xlu0 %v3663
        %v3720 = vpop.xlane.xlu0 %3719
        %3721 = vadd.xlane.f32.xlu0 %v3664
        %v3722 = vpop.xlane.xlu0 %3721
        %3723 = vadd.xlane.f32.xlu0 %v3665
        %v3724 = vpop.xlane.xlu0 %3723
        %3725 = vadd.xlane.f32.xlu0 %v3666
        %v3726 = vpop.xlane.xlu0 %3725
        %3727 = vadd.xlane.f32.xlu0 %v3667
        %v3728 = vpop.xlane.xlu0 %3727
        %3729 = vadd.xlane.f32.xlu0 %v3668
        %v3730 = vpop.xlane.xlu0 %3729
        %3731 = vadd.xlane.f32.xlu0 %v3669
        %v3732 = vpop.xlane.xlu0 %3731
        %3733 = vadd.xlane.f32.xlu0 %v3670
        %v3734 = vpop.xlane.xlu0 %3733
        %v3735 = vmax.f32 %v3544, 0.0
        %v3736 = vmax.f32 %v3547, 0.0
        %v3737 = vmax.f32 %v3550, 0.0
        %v3738 = vmax.f32 %v3553, 0.0
        %v3739 = vmax.f32 %v3556, 0.0
        %v3740 = vmax.f32 %v3559, 0.0
        %v3741 = vmax.f32 %v3562, 0.0
        %v3742 = vmax.f32 %v3565, 0.0
        %v3743 = vmax.f32 %v3568, 0.0
        %v3744 = vmax.f32 %v3571, 0.0
        %v3745 = vmax.f32 %v3574, 0.0
        %v3746 = vmax.f32 %v3577, 0.0
        %v3747 = vmax.f32 %v3580, 0.0
        %v3748 = vmax.f32 %v3583, 0.0
        %v3749 = vmax.f32 %v3586, 0.0
        %v3750 = vmax.f32 %v3589, 0.0
        %v3751 = vmax.f32 %v3592, 0.0
        %v3752 = vmax.f32 %v3595, 0.0
        %v3753 = vmax.f32 %v3598, 0.0
        %v3754 = vmax.f32 %v3601, 0.0
        %v3755 = vmax.f32 %v3604, 0.0
        %v3756 = vmax.f32 %v3607, 0.0
        %v3757 = vmax.f32 %v3610, 0.0
        %v3758 = vmax.f32 %v3613, 0.0
        %v3759 = vmax.f32 %v3616, 0.0
        %v3760 = vmax.f32 %v3619, 0.0
        %v3761 = vmax.f32 %v3622, 0.0
        %v3762 = vmax.f32 %v3625, 0.0
        %v3763 = vmax.f32 %v3628, 0.0
        %v3764 = vmax.f32 %v3631, 0.0
        %v3765 = vmax.f32 %v3634, 0.0
        %v3766 = vmax.f32 %v3637, 0.0
        %v3767 = vmul.f32 %v3544, %v3672
        %v3768 = vmul.f32 %v3547, %v3674
        %v3769 = vmul.f32 %v3550, %v3676
        %v3770 = vmul.f32 %v3553, %v3678
        %v3771 = vmul.f32 %v3556, %v3680
        %v3772 = vmul.f32 %v3559, %v3682
        %v3773 = vmul.f32 %v3562, %v3684
        %v3774 = vmul.f32 %v3565, %v3686
        %v3775 = vmul.f32 %v3568, %v3688
        %v3776 = vmul.f32 %v3571, %v3690
        %v3777 = vmul.f32 %v3574, %v3692
        %v3778 = vmul.f32 %v3577, %v3694
        %v3779 = vmul.f32 %v3580, %v3696
        %v3780 = vmul.f32 %v3583, %v3698
        %v3781 = vmul.f32 %v3586, %v3700
        %v3782 = vmul.f32 %v3589, %v3702
        %v3783 = vmul.f32 %v3592, %v3704
        %v3784 = vmul.f32 %v3595, %v3706
        %v3785 = vmul.f32 %v3598, %v3708
        %v3786 = vmul.f32 %v3601, %v3710
        %v3787 = vmul.f32 %v3604, %v3712
        %v3788 = vmul.f32 %v3607, %v3714
        %v3789 = vmul.f32 %v3610, %v3716
        %v3790 = vmul.f32 %v3613, %v3718
        %v3791 = vmul.f32 %v3616, %v3720
        %v3792 = vmul.f32 %v3619, %v3722
        %v3793 = vmul.f32 %v3622, %v3724
        %v3794 = vmul.f32 %v3625, %v3726
        %v3795 = vmul.f32 %v3628, %v3728
        %v3796 = vmul.f32 %v3631, %v3730
        %v3797 = vmul.f32 %v3634, %v3732
        %v3798 = vmul.f32 %v3637, %v3734
        %v3799 = vsub.f32 %v3735, %v3767
        %v3800 = vsub.f32 %v3736, %v3768
        %v3801 = vsub.f32 %v3737, %v3769
        %v3802 = vsub.f32 %v3738, %v3770
        %v3803 = vsub.f32 %v3739, %v3771
        %v3804 = vsub.f32 %v3740, %v3772
        %v3805 = vsub.f32 %v3741, %v3773
        %v3806 = vsub.f32 %v3742, %v3774
        %v3807 = vsub.f32 %v3743, %v3775
        %v3808 = vsub.f32 %v3744, %v3776
        %v3809 = vsub.f32 %v3745, %v3777
        %v3810 = vsub.f32 %v3746, %v3778
        %v3811 = vsub.f32 %v3747, %v3779
        %v3812 = vsub.f32 %v3748, %v3780
        %v3813 = vsub.f32 %v3749, %v3781
        %v3814 = vsub.f32 %v3750, %v3782
        %v3815 = vsub.f32 %v3751, %v3783
        %v3816 = vsub.f32 %v3752, %v3784
        %v3817 = vsub.f32 %v3753, %v3785
        %v3818 = vsub.f32 %v3754, %v3786
        %v3819 = vsub.f32 %v3755, %v3787
        %v3820 = vsub.f32 %v3756, %v3788
        %v3821 = vsub.f32 %v3757, %v3789
        %v3822 = vsub.f32 %v3758, %v3790
        %v3823 = vsub.f32 %v3759, %v3791
        %v3824 = vsub.f32 %v3760, %v3792
        %v3825 = vsub.f32 %v3761, %v3793
        %v3826 = vsub.f32 %v3762, %v3794
        %v3827 = vsub.f32 %v3763, %v3795
        %v3828 = vsub.f32 %v3764, %v3796
        %v3829 = vsub.f32 %v3765, %v3797
        %v3830 = vsub.f32 %v3766, %v3798
        %v3831 = vand.u32 2147483647, %v3544
        %v3832 = vand.u32 2147483647, %v3547
        %v3833 = vand.u32 2147483647, %v3550
        %v3834 = vand.u32 2147483647, %v3553
        %v3835 = vand.u32 2147483647, %v3556
        %v3836 = vand.u32 2147483647, %v3559
        %v3837 = vand.u32 2147483647, %v3562
        %v3838 = vand.u32 2147483647, %v3565
        %v3839 = vand.u32 2147483647, %v3568
        %v3840 = vand.u32 2147483647, %v3571
        %v3841 = vand.u32 2147483647, %v3574
        %v3842 = vand.u32 2147483647, %v3577
        %v3843 = vand.u32 2147483647, %v3580
        %v3844 = vand.u32 2147483647, %v3583
        %v3845 = vand.u32 2147483647, %v3586
        %v3846 = vand.u32 2147483647, %v3589
        %v3847 = vand.u32 2147483647, %v3592
        %v3848 = vand.u32 2147483647, %v3595
        %v3849 = vand.u32 2147483647, %v3598
        %v3850 = vand.u32 2147483647, %v3601
        %v3851 = vand.u32 2147483647, %v3604
        %v3852 = vand.u32 2147483647, %v3607
        %v3853 = vand.u32 2147483647, %v3610
        %v3854 = vand.u32 2147483647, %v3613
        %v3855 = vand.u32 2147483647, %v3616
        %v3856 = vand.u32 2147483647, %v3619
        %v3857 = vand.u32 2147483647, %v3622
        %v3858 = vand.u32 2147483647, %v3625
        %v3859 = vand.u32 2147483647, %v3628
        %v3860 = vand.u32 2147483647, %v3631
        %v3861 = vand.u32 2147483647, %v3634
        %v3862 = vand.u32 2147483647, %v3637
        %v3863 = vsub.f32 0.0, %v3831
        %v3864 = vsub.f32 0.0, %v3832
        %v3865 = vsub.f32 0.0, %v3833
        %v3866 = vsub.f32 0.0, %v3834
        %v3867 = vsub.f32 0.0, %v3835
        %v3868 = vsub.f32 0.0, %v3836
        %v3869 = vsub.f32 0.0, %v3837
        %v3870 = vsub.f32 0.0, %v3838
        %v3871 = vsub.f32 0.0, %v3839
        %v3872 = vsub.f32 0.0, %v3840
        %v3873 = vsub.f32 0.0, %v3841
        %v3874 = vsub.f32 0.0, %v3842
        %v3875 = vsub.f32 0.0, %v3843
        %v3876 = vsub.f32 0.0, %v3844
        %v3877 = vsub.f32 0.0, %v3845
        %v3878 = vsub.f32 0.0, %v3846
        %v3879 = vsub.f32 0.0, %v3847
        %v3880 = vsub.f32 0.0, %v3848
        %v3881 = vsub.f32 0.0, %v3849
        %v3882 = vsub.f32 0.0, %v3850
        %v3883 = vsub.f32 0.0, %v3851
        %v3884 = vsub.f32 0.0, %v3852
        %v3885 = vsub.f32 0.0, %v3853
        %v3886 = vsub.f32 0.0, %v3854
        %v3887 = vsub.f32 0.0, %v3855
        %v3888 = vsub.f32 0.0, %v3856
        %v3889 = vsub.f32 0.0, %v3857
        %v3890 = vsub.f32 0.0, %v3858
        %v3891 = vsub.f32 0.0, %v3859
        %v3892 = vsub.f32 0.0, %v3860
        %v3893 = vsub.f32 0.0, %v3861
        %v3894 = vsub.f32 0.0, %v3862
        %v3895 = vmul.f32 %v3863, 1.442695
        %v3896 = vpow.pop %v3895
        %v3897 = vmul.f32 %v3864, 1.442695
        %v3898 = vpow.pop %v3897
        %v3899 = vmul.f32 %v3865, 1.442695
        %v3900 = vpow.pop %v3899
        %v3901 = vmul.f32 %v3866, 1.442695
        %v3902 = vpow.pop %v3901
        %v3903 = vmul.f32 %v3867, 1.442695
        %v3904 = vpow.pop %v3903
        %v3905 = vmul.f32 %v3868, 1.442695
        %v3906 = vpow.pop %v3905
        %v3907 = vmul.f32 %v3869, 1.442695
        %v3908 = vpow.pop %v3907
        %v3909 = vmul.f32 %v3870, 1.442695
        %v3910 = vpow.pop %v3909
        %v3911 = vmul.f32 %v3871, 1.442695
        %v3912 = vpow.pop %v3911
        %v3913 = vmul.f32 %v3872, 1.442695
        %v3914 = vpow.pop %v3913
        %v3915 = vmul.f32 %v3873, 1.442695
        %v3916 = vpow.pop %v3915
        %v3917 = vmul.f32 %v3874, 1.442695
        %v3918 = vpow.pop %v3917
        %v3919 = vmul.f32 %v3875, 1.442695
        %v3920 = vpow.pop %v3919
        %v3921 = vmul.f32 %v3876, 1.442695
        %v3922 = vpow.pop %v3921
        %v3923 = vmul.f32 %v3877, 1.442695
        %v3924 = vpow.pop %v3923
        %v3925 = vmul.f32 %v3878, 1.442695
        %v3926 = vpow.pop %v3925
        %v3927 = vmul.f32 %v3879, 1.442695
        %v3928 = vpow.pop %v3927
        %v3929 = vmul.f32 %v3880, 1.442695
        %v3930 = vpow.pop %v3929
        %v3931 = vmul.f32 %v3881, 1.442695
        %v3932 = vpow.pop %v3931
        %v3933 = vmul.f32 %v3882, 1.442695
        %v3934 = vpow.pop %v3933
        %v3935 = vmul.f32 %v3883, 1.442695
        %v3936 = vpow.pop %v3935
        %v3937 = vmul.f32 %v3884, 1.442695
        %v3938 = vpow.pop %v3937
        %v3939 = vmul.f32 %v3885, 1.442695
        %v3940 = vpow.pop %v3939
        %v3941 = vmul.f32 %v3886, 1.442695
        %v3942 = vpow.pop %v3941
        %v3943 = vmul.f32 %v3887, 1.442695
        %v3944 = vpow.pop %v3943
        %v3945 = vmul.f32 %v3888, 1.442695
        %v3946 = vpow.pop %v3945
        %v3947 = vmul.f32 %v3889, 1.442695
        %v3948 = vpow.pop %v3947
        %v3949 = vmul.f32 %v3890, 1.442695
        %v3950 = vpow.pop %v3949
        %v3951 = vmul.f32 %v3891, 1.442695
        %v3952 = vpow.pop %v3951
        %v3953 = vmul.f32 %v3892, 1.442695
        %v3954 = vpow.pop %v3953
        %v3955 = vmul.f32 %v3893, 1.442695
        %v3956 = vpow.pop %v3955
        %v3957 = vmul.f32 %v3894, 1.442695
        %v3958 = vpow.pop %v3957
        %v3959 = vadd.f32 %v3896, 1.0
        %v3960 = vlog2.pop %v3959
        %v3961 = vmul.f32 %v3960, 0.6931472
        %v3962 = vmul.f32 -0.5, %v3896
        %v3963 = vadd.f32 %v3962, 1.0
        %v3964 = vmul.f32 %v3963, %v3896
        %v3965 = vand.u32 2147483647, %v3896
        %vm3966 = vcmp.lt.f32.partialorder %v3965, 0.0004427343
        %v3967 = vsel %vm3966, %v3964, %v3961
        %v3968 = vadd.f32 %v3898, 1.0
        %v3969 = vlog2.pop %v3968
        %v3970 = vmul.f32 %v3969, 0.6931472
        %v3971 = vmul.f32 -0.5, %v3898
        %v3972 = vadd.f32 %v3971, 1.0
        %v3973 = vmul.f32 %v3972, %v3898
        %v3974 = vand.u32 2147483647, %v3898
        %vm3975 = vcmp.lt.f32.partialorder %v3974, 0.0004427343
        %v3976 = vsel %vm3975, %v3973, %v3970
        %v3977 = vadd.f32 %v3900, 1.0
        %v3978 = vlog2.pop %v3977
        %v3979 = vmul.f32 %v3978, 0.6931472
        %v3980 = vmul.f32 -0.5, %v3900
        %v3981 = vadd.f32 %v3980, 1.0
        %v3982 = vmul.f32 %v3981, %v3900
        %v3983 = vand.u32 2147483647, %v3900
        %vm3984 = vcmp.lt.f32.partialorder %v3983, 0.0004427343
        %v3985 = vsel %vm3984, %v3982, %v3979
        %v3986 = vadd.f32 %v3902, 1.0
        %v3987 = vlog2.pop %v3986
        %v3988 = vmul.f32 %v3987, 0.6931472
        %v3989 = vmul.f32 -0.5, %v3902
        %v3990 = vadd.f32 %v3989, 1.0
        %v3991 = vmul.f32 %v3990, %v3902
        %v3992 = vand.u32 2147483647, %v3902
        %vm3993 = vcmp.lt.f32.partialorder %v3992, 0.0004427343
        %v3994 = vsel %vm3993, %v3991, %v3988
        %v3995 = vadd.f32 %v3904, 1.0
        %v3996 = vlog2.pop %v3995
        %v3997 = vmul.f32 %v3996, 0.6931472
        %v3998 = vmul.f32 -0.5, %v3904
        %v3999 = vadd.f32 %v3998, 1.0
        %v4000 = vmul.f32 %v3999, %v3904
        %v4001 = vand.u32 2147483647, %v3904
        %vm4002 = vcmp.lt.f32.partialorder %v4001, 0.0004427343
        %v4003 = vsel %vm4002, %v4000, %v3997
        %v4004 = vadd.f32 %v3906, 1.0
        %v4005 = vlog2.pop %v4004
        %v4006 = vmul.f32 %v4005, 0.6931472
        %v4007 = vmul.f32 -0.5, %v3906
        %v4008 = vadd.f32 %v4007, 1.0
        %v4009 = vmul.f32 %v4008, %v3906
        %v4010 = vand.u32 2147483647, %v3906
        %vm4011 = vcmp.lt.f32.partialorder %v4010, 0.0004427343
        %v4012 = vsel %vm4011, %v4009, %v4006
        %v4013 = vadd.f32 %v3908, 1.0
        %v4014 = vlog2.pop %v4013
        %v4015 = vmul.f32 %v4014, 0.6931472
        %v4016 = vmul.f32 -0.5, %v3908
        %v4017 = vadd.f32 %v4016, 1.0
        %v4018 = vmul.f32 %v4017, %v3908
        %v4019 = vand.u32 2147483647, %v3908
        %vm4020 = vcmp.lt.f32.partialorder %v4019, 0.0004427343
        %v4021 = vsel %vm4020, %v4018, %v4015
        %v4022 = vadd.f32 %v3910, 1.0
        %v4023 = vlog2.pop %v4022
        %v4024 = vmul.f32 %v4023, 0.6931472
        %v4025 = vmul.f32 -0.5, %v3910
        %v4026 = vadd.f32 %v4025, 1.0
        %v4027 = vmul.f32 %v4026, %v3910
        %v4028 = vand.u32 2147483647, %v3910
        %vm4029 = vcmp.lt.f32.partialorder %v4028, 0.0004427343
        %v4030 = vsel %vm4029, %v4027, %v4024
        %v4031 = vadd.f32 %v3912, 1.0
        %v4032 = vlog2.pop %v4031
        %v4033 = vmul.f32 %v4032, 0.6931472
        %v4034 = vmul.f32 -0.5, %v3912
        %v4035 = vadd.f32 %v4034, 1.0
        %v4036 = vmul.f32 %v4035, %v3912
        %v4037 = vand.u32 2147483647, %v3912
        %vm4038 = vcmp.lt.f32.partialorder %v4037, 0.0004427343
        %v4039 = vsel %vm4038, %v4036, %v4033
        %v4040 = vadd.f32 %v3914, 1.0
        %v4041 = vlog2.pop %v4040
        %v4042 = vmul.f32 %v4041, 0.6931472
        %v4043 = vmul.f32 -0.5, %v3914
        %v4044 = vadd.f32 %v4043, 1.0
        %v4045 = vmul.f32 %v4044, %v3914
        %v4046 = vand.u32 2147483647, %v3914
        %vm4047 = vcmp.lt.f32.partialorder %v4046, 0.0004427343
        %v4048 = vsel %vm4047, %v4045, %v4042
        %v4049 = vadd.f32 %v3916, 1.0
        %v4050 = vlog2.pop %v4049
        %v4051 = vmul.f32 %v4050, 0.6931472
        %v4052 = vmul.f32 -0.5, %v3916
        %v4053 = vadd.f32 %v4052, 1.0
        %v4054 = vmul.f32 %v4053, %v3916
        %v4055 = vand.u32 2147483647, %v3916
        %vm4056 = vcmp.lt.f32.partialorder %v4055, 0.0004427343
        %v4057 = vsel %vm4056, %v4054, %v4051
        %v4058 = vadd.f32 %v3918, 1.0
        %v4059 = vlog2.pop %v4058
        %v4060 = vmul.f32 %v4059, 0.6931472
        %v4061 = vmul.f32 -0.5, %v3918
        %v4062 = vadd.f32 %v4061, 1.0
        %v4063 = vmul.f32 %v4062, %v3918
        %v4064 = vand.u32 2147483647, %v3918
        %vm4065 = vcmp.lt.f32.partialorder %v4064, 0.0004427343
        %v4066 = vsel %vm4065, %v4063, %v4060
        %v4067 = vadd.f32 %v3920, 1.0
        %v4068 = vlog2.pop %v4067
        %v4069 = vmul.f32 %v4068, 0.6931472
        %v4070 = vmul.f32 -0.5, %v3920
        %v4071 = vadd.f32 %v4070, 1.0
        %v4072 = vmul.f32 %v4071, %v3920
        %v4073 = vand.u32 2147483647, %v3920
        %vm4074 = vcmp.lt.f32.partialorder %v4073, 0.0004427343
        %v4075 = vsel %vm4074, %v4072, %v4069
        %v4076 = vadd.f32 %v3922, 1.0
        %v4077 = vlog2.pop %v4076
        %v4078 = vmul.f32 %v4077, 0.6931472
        %v4079 = vmul.f32 -0.5, %v3922
        %v4080 = vadd.f32 %v4079, 1.0
        %v4081 = vmul.f32 %v4080, %v3922
        %v4082 = vand.u32 2147483647, %v3922
        %vm4083 = vcmp.lt.f32.partialorder %v4082, 0.0004427343
        %v4084 = vsel %vm4083, %v4081, %v4078
        %v4085 = vadd.f32 %v3924, 1.0
        %v4086 = vlog2.pop %v4085
        %v4087 = vmul.f32 %v4086, 0.6931472
        %v4088 = vmul.f32 -0.5, %v3924
        %v4089 = vadd.f32 %v4088, 1.0
        %v4090 = vmul.f32 %v4089, %v3924
        %v4091 = vand.u32 2147483647, %v3924
        %vm4092 = vcmp.lt.f32.partialorder %v4091, 0.0004427343
        %v4093 = vsel %vm4092, %v4090, %v4087
        %v4094 = vadd.f32 %v3926, 1.0
        %v4095 = vlog2.pop %v4094
        %v4096 = vmul.f32 %v4095, 0.6931472
        %v4097 = vmul.f32 -0.5, %v3926
        %v4098 = vadd.f32 %v4097, 1.0
        %v4099 = vmul.f32 %v4098, %v3926
        %v4100 = vand.u32 2147483647, %v3926
        %vm4101 = vcmp.lt.f32.partialorder %v4100, 0.0004427343
        %v4102 = vsel %vm4101, %v4099, %v4096
        %v4103 = vadd.f32 %v3928, 1.0
        %v4104 = vlog2.pop %v4103
        %v4105 = vmul.f32 %v4104, 0.6931472
        %v4106 = vmul.f32 -0.5, %v3928
        %v4107 = vadd.f32 %v4106, 1.0
        %v4108 = vmul.f32 %v4107, %v3928
        %v4109 = vand.u32 2147483647, %v3928
        %vm4110 = vcmp.lt.f32.partialorder %v4109, 0.0004427343
        %v4111 = vsel %vm4110, %v4108, %v4105
        %v4112 = vadd.f32 %v3930, 1.0
        %v4113 = vlog2.pop %v4112
        %v4114 = vmul.f32 %v4113, 0.6931472
        %v4115 = vmul.f32 -0.5, %v3930
        %v4116 = vadd.f32 %v4115, 1.0
        %v4117 = vmul.f32 %v4116, %v3930
        %v4118 = vand.u32 2147483647, %v3930
        %vm4119 = vcmp.lt.f32.partialorder %v4118, 0.0004427343
        %v4120 = vsel %vm4119, %v4117, %v4114
        %v4121 = vadd.f32 %v3932, 1.0
        %v4122 = vlog2.pop %v4121
        %v4123 = vmul.f32 %v4122, 0.6931472
        %v4124 = vmul.f32 -0.5, %v3932
        %v4125 = vadd.f32 %v4124, 1.0
        %v4126 = vmul.f32 %v4125, %v3932
        %v4127 = vand.u32 2147483647, %v3932
        %vm4128 = vcmp.lt.f32.partialorder %v4127, 0.0004427343
        %v4129 = vsel %vm4128, %v4126, %v4123
        %v4130 = vadd.f32 %v3934, 1.0
        %v4131 = vlog2.pop %v4130
        %v4132 = vmul.f32 %v4131, 0.6931472
        %v4133 = vmul.f32 -0.5, %v3934
        %v4134 = vadd.f32 %v4133, 1.0
        %v4135 = vmul.f32 %v4134, %v3934
        %v4136 = vand.u32 2147483647, %v3934
        %vm4137 = vcmp.lt.f32.partialorder %v4136, 0.0004427343
        %v4138 = vsel %vm4137, %v4135, %v4132
        %v4139 = vadd.f32 %v3936, 1.0
        %v4140 = vlog2.pop %v4139
        %v4141 = vmul.f32 %v4140, 0.6931472
        %v4142 = vmul.f32 -0.5, %v3936
        %v4143 = vadd.f32 %v4142, 1.0
        %v4144 = vmul.f32 %v4143, %v3936
        %v4145 = vand.u32 2147483647, %v3936
        %vm4146 = vcmp.lt.f32.partialorder %v4145, 0.0004427343
        %v4147 = vsel %vm4146, %v4144, %v4141
        %v4148 = vadd.f32 %v3938, 1.0
        %v4149 = vlog2.pop %v4148
        %v4150 = vmul.f32 %v4149, 0.6931472
        %v4151 = vmul.f32 -0.5, %v3938
        %v4152 = vadd.f32 %v4151, 1.0
        %v4153 = vmul.f32 %v4152, %v3938
        %v4154 = vand.u32 2147483647, %v3938
        %vm4155 = vcmp.lt.f32.partialorder %v4154, 0.0004427343
        %v4156 = vsel %vm4155, %v4153, %v4150
        %v4157 = vadd.f32 %v3940, 1.0
        %v4158 = vlog2.pop %v4157
        %v4159 = vmul.f32 %v4158, 0.6931472
        %v4160 = vmul.f32 -0.5, %v3940
        %v4161 = vadd.f32 %v4160, 1.0
        %v4162 = vmul.f32 %v4161, %v3940
        %v4163 = vand.u32 2147483647, %v3940
        %vm4164 = vcmp.lt.f32.partialorder %v4163, 0.0004427343
        %v4165 = vsel %vm4164, %v4162, %v4159
        %v4166 = vadd.f32 %v3942, 1.0
        %v4167 = vlog2.pop %v4166
        %v4168 = vmul.f32 %v4167, 0.6931472
        %v4169 = vmul.f32 -0.5, %v3942
        %v4170 = vadd.f32 %v4169, 1.0
        %v4171 = vmul.f32 %v4170, %v3942
        %v4172 = vand.u32 2147483647, %v3942
        %vm4173 = vcmp.lt.f32.partialorder %v4172, 0.0004427343
        %v4174 = vsel %vm4173, %v4171, %v4168
        %v4175 = vadd.f32 %v3944, 1.0
        %v4176 = vlog2.pop %v4175
        %v4177 = vmul.f32 %v4176, 0.6931472
        %v4178 = vmul.f32 -0.5, %v3944
        %v4179 = vadd.f32 %v4178, 1.0
        %v4180 = vmul.f32 %v4179, %v3944
        %v4181 = vand.u32 2147483647, %v3944
        %vm4182 = vcmp.lt.f32.partialorder %v4181, 0.0004427343
        %v4183 = vsel %vm4182, %v4180, %v4177
        %v4184 = vadd.f32 %v3946, 1.0
        %v4185 = vlog2.pop %v4184
        %v4186 = vmul.f32 %v4185, 0.6931472
        %v4187 = vmul.f32 -0.5, %v3946
        %v4188 = vadd.f32 %v4187, 1.0
        %v4189 = vmul.f32 %v4188, %v3946
        %v4190 = vand.u32 2147483647, %v3946
        %vm4191 = vcmp.lt.f32.partialorder %v4190, 0.0004427343
        %v4192 = vsel %vm4191, %v4189, %v4186
        %v4193 = vadd.f32 %v3948, 1.0
        %v4194 = vlog2.pop %v4193
        %v4195 = vmul.f32 %v4194, 0.6931472
        %v4196 = vmul.f32 -0.5, %v3948
        %v4197 = vadd.f32 %v4196, 1.0
        %v4198 = vmul.f32 %v4197, %v3948
        %v4199 = vand.u32 2147483647, %v3948
        %vm4200 = vcmp.lt.f32.partialorder %v4199, 0.0004427343
        %v4201 = vsel %vm4200, %v4198, %v4195
        %v4202 = vadd.f32 %v3950, 1.0
        %v4203 = vlog2.pop %v4202
        %v4204 = vmul.f32 %v4203, 0.6931472
        %v4205 = vmul.f32 -0.5, %v3950
        %v4206 = vadd.f32 %v4205, 1.0
        %v4207 = vmul.f32 %v4206, %v3950
        %v4208 = vand.u32 2147483647, %v3950
        %vm4209 = vcmp.lt.f32.partialorder %v4208, 0.0004427343
        %v4210 = vsel %vm4209, %v4207, %v4204
        %v4211 = vadd.f32 %v3952, 1.0
        %v4212 = vlog2.pop %v4211
        %v4213 = vmul.f32 %v4212, 0.6931472
        %v4214 = vmul.f32 -0.5, %v3952
        %v4215 = vadd.f32 %v4214, 1.0
        %v4216 = vmul.f32 %v4215, %v3952
        %v4217 = vand.u32 2147483647, %v3952
        %vm4218 = vcmp.lt.f32.partialorder %v4217, 0.0004427343
        %v4219 = vsel %vm4218, %v4216, %v4213
        %v4220 = vadd.f32 %v3954, 1.0
        %v4221 = vlog2.pop %v4220
        %v4222 = vmul.f32 %v4221, 0.6931472
        %v4223 = vmul.f32 -0.5, %v3954
        %v4224 = vadd.f32 %v4223, 1.0
        %v4225 = vmul.f32 %v4224, %v3954
        %v4226 = vand.u32 2147483647, %v3954
        %vm4227 = vcmp.lt.f32.partialorder %v4226, 0.0004427343
        %v4228 = vsel %vm4227, %v4225, %v4222
        %v4229 = vadd.f32 %v3956, 1.0
        %v4230 = vlog2.pop %v4229
        %v4231 = vmul.f32 %v4230, 0.6931472
        %v4232 = vmul.f32 -0.5, %v3956
        %v4233 = vadd.f32 %v4232, 1.0
        %v4234 = vmul.f32 %v4233, %v3956
        %v4235 = vand.u32 2147483647, %v3956
        %vm4236 = vcmp.lt.f32.partialorder %v4235, 0.0004427343
        %v4237 = vsel %vm4236, %v4234, %v4231
        %v4238 = vadd.f32 %v3958, 1.0
        %v4239 = vlog2.pop %v4238
        %v4240 = vmul.f32 %v4239, 0.6931472
        %v4241 = vmul.f32 -0.5, %v3958
        %v4242 = vadd.f32 %v4241, 1.0
        %v4243 = vmul.f32 %v4242, %v3958
        %v4244 = vand.u32 2147483647, %v3958
        %vm4245 = vcmp.lt.f32.partialorder %v4244, 0.0004427343
        %v4246 = vsel %vm4245, %v4243, %v4240
        %v4247 = vadd.f32 %v3799, %v3967
        %v4248 = vadd.f32 %v3800, %v3976
        %v4249 = vadd.f32 %v3801, %v3985
        %v4250 = vadd.f32 %v3802, %v3994
        %v4251 = vadd.f32 %v3803, %v4003
        %v4252 = vadd.f32 %v3804, %v4012
        %v4253 = vadd.f32 %v3805, %v4021
        %v4254 = vadd.f32 %v3806, %v4030
        %v4255 = vadd.f32 %v3807, %v4039
        %v4256 = vadd.f32 %v3808, %v4048
        %v4257 = vadd.f32 %v3809, %v4057
        %v4258 = vadd.f32 %v3810, %v4066
        %v4259 = vadd.f32 %v3811, %v4075
        %v4260 = vadd.f32 %v3812, %v4084
        %v4261 = vadd.f32 %v3813, %v4093
        %v4262 = vadd.f32 %v3814, %v4102
        %v4263 = vadd.f32 %v3815, %v4111
        %v4264 = vadd.f32 %v3816, %v4120
        %v4265 = vadd.f32 %v3817, %v4129
        %v4266 = vadd.f32 %v3818, %v4138
        %v4267 = vadd.f32 %v3819, %v4147
        %v4268 = vadd.f32 %v3820, %v4156
        %v4269 = vadd.f32 %v3821, %v4165
        %v4270 = vadd.f32 %v3822, %v4174
        %v4271 = vadd.f32 %v3823, %v4183
        %v4272 = vadd.f32 %v3824, %v4192
        %v4273 = vadd.f32 %v3825, %v4201
        %v4274 = vadd.f32 %v3826, %v4210
        %v4275 = vadd.f32 %v3827, %v4219
        %v4276 = vadd.f32 %v3828, %v4228
        %v4277 = vadd.f32 %v3829, %v4237
        %v4278 = vadd.f32 %v3830, %v4246
        %v4279 = vsel %vm1341, %v4247, 0.0
        %v4280 = vsel %vm1341, %v4248, 0.0
        %v4281 = vadd.f32 %v4279, %v4280
        %v4282 = vsel %vm1341, %v4249, 0.0
        %v4283 = vadd.f32 %v4281, %v4282
        %v4284 = vsel %vm1341, %v4250, 0.0
        %v4285 = vadd.f32 %v4283, %v4284
        %v4286 = vsel %vm1341, %v4251, 0.0
        %v4287 = vadd.f32 %v4285, %v4286
        %v4288 = vsel %vm1341, %v4252, 0.0
        %v4289 = vadd.f32 %v4287, %v4288
        %v4290 = vsel %vm1341, %v4253, 0.0
        %v4291 = vadd.f32 %v4289, %v4290
        %v4292 = vsel %vm1341, %v4254, 0.0
        %v4293 = vadd.f32 %v4291, %v4292
        %v4294 = vsel %vm1341, %v4255, 0.0
        %v4295 = vadd.f32 %v4293, %v4294
        %v4296 = vsel %vm1341, %v4256, 0.0
        %v4297 = vadd.f32 %v4295, %v4296
        %v4298 = vsel %vm1341, %v4257, 0.0
        %v4299 = vadd.f32 %v4297, %v4298
        %v4300 = vsel %vm1341, %v4258, 0.0
        %v4301 = vadd.f32 %v4299, %v4300
        %v4302 = vsel %vm1341, %v4259, 0.0
        %v4303 = vadd.f32 %v4301, %v4302
        %v4304 = vsel %vm1341, %v4260, 0.0
        %v4305 = vadd.f32 %v4303, %v4304
        %v4306 = vsel %vm1341, %v4261, 0.0
        %v4307 = vadd.f32 %v4305, %v4306
        %v4308 = vsel %vm1341, %v4262, 0.0
        %v4309 = vadd.f32 %v4307, %v4308
        %v4310 = vsel %vm1341, %v4263, 0.0
        %v4311 = vadd.f32 %v4309, %v4310
        %v4312 = vsel %vm1341, %v4264, 0.0
        %v4313 = vadd.f32 %v4311, %v4312
        %v4314 = vsel %vm1341, %v4265, 0.0
        %v4315 = vadd.f32 %v4313, %v4314
        %v4316 = vsel %vm1341, %v4266, 0.0
        %v4317 = vadd.f32 %v4315, %v4316
        %v4318 = vsel %vm1341, %v4267, 0.0
        %v4319 = vadd.f32 %v4317, %v4318
        %v4320 = vsel %vm1341, %v4268, 0.0
        %v4321 = vadd.f32 %v4319, %v4320
        %v4322 = vsel %vm1341, %v4269, 0.0
        %v4323 = vadd.f32 %v4321, %v4322
        %v4324 = vsel %vm1341, %v4270, 0.0
        %v4325 = vadd.f32 %v4323, %v4324
        %v4326 = vsel %vm1341, %v4271, 0.0
        %v4327 = vadd.f32 %v4325, %v4326
        %v4328 = vsel %vm1341, %v4272, 0.0
        %v4329 = vadd.f32 %v4327, %v4328
        %v4330 = vsel %vm1341, %v4273, 0.0
        %v4331 = vadd.f32 %v4329, %v4330
        %v4332 = vsel %vm1341, %v4274, 0.0
        %v4333 = vadd.f32 %v4331, %v4332
        %v4334 = vsel %vm1341, %v4275, 0.0
        %v4335 = vadd.f32 %v4333, %v4334
        %v4336 = vsel %vm1341, %v4276, 0.0
        %v4337 = vadd.f32 %v4335, %v4336
        %v4338 = vsel %vm1341, %v4277, 0.0
        %v4339 = vadd.f32 %v4337, %v4338
        %v4340 = vsel %vm1341, %v4278, 0.0
        %v4341 = vadd.f32 %v4339, %v4340
        %4342 = vadd.xlane.f32.xlu0 %v4341
        %v4343 = vpop.xlane.xlu0 %4342
        %v4344 = vrot.slane %v4343, 4
        %v4345 = vadd.f32 %v4343, %v4344
        %v4346 = vrot.slane %v4345, 2
        %v4347 = vadd.f32 %v4345, %v4346
        %v4348 = vrot.slane %v4347, 1
        %v4349 = vadd.f32 %v4347, %v4348
        %s4350 = vtos %v4349
        %s4351 = sadd.f32 %s3373, %s4350
        %v4352 = vlaneseq
        %v4353 = vshrl.u32 %v4352, 7
        %v4354 = vsub.s32 2, %v4353
        %v4355 = vrot.slane %v1052, %v4354
        %4357 = vrot.lane.b32.xlu0 %v4355, 8
        %v4358 = vpop.permute.xlu0 %4357
        %v4360 = vmul.f32 %v1052, %v4358
        %v4361 = vmul.f32 %v1053, %v4358
        %v4362 = vmul.f32 %v1054, %v4358
        %v4363 = vmul.f32 %v1055, %v4358
        %v4364 = vmul.f32 %v1056, %v4358
        %v4365 = vmul.f32 %v1057, %v4358
        %v4366 = vmul.f32 %v1058, %v4358
        %v4367 = vmul.f32 %v1059, %v4358
        %v4368 = vmul.f32 %v1060, %v4358
        %v4369 = vmul.f32 %v1061, %v4358
        %v4370 = vmul.f32 %v1062, %v4358
        %v4371 = vmul.f32 %v1063, %v4358
        %v4372 = vmul.f32 %v1064, %v4358
        %v4373 = vmul.f32 %v1065, %v4358
        %v4374 = vmul.f32 %v1066, %v4358
        %v4375 = vmul.f32 %v1067, %v4358
        %v4376 = vmul.f32 %v1068, %v4358
        %v4377 = vmul.f32 %v1069, %v4358
        %v4378 = vmul.f32 %v1070, %v4358
        %v4379 = vmul.f32 %v1071, %v4358
        %v4380 = vmul.f32 %v1072, %v4358
        %v4381 = vmul.f32 %v1073, %v4358
        %v4382 = vmul.f32 %v1074, %v4358
        %v4383 = vmul.f32 %v1075, %v4358
        %v4384 = vmul.f32 %v1076, %v4358
        %v4385 = vmul.f32 %v1077, %v4358
        %v4386 = vmul.f32 %v1078, %v4358
        %v4387 = vmul.f32 %v1079, %v4358
        %v4388 = vmul.f32 %v1080, %v4358
        %v4389 = vmul.f32 %v1081, %v4358
        %v4390 = vmul.f32 %v1082, %v4358
        %v4391 = vmul.f32 %v1083, %v4358
        %4424 = vrot.lane.b32.xlu0 %v4360, 111
        %v4425 = vpop.permute.xlu0 %4424
        %4426 = vrot.lane.b32.xlu0 %v4361, 111
        %v4427 = vpop.permute.xlu0 %4426
        %4428 = vrot.lane.b32.xlu0 %v4362, 111
        %v4429 = vpop.permute.xlu0 %4428
        %4430 = vrot.lane.b32.xlu0 %v4363, 111
        %v4431 = vpop.permute.xlu0 %4430
        %4432 = vrot.lane.b32.xlu0 %v4364, 111
        %v4433 = vpop.permute.xlu0 %4432
        %4434 = vrot.lane.b32.xlu0 %v4365, 111
        %v4435 = vpop.permute.xlu0 %4434
        %4436 = vrot.lane.b32.xlu0 %v4366, 111
        %v4437 = vpop.permute.xlu0 %4436
        %4438 = vrot.lane.b32.xlu0 %v4367, 111
        %v4439 = vpop.permute.xlu0 %4438
        %4440 = vrot.lane.b32.xlu0 %v4368, 111
        %v4441 = vpop.permute.xlu0 %4440
        %4442 = vrot.lane.b32.xlu0 %v4369, 111
        %v4443 = vpop.permute.xlu0 %4442
        %4444 = vrot.lane.b32.xlu0 %v4370, 111
        %v4445 = vpop.permute.xlu0 %4444
        %4446 = vrot.lane.b32.xlu0 %v4371, 111
        %v4447 = vpop.permute.xlu0 %4446
        %4448 = vrot.lane.b32.xlu0 %v4372, 111
        %v4449 = vpop.permute.xlu0 %4448
        %4450 = vrot.lane.b32.xlu0 %v4373, 111
        %v4451 = vpop.permute.xlu0 %4450
        %4452 = vrot.lane.b32.xlu0 %v4374, 111
        %v4453 = vpop.permute.xlu0 %4452
        %4454 = vrot.lane.b32.xlu0 %v4375, 111
        %v4455 = vpop.permute.xlu0 %4454
        %4456 = vrot.lane.b32.xlu0 %v4376, 111
        %v4457 = vpop.permute.xlu0 %4456
        %4458 = vrot.lane.b32.xlu0 %v4377, 111
        %v4459 = vpop.permute.xlu0 %4458
        %4460 = vrot.lane.b32.xlu0 %v4378, 111
        %v4461 = vpop.permute.xlu0 %4460
        %4462 = vrot.lane.b32.xlu0 %v4379, 111
        %v4463 = vpop.permute.xlu0 %4462
        %4464 = vrot.lane.b32.xlu0 %v4380, 111
        %v4465 = vpop.permute.xlu0 %4464
        %4466 = vrot.lane.b32.xlu0 %v4381, 111
        %v4467 = vpop.permute.xlu0 %4466
        %4468 = vrot.lane.b32.xlu0 %v4382, 111
        %v4469 = vpop.permute.xlu0 %4468
        %4470 = vrot.lane.b32.xlu0 %v4383, 111
        %v4471 = vpop.permute.xlu0 %4470
        %4472 = vrot.lane.b32.xlu0 %v4384, 111
        %v4473 = vpop.permute.xlu0 %4472
        %4474 = vrot.lane.b32.xlu0 %v4385, 111
        %v4475 = vpop.permute.xlu0 %4474
        %4476 = vrot.lane.b32.xlu0 %v4386, 111
        %v4477 = vpop.permute.xlu0 %4476
        %4478 = vrot.lane.b32.xlu0 %v4387, 111
        %v4479 = vpop.permute.xlu0 %4478
        %4480 = vrot.lane.b32.xlu0 %v4388, 111
        %v4481 = vpop.permute.xlu0 %4480
        %4482 = vrot.lane.b32.xlu0 %v4389, 111
        %v4483 = vpop.permute.xlu0 %4482
        %4484 = vrot.lane.b32.xlu0 %v4390, 111
        %v4485 = vpop.permute.xlu0 %4484
        %4486 = vrot.lane.b32.xlu0 %v4391, 111
        %v4487 = vpop.permute.xlu0 %4486
        %v4520 = vsel %vm455, %v4425, 0.0
        %4521 = vadd.xlane.f32.xlu0 %v4520
        %v4522 = vpop.xlane.xlu0 %4521
        %v4523 = vsel %vm455, %v4427, 0.0
        %4524 = vadd.xlane.f32.xlu0 %v4523
        %v4525 = vpop.xlane.xlu0 %4524
        %v4526 = vsel %vm455, %v4429, 0.0
        %4527 = vadd.xlane.f32.xlu0 %v4526
        %v4528 = vpop.xlane.xlu0 %4527
        %v4529 = vsel %vm455, %v4431, 0.0
        %4530 = vadd.xlane.f32.xlu0 %v4529
        %v4531 = vpop.xlane.xlu0 %4530
        %v4532 = vsel %vm455, %v4433, 0.0
        %4533 = vadd.xlane.f32.xlu0 %v4532
        %v4534 = vpop.xlane.xlu0 %4533
        %v4535 = vsel %vm455, %v4435, 0.0
        %4536 = vadd.xlane.f32.xlu0 %v4535
        %v4537 = vpop.xlane.xlu0 %4536
        %v4538 = vsel %vm455, %v4437, 0.0
        %4539 = vadd.xlane.f32.xlu0 %v4538
        %v4540 = vpop.xlane.xlu0 %4539
        %v4541 = vsel %vm455, %v4439, 0.0
        %4542 = vadd.xlane.f32.xlu0 %v4541
        %v4543 = vpop.xlane.xlu0 %4542
        %v4544 = vsel %vm455, %v4441, 0.0
        %4545 = vadd.xlane.f32.xlu0 %v4544
        %v4546 = vpop.xlane.xlu0 %4545
        %v4547 = vsel %vm455, %v4443, 0.0
        %4548 = vadd.xlane.f32.xlu0 %v4547
        %v4549 = vpop.xlane.xlu0 %4548
        %v4550 = vsel %vm455, %v4445, 0.0
        %4551 = vadd.xlane.f32.xlu0 %v4550
        %v4552 = vpop.xlane.xlu0 %4551
        %v4553 = vsel %vm455, %v4447, 0.0
        %4554 = vadd.xlane.f32.xlu0 %v4553
        %v4555 = vpop.xlane.xlu0 %4554
        %v4556 = vsel %vm455, %v4449, 0.0
        %4557 = vadd.xlane.f32.xlu0 %v4556
        %v4558 = vpop.xlane.xlu0 %4557
        %v4559 = vsel %vm455, %v4451, 0.0
        %4560 = vadd.xlane.f32.xlu0 %v4559
        %v4561 = vpop.xlane.xlu0 %4560
        %v4562 = vsel %vm455, %v4453, 0.0
        %4563 = vadd.xlane.f32.xlu0 %v4562
        %v4564 = vpop.xlane.xlu0 %4563
        %v4565 = vsel %vm455, %v4455, 0.0
        %4566 = vadd.xlane.f32.xlu0 %v4565
        %v4567 = vpop.xlane.xlu0 %4566
        %v4568 = vsel %vm455, %v4457, 0.0
        %4569 = vadd.xlane.f32.xlu0 %v4568
        %v4570 = vpop.xlane.xlu0 %4569
        %v4571 = vsel %vm455, %v4459, 0.0
        %4572 = vadd.xlane.f32.xlu0 %v4571
        %v4573 = vpop.xlane.xlu0 %4572
        %v4574 = vsel %vm455, %v4461, 0.0
        %4575 = vadd.xlane.f32.xlu0 %v4574
        %v4576 = vpop.xlane.xlu0 %4575
        %v4577 = vsel %vm455, %v4463, 0.0
        %4578 = vadd.xlane.f32.xlu0 %v4577
        %v4579 = vpop.xlane.xlu0 %4578
        %v4580 = vsel %vm455, %v4465, 0.0
        %4581 = vadd.xlane.f32.xlu0 %v4580
        %v4582 = vpop.xlane.xlu0 %4581
        %v4583 = vsel %vm455, %v4467, 0.0
        %4584 = vadd.xlane.f32.xlu0 %v4583
        %v4585 = vpop.xlane.xlu0 %4584
        %v4586 = vsel %vm455, %v4469, 0.0
        %4587 = vadd.xlane.f32.xlu0 %v4586
        %v4588 = vpop.xlane.xlu0 %4587
        %v4589 = vsel %vm455, %v4471, 0.0
        %4590 = vadd.xlane.f32.xlu0 %v4589
        %v4591 = vpop.xlane.xlu0 %4590
        %v4592 = vsel %vm455, %v4473, 0.0
        %4593 = vadd.xlane.f32.xlu0 %v4592
        %v4594 = vpop.xlane.xlu0 %4593
        %v4595 = vsel %vm455, %v4475, 0.0
        %4596 = vadd.xlane.f32.xlu0 %v4595
        %v4597 = vpop.xlane.xlu0 %4596
        %v4598 = vsel %vm455, %v4477, 0.0
        %4599 = vadd.xlane.f32.xlu0 %v4598
        %v4600 = vpop.xlane.xlu0 %4599
        %v4601 = vsel %vm455, %v4479, 0.0
        %4602 = vadd.xlane.f32.xlu0 %v4601
        %v4603 = vpop.xlane.xlu0 %4602
        %v4604 = vsel %vm455, %v4481, 0.0
        %4605 = vadd.xlane.f32.xlu0 %v4604
        %v4606 = vpop.xlane.xlu0 %4605
        %v4607 = vsel %vm455, %v4483, 0.0
        %4608 = vadd.xlane.f32.xlu0 %v4607
        %v4609 = vpop.xlane.xlu0 %4608
        %v4610 = vsel %vm455, %v4485, 0.0
        %4611 = vadd.xlane.f32.xlu0 %v4610
        %v4612 = vpop.xlane.xlu0 %4611
        %v4613 = vsel %vm455, %v4487, 0.0
        %4614 = vadd.xlane.f32.xlu0 %v4613
        %v4615 = vpop.xlane.xlu0 %4614
        %vm4616 = vcmp.eq.s32.totalorder %v951, 7
        %v4617 = vsel %vm4616, %v1116, 0.0
        %v4618 = vsel %vm4616, %v1117, 0.0
        %v4619 = vsel %vm4616, %v1118, 0.0
        %v4620 = vsel %vm4616, %v1119, 0.0
        %v4621 = vsel %vm4616, %v1120, 0.0
        %v4622 = vsel %vm4616, %v1121, 0.0
        %v4623 = vsel %vm4616, %v1122, 0.0
        %v4624 = vsel %vm4616, %v1123, 0.0
        %v4625 = vsel %vm4616, %v1124, 0.0
        %v4626 = vsel %vm4616, %v1125, 0.0
        %v4627 = vsel %vm4616, %v1126, 0.0
        %v4628 = vsel %vm4616, %v1127, 0.0
        %v4629 = vsel %vm4616, %v1128, 0.0
        %v4630 = vsel %vm4616, %v1129, 0.0
        %v4631 = vsel %vm4616, %v1130, 0.0
        %v4632 = vsel %vm4616, %v1131, 0.0
        %v4633 = vsel %vm4616, %v1132, 0.0
        %v4634 = vsel %vm4616, %v1133, 0.0
        %v4635 = vsel %vm4616, %v1134, 0.0
        %v4636 = vsel %vm4616, %v1135, 0.0
        %v4637 = vsel %vm4616, %v1136, 0.0
        %v4638 = vsel %vm4616, %v1137, 0.0
        %v4639 = vsel %vm4616, %v1138, 0.0
        %v4640 = vsel %vm4616, %v1139, 0.0
        %v4641 = vsel %vm4616, %v1140, 0.0
        %v4642 = vsel %vm4616, %v1141, 0.0
        %v4643 = vsel %vm4616, %v1142, 0.0
        %v4644 = vsel %vm4616, %v1143, 0.0
        %v4645 = vsel %vm4616, %v1144, 0.0
        %v4646 = vsel %vm4616, %v1145, 0.0
        %v4647 = vsel %vm4616, %v1146, 0.0
        %v4648 = vsel %vm4616, %v1147, 0.0
        %4649 = vadd.xlane.f32.xlu0 %v4617
        %v4650 = vpop.xlane.xlu0 %4649
        %4651 = vadd.xlane.f32.xlu0 %v4618
        %v4652 = vpop.xlane.xlu0 %4651
        %4653 = vadd.xlane.f32.xlu0 %v4619
        %v4654 = vpop.xlane.xlu0 %4653
        %4655 = vadd.xlane.f32.xlu0 %v4620
        %v4656 = vpop.xlane.xlu0 %4655
        %4657 = vadd.xlane.f32.xlu0 %v4621
        %v4658 = vpop.xlane.xlu0 %4657
        %4659 = vadd.xlane.f32.xlu0 %v4622
        %v4660 = vpop.xlane.xlu0 %4659
        %4661 = vadd.xlane.f32.xlu0 %v4623
        %v4662 = vpop.xlane.xlu0 %4661
        %4663 = vadd.xlane.f32.xlu0 %v4624
        %v4664 = vpop.xlane.xlu0 %4663
        %4665 = vadd.xlane.f32.xlu0 %v4625
        %v4666 = vpop.xlane.xlu0 %4665
        %4667 = vadd.xlane.f32.xlu0 %v4626
        %v4668 = vpop.xlane.xlu0 %4667
        %4669 = vadd.xlane.f32.xlu0 %v4627
        %v4670 = vpop.xlane.xlu0 %4669
        %4671 = vadd.xlane.f32.xlu0 %v4628
        %v4672 = vpop.xlane.xlu0 %4671
        %4673 = vadd.xlane.f32.xlu0 %v4629
        %v4674 = vpop.xlane.xlu0 %4673
        %4675 = vadd.xlane.f32.xlu0 %v4630
        %v4676 = vpop.xlane.xlu0 %4675
        %4677 = vadd.xlane.f32.xlu0 %v4631
        %v4678 = vpop.xlane.xlu0 %4677
        %4679 = vadd.xlane.f32.xlu0 %v4632
        %v4680 = vpop.xlane.xlu0 %4679
        %4681 = vadd.xlane.f32.xlu0 %v4633
        %v4682 = vpop.xlane.xlu0 %4681
        %4683 = vadd.xlane.f32.xlu0 %v4634
        %v4684 = vpop.xlane.xlu0 %4683
        %4685 = vadd.xlane.f32.xlu0 %v4635
        %v4686 = vpop.xlane.xlu0 %4685
        %4687 = vadd.xlane.f32.xlu0 %v4636
        %v4688 = vpop.xlane.xlu0 %4687
        %4689 = vadd.xlane.f32.xlu0 %v4637
        %v4690 = vpop.xlane.xlu0 %4689
        %4691 = vadd.xlane.f32.xlu0 %v4638
        %v4692 = vpop.xlane.xlu0 %4691
        %4693 = vadd.xlane.f32.xlu0 %v4639
        %v4694 = vpop.xlane.xlu0 %4693
        %4695 = vadd.xlane.f32.xlu0 %v4640
        %v4696 = vpop.xlane.xlu0 %4695
        %4697 = vadd.xlane.f32.xlu0 %v4641
        %v4698 = vpop.xlane.xlu0 %4697
        %4699 = vadd.xlane.f32.xlu0 %v4642
        %v4700 = vpop.xlane.xlu0 %4699
        %4701 = vadd.xlane.f32.xlu0 %v4643
        %v4702 = vpop.xlane.xlu0 %4701
        %4703 = vadd.xlane.f32.xlu0 %v4644
        %v4704 = vpop.xlane.xlu0 %4703
        %4705 = vadd.xlane.f32.xlu0 %v4645
        %v4706 = vpop.xlane.xlu0 %4705
        %4707 = vadd.xlane.f32.xlu0 %v4646
        %v4708 = vpop.xlane.xlu0 %4707
        %4709 = vadd.xlane.f32.xlu0 %v4647
        %v4710 = vpop.xlane.xlu0 %4709
        %4711 = vadd.xlane.f32.xlu0 %v4648
        %v4712 = vpop.xlane.xlu0 %4711
        %v4713 = vmax.f32 %v4522, 0.0
        %v4714 = vmax.f32 %v4525, 0.0
        %v4715 = vmax.f32 %v4528, 0.0
        %v4716 = vmax.f32 %v4531, 0.0
        %v4717 = vmax.f32 %v4534, 0.0
        %v4718 = vmax.f32 %v4537, 0.0
        %v4719 = vmax.f32 %v4540, 0.0
        %v4720 = vmax.f32 %v4543, 0.0
        %v4721 = vmax.f32 %v4546, 0.0
        %v4722 = vmax.f32 %v4549, 0.0
        %v4723 = vmax.f32 %v4552, 0.0
        %v4724 = vmax.f32 %v4555, 0.0
        %v4725 = vmax.f32 %v4558, 0.0
        %v4726 = vmax.f32 %v4561, 0.0
        %v4727 = vmax.f32 %v4564, 0.0
        %v4728 = vmax.f32 %v4567, 0.0
        %v4729 = vmax.f32 %v4570, 0.0
        %v4730 = vmax.f32 %v4573, 0.0
        %v4731 = vmax.f32 %v4576, 0.0
        %v4732 = vmax.f32 %v4579, 0.0
        %v4733 = vmax.f32 %v4582, 0.0
        %v4734 = vmax.f32 %v4585, 0.0
        %v4735 = vmax.f32 %v4588, 0.0
        %v4736 = vmax.f32 %v4591, 0.0
        %v4737 = vmax.f32 %v4594, 0.0
        %v4738 = vmax.f32 %v4597, 0.0
        %v4739 = vmax.f32 %v4600, 0.0
        %v4740 = vmax.f32 %v4603, 0.0
        %v4741 = vmax.f32 %v4606, 0.0
        %v4742 = vmax.f32 %v4609, 0.0
        %v4743 = vmax.f32 %v4612, 0.0
        %v4744 = vmax.f32 %v4615, 0.0
        %v4745 = vmul.f32 %v4522, %v4650
        %v4746 = vmul.f32 %v4525, %v4652
        %v4747 = vmul.f32 %v4528, %v4654
        %v4748 = vmul.f32 %v4531, %v4656
        %v4749 = vmul.f32 %v4534, %v4658
        %v4750 = vmul.f32 %v4537, %v4660
        %v4751 = vmul.f32 %v4540, %v4662
        %v4752 = vmul.f32 %v4543, %v4664
        %v4753 = vmul.f32 %v4546, %v4666
        %v4754 = vmul.f32 %v4549, %v4668
        %v4755 = vmul.f32 %v4552, %v4670
        %v4756 = vmul.f32 %v4555, %v4672
        %v4757 = vmul.f32 %v4558, %v4674
        %v4758 = vmul.f32 %v4561, %v4676
        %v4759 = vmul.f32 %v4564, %v4678
        %v4760 = vmul.f32 %v4567, %v4680
        %v4761 = vmul.f32 %v4570, %v4682
        %v4762 = vmul.f32 %v4573, %v4684
        %v4763 = vmul.f32 %v4576, %v4686
        %v4764 = vmul.f32 %v4579, %v4688
        %v4765 = vmul.f32 %v4582, %v4690
        %v4766 = vmul.f32 %v4585, %v4692
        %v4767 = vmul.f32 %v4588, %v4694
        %v4768 = vmul.f32 %v4591, %v4696
        %v4769 = vmul.f32 %v4594, %v4698
        %v4770 = vmul.f32 %v4597, %v4700
        %v4771 = vmul.f32 %v4600, %v4702
        %v4772 = vmul.f32 %v4603, %v4704
        %v4773 = vmul.f32 %v4606, %v4706
        %v4774 = vmul.f32 %v4609, %v4708
        %v4775 = vmul.f32 %v4612, %v4710
        %v4776 = vmul.f32 %v4615, %v4712
        %v4777 = vsub.f32 %v4713, %v4745
        %v4778 = vsub.f32 %v4714, %v4746
        %v4779 = vsub.f32 %v4715, %v4747
        %v4780 = vsub.f32 %v4716, %v4748
        %v4781 = vsub.f32 %v4717, %v4749
        %v4782 = vsub.f32 %v4718, %v4750
        %v4783 = vsub.f32 %v4719, %v4751
        %v4784 = vsub.f32 %v4720, %v4752
        %v4785 = vsub.f32 %v4721, %v4753
        %v4786 = vsub.f32 %v4722, %v4754
        %v4787 = vsub.f32 %v4723, %v4755
        %v4788 = vsub.f32 %v4724, %v4756
        %v4789 = vsub.f32 %v4725, %v4757
        %v4790 = vsub.f32 %v4726, %v4758
        %v4791 = vsub.f32 %v4727, %v4759
        %v4792 = vsub.f32 %v4728, %v4760
        %v4793 = vsub.f32 %v4729, %v4761
        %v4794 = vsub.f32 %v4730, %v4762
        %v4795 = vsub.f32 %v4731, %v4763
        %v4796 = vsub.f32 %v4732, %v4764
        %v4797 = vsub.f32 %v4733, %v4765
        %v4798 = vsub.f32 %v4734, %v4766
        %v4799 = vsub.f32 %v4735, %v4767
        %v4800 = vsub.f32 %v4736, %v4768
        %v4801 = vsub.f32 %v4737, %v4769
        %v4802 = vsub.f32 %v4738, %v4770
        %v4803 = vsub.f32 %v4739, %v4771
        %v4804 = vsub.f32 %v4740, %v4772
        %v4805 = vsub.f32 %v4741, %v4773
        %v4806 = vsub.f32 %v4742, %v4774
        %v4807 = vsub.f32 %v4743, %v4775
        %v4808 = vsub.f32 %v4744, %v4776
        %v4809 = vand.u32 2147483647, %v4522
        %v4810 = vand.u32 2147483647, %v4525
        %v4811 = vand.u32 2147483647, %v4528
        %v4812 = vand.u32 2147483647, %v4531
        %v4813 = vand.u32 2147483647, %v4534
        %v4814 = vand.u32 2147483647, %v4537
        %v4815 = vand.u32 2147483647, %v4540
        %v4816 = vand.u32 2147483647, %v4543
        %v4817 = vand.u32 2147483647, %v4546
        %v4818 = vand.u32 2147483647, %v4549
        %v4819 = vand.u32 2147483647, %v4552
        %v4820 = vand.u32 2147483647, %v4555
        %v4821 = vand.u32 2147483647, %v4558
        %v4822 = vand.u32 2147483647, %v4561
        %v4823 = vand.u32 2147483647, %v4564
        %v4824 = vand.u32 2147483647, %v4567
        %v4825 = vand.u32 2147483647, %v4570
        %v4826 = vand.u32 2147483647, %v4573
        %v4827 = vand.u32 2147483647, %v4576
        %v4828 = vand.u32 2147483647, %v4579
        %v4829 = vand.u32 2147483647, %v4582
        %v4830 = vand.u32 2147483647, %v4585
        %v4831 = vand.u32 2147483647, %v4588
        %v4832 = vand.u32 2147483647, %v4591
        %v4833 = vand.u32 2147483647, %v4594
        %v4834 = vand.u32 2147483647, %v4597
        %v4835 = vand.u32 2147483647, %v4600
        %v4836 = vand.u32 2147483647, %v4603
        %v4837 = vand.u32 2147483647, %v4606
        %v4838 = vand.u32 2147483647, %v4609
        %v4839 = vand.u32 2147483647, %v4612
        %v4840 = vand.u32 2147483647, %v4615
        %v4841 = vsub.f32 0.0, %v4809
        %v4842 = vsub.f32 0.0, %v4810
        %v4843 = vsub.f32 0.0, %v4811
        %v4844 = vsub.f32 0.0, %v4812
        %v4845 = vsub.f32 0.0, %v4813
        %v4846 = vsub.f32 0.0, %v4814
        %v4847 = vsub.f32 0.0, %v4815
        %v4848 = vsub.f32 0.0, %v4816
        %v4849 = vsub.f32 0.0, %v4817
        %v4850 = vsub.f32 0.0, %v4818
        %v4851 = vsub.f32 0.0, %v4819
        %v4852 = vsub.f32 0.0, %v4820
        %v4853 = vsub.f32 0.0, %v4821
        %v4854 = vsub.f32 0.0, %v4822
        %v4855 = vsub.f32 0.0, %v4823
        %v4856 = vsub.f32 0.0, %v4824
        %v4857 = vsub.f32 0.0, %v4825
        %v4858 = vsub.f32 0.0, %v4826
        %v4859 = vsub.f32 0.0, %v4827
        %v4860 = vsub.f32 0.0, %v4828
        %v4861 = vsub.f32 0.0, %v4829
        %v4862 = vsub.f32 0.0, %v4830
        %v4863 = vsub.f32 0.0, %v4831
        %v4864 = vsub.f32 0.0, %v4832
        %v4865 = vsub.f32 0.0, %v4833
        %v4866 = vsub.f32 0.0, %v4834
        %v4867 = vsub.f32 0.0, %v4835
        %v4868 = vsub.f32 0.0, %v4836
        %v4869 = vsub.f32 0.0, %v4837
        %v4870 = vsub.f32 0.0, %v4838
        %v4871 = vsub.f32 0.0, %v4839
        %v4872 = vsub.f32 0.0, %v4840
        %v4873 = vmul.f32 %v4841, 1.442695
        %v4874 = vpow.pop %v4873
        %v4875 = vmul.f32 %v4842, 1.442695
        %v4876 = vpow.pop %v4875
        %v4877 = vmul.f32 %v4843, 1.442695
        %v4878 = vpow.pop %v4877
        %v4879 = vmul.f32 %v4844, 1.442695
        %v4880 = vpow.pop %v4879
        %v4881 = vmul.f32 %v4845, 1.442695
        %v4882 = vpow.pop %v4881
        %v4883 = vmul.f32 %v4846, 1.442695
        %v4884 = vpow.pop %v4883
        %v4885 = vmul.f32 %v4847, 1.442695
        %v4886 = vpow.pop %v4885
        %v4887 = vmul.f32 %v4848, 1.442695
        %v4888 = vpow.pop %v4887
        %v4889 = vmul.f32 %v4849, 1.442695
        %v4890 = vpow.pop %v4889
        %v4891 = vmul.f32 %v4850, 1.442695
        %v4892 = vpow.pop %v4891
        %v4893 = vmul.f32 %v4851, 1.442695
        %v4894 = vpow.pop %v4893
        %v4895 = vmul.f32 %v4852, 1.442695
        %v4896 = vpow.pop %v4895
        %v4897 = vmul.f32 %v4853, 1.442695
        %v4898 = vpow.pop %v4897
        %v4899 = vmul.f32 %v4854, 1.442695
        %v4900 = vpow.pop %v4899
        %v4901 = vmul.f32 %v4855, 1.442695
        %v4902 = vpow.pop %v4901
        %v4903 = vmul.f32 %v4856, 1.442695
        %v4904 = vpow.pop %v4903
        %v4905 = vmul.f32 %v4857, 1.442695
        %v4906 = vpow.pop %v4905
        %v4907 = vmul.f32 %v4858, 1.442695
        %v4908 = vpow.pop %v4907
        %v4909 = vmul.f32 %v4859, 1.442695
        %v4910 = vpow.pop %v4909
        %v4911 = vmul.f32 %v4860, 1.442695
        %v4912 = vpow.pop %v4911
        %v4913 = vmul.f32 %v4861, 1.442695
        %v4914 = vpow.pop %v4913
        %v4915 = vmul.f32 %v4862, 1.442695
        %v4916 = vpow.pop %v4915
        %v4917 = vmul.f32 %v4863, 1.442695
        %v4918 = vpow.pop %v4917
        %v4919 = vmul.f32 %v4864, 1.442695
        %v4920 = vpow.pop %v4919
        %v4921 = vmul.f32 %v4865, 1.442695
        %v4922 = vpow.pop %v4921
        %v4923 = vmul.f32 %v4866, 1.442695
        %v4924 = vpow.pop %v4923
        %v4925 = vmul.f32 %v4867, 1.442695
        %v4926 = vpow.pop %v4925
        %v4927 = vmul.f32 %v4868, 1.442695
        %v4928 = vpow.pop %v4927
        %v4929 = vmul.f32 %v4869, 1.442695
        %v4930 = vpow.pop %v4929
        %v4931 = vmul.f32 %v4870, 1.442695
        %v4932 = vpow.pop %v4931
        %v4933 = vmul.f32 %v4871, 1.442695
        %v4934 = vpow.pop %v4933
        %v4935 = vmul.f32 %v4872, 1.442695
        %v4936 = vpow.pop %v4935
        %v4937 = vadd.f32 %v4874, 1.0
        %v4938 = vlog2.pop %v4937
        %v4939 = vmul.f32 %v4938, 0.6931472
        %v4940 = vmul.f32 -0.5, %v4874
        %v4941 = vadd.f32 %v4940, 1.0
        %v4942 = vmul.f32 %v4941, %v4874
        %v4943 = vand.u32 2147483647, %v4874
        %vm4944 = vcmp.lt.f32.partialorder %v4943, 0.0004427343
        %v4945 = vsel %vm4944, %v4942, %v4939
        %v4946 = vadd.f32 %v4876, 1.0
        %v4947 = vlog2.pop %v4946
        %v4948 = vmul.f32 %v4947, 0.6931472
        %v4949 = vmul.f32 -0.5, %v4876
        %v4950 = vadd.f32 %v4949, 1.0
        %v4951 = vmul.f32 %v4950, %v4876
        %v4952 = vand.u32 2147483647, %v4876
        %vm4953 = vcmp.lt.f32.partialorder %v4952, 0.0004427343
        %v4954 = vsel %vm4953, %v4951, %v4948
        %v4955 = vadd.f32 %v4878, 1.0
        %v4956 = vlog2.pop %v4955
        %v4957 = vmul.f32 %v4956, 0.6931472
        %v4958 = vmul.f32 -0.5, %v4878
        %v4959 = vadd.f32 %v4958, 1.0
        %v4960 = vmul.f32 %v4959, %v4878
        %v4961 = vand.u32 2147483647, %v4878
        %vm4962 = vcmp.lt.f32.partialorder %v4961, 0.0004427343
        %v4963 = vsel %vm4962, %v4960, %v4957
        %v4964 = vadd.f32 %v4880, 1.0
        %v4965 = vlog2.pop %v4964
        %v4966 = vmul.f32 %v4965, 0.6931472
        %v4967 = vmul.f32 -0.5, %v4880
        %v4968 = vadd.f32 %v4967, 1.0
        %v4969 = vmul.f32 %v4968, %v4880
        %v4970 = vand.u32 2147483647, %v4880
        %vm4971 = vcmp.lt.f32.partialorder %v4970, 0.0004427343
        %v4972 = vsel %vm4971, %v4969, %v4966
        %v4973 = vadd.f32 %v4882, 1.0
        %v4974 = vlog2.pop %v4973
        %v4975 = vmul.f32 %v4974, 0.6931472
        %v4976 = vmul.f32 -0.5, %v4882
        %v4977 = vadd.f32 %v4976, 1.0
        %v4978 = vmul.f32 %v4977, %v4882
        %v4979 = vand.u32 2147483647, %v4882
        %vm4980 = vcmp.lt.f32.partialorder %v4979, 0.0004427343
        %v4981 = vsel %vm4980, %v4978, %v4975
        %v4982 = vadd.f32 %v4884, 1.0
        %v4983 = vlog2.pop %v4982
        %v4984 = vmul.f32 %v4983, 0.6931472
        %v4985 = vmul.f32 -0.5, %v4884
        %v4986 = vadd.f32 %v4985, 1.0
        %v4987 = vmul.f32 %v4986, %v4884
        %v4988 = vand.u32 2147483647, %v4884
        %vm4989 = vcmp.lt.f32.partialorder %v4988, 0.0004427343
        %v4990 = vsel %vm4989, %v4987, %v4984
        %v4991 = vadd.f32 %v4886, 1.0
        %v4992 = vlog2.pop %v4991
        %v4993 = vmul.f32 %v4992, 0.6931472
        %v4994 = vmul.f32 -0.5, %v4886
        %v4995 = vadd.f32 %v4994, 1.0
        %v4996 = vmul.f32 %v4995, %v4886
        %v4997 = vand.u32 2147483647, %v4886
        %vm4998 = vcmp.lt.f32.partialorder %v4997, 0.0004427343
        %v4999 = vsel %vm4998, %v4996, %v4993
        %v5000 = vadd.f32 %v4888, 1.0
        %v5001 = vlog2.pop %v5000
        %v5002 = vmul.f32 %v5001, 0.6931472
        %v5003 = vmul.f32 -0.5, %v4888
        %v5004 = vadd.f32 %v5003, 1.0
        %v5005 = vmul.f32 %v5004, %v4888
        %v5006 = vand.u32 2147483647, %v4888
        %vm5007 = vcmp.lt.f32.partialorder %v5006, 0.0004427343
        %v5008 = vsel %vm5007, %v5005, %v5002
        %v5009 = vadd.f32 %v4890, 1.0
        %v5010 = vlog2.pop %v5009
        %v5011 = vmul.f32 %v5010, 0.6931472
        %v5012 = vmul.f32 -0.5, %v4890
        %v5013 = vadd.f32 %v5012, 1.0
        %v5014 = vmul.f32 %v5013, %v4890
        %v5015 = vand.u32 2147483647, %v4890
        %vm5016 = vcmp.lt.f32.partialorder %v5015, 0.0004427343
        %v5017 = vsel %vm5016, %v5014, %v5011
        %v5018 = vadd.f32 %v4892, 1.0
        %v5019 = vlog2.pop %v5018
        %v5020 = vmul.f32 %v5019, 0.6931472
        %v5021 = vmul.f32 -0.5, %v4892
        %v5022 = vadd.f32 %v5021, 1.0
        %v5023 = vmul.f32 %v5022, %v4892
        %v5024 = vand.u32 2147483647, %v4892
        %vm5025 = vcmp.lt.f32.partialorder %v5024, 0.0004427343
        %v5026 = vsel %vm5025, %v5023, %v5020
        %v5027 = vadd.f32 %v4894, 1.0
        %v5028 = vlog2.pop %v5027
        %v5029 = vmul.f32 %v5028, 0.6931472
        %v5030 = vmul.f32 -0.5, %v4894
        %v5031 = vadd.f32 %v5030, 1.0
        %v5032 = vmul.f32 %v5031, %v4894
        %v5033 = vand.u32 2147483647, %v4894
        %vm5034 = vcmp.lt.f32.partialorder %v5033, 0.0004427343
        %v5035 = vsel %vm5034, %v5032, %v5029
        %v5036 = vadd.f32 %v4896, 1.0
        %v5037 = vlog2.pop %v5036
        %v5038 = vmul.f32 %v5037, 0.6931472
        %v5039 = vmul.f32 -0.5, %v4896
        %v5040 = vadd.f32 %v5039, 1.0
        %v5041 = vmul.f32 %v5040, %v4896
        %v5042 = vand.u32 2147483647, %v4896
        %vm5043 = vcmp.lt.f32.partialorder %v5042, 0.0004427343
        %v5044 = vsel %vm5043, %v5041, %v5038
        %v5045 = vadd.f32 %v4898, 1.0
        %v5046 = vlog2.pop %v5045
        %v5047 = vmul.f32 %v5046, 0.6931472
        %v5048 = vmul.f32 -0.5, %v4898
        %v5049 = vadd.f32 %v5048, 1.0
        %v5050 = vmul.f32 %v5049, %v4898
        %v5051 = vand.u32 2147483647, %v4898
        %vm5052 = vcmp.lt.f32.partialorder %v5051, 0.0004427343
        %v5053 = vsel %vm5052, %v5050, %v5047
        %v5054 = vadd.f32 %v4900, 1.0
        %v5055 = vlog2.pop %v5054
        %v5056 = vmul.f32 %v5055, 0.6931472
        %v5057 = vmul.f32 -0.5, %v4900
        %v5058 = vadd.f32 %v5057, 1.0
        %v5059 = vmul.f32 %v5058, %v4900
        %v5060 = vand.u32 2147483647, %v4900
        %vm5061 = vcmp.lt.f32.partialorder %v5060, 0.0004427343
        %v5062 = vsel %vm5061, %v5059, %v5056
        %v5063 = vadd.f32 %v4902, 1.0
        %v5064 = vlog2.pop %v5063
        %v5065 = vmul.f32 %v5064, 0.6931472
        %v5066 = vmul.f32 -0.5, %v4902
        %v5067 = vadd.f32 %v5066, 1.0
        %v5068 = vmul.f32 %v5067, %v4902
        %v5069 = vand.u32 2147483647, %v4902
        %vm5070 = vcmp.lt.f32.partialorder %v5069, 0.0004427343
        %v5071 = vsel %vm5070, %v5068, %v5065
        %v5072 = vadd.f32 %v4904, 1.0
        %v5073 = vlog2.pop %v5072
        %v5074 = vmul.f32 %v5073, 0.6931472
        %v5075 = vmul.f32 -0.5, %v4904
        %v5076 = vadd.f32 %v5075, 1.0
        %v5077 = vmul.f32 %v5076, %v4904
        %v5078 = vand.u32 2147483647, %v4904
        %vm5079 = vcmp.lt.f32.partialorder %v5078, 0.0004427343
        %v5080 = vsel %vm5079, %v5077, %v5074
        %v5081 = vadd.f32 %v4906, 1.0
        %v5082 = vlog2.pop %v5081
        %v5083 = vmul.f32 %v5082, 0.6931472
        %v5084 = vmul.f32 -0.5, %v4906
        %v5085 = vadd.f32 %v5084, 1.0
        %v5086 = vmul.f32 %v5085, %v4906
        %v5087 = vand.u32 2147483647, %v4906
        %vm5088 = vcmp.lt.f32.partialorder %v5087, 0.0004427343
        %v5089 = vsel %vm5088, %v5086, %v5083
        %v5090 = vadd.f32 %v4908, 1.0
        %v5091 = vlog2.pop %v5090
        %v5092 = vmul.f32 %v5091, 0.6931472
        %v5093 = vmul.f32 -0.5, %v4908
        %v5094 = vadd.f32 %v5093, 1.0
        %v5095 = vmul.f32 %v5094, %v4908
        %v5096 = vand.u32 2147483647, %v4908
        %vm5097 = vcmp.lt.f32.partialorder %v5096, 0.0004427343
        %v5098 = vsel %vm5097, %v5095, %v5092
        %v5099 = vadd.f32 %v4910, 1.0
        %v5100 = vlog2.pop %v5099
        %v5101 = vmul.f32 %v5100, 0.6931472
        %v5102 = vmul.f32 -0.5, %v4910
        %v5103 = vadd.f32 %v5102, 1.0
        %v5104 = vmul.f32 %v5103, %v4910
        %v5105 = vand.u32 2147483647, %v4910
        %vm5106 = vcmp.lt.f32.partialorder %v5105, 0.0004427343
        %v5107 = vsel %vm5106, %v5104, %v5101
        %v5108 = vadd.f32 %v4912, 1.0
        %v5109 = vlog2.pop %v5108
        %v5110 = vmul.f32 %v5109, 0.6931472
        %v5111 = vmul.f32 -0.5, %v4912
        %v5112 = vadd.f32 %v5111, 1.0
        %v5113 = vmul.f32 %v5112, %v4912
        %v5114 = vand.u32 2147483647, %v4912
        %vm5115 = vcmp.lt.f32.partialorder %v5114, 0.0004427343
        %v5116 = vsel %vm5115, %v5113, %v5110
        %v5117 = vadd.f32 %v4914, 1.0
        %v5118 = vlog2.pop %v5117
        %v5119 = vmul.f32 %v5118, 0.6931472
        %v5120 = vmul.f32 -0.5, %v4914
        %v5121 = vadd.f32 %v5120, 1.0
        %v5122 = vmul.f32 %v5121, %v4914
        %v5123 = vand.u32 2147483647, %v4914
        %vm5124 = vcmp.lt.f32.partialorder %v5123, 0.0004427343
        %v5125 = vsel %vm5124, %v5122, %v5119
        %v5126 = vadd.f32 %v4916, 1.0
        %v5127 = vlog2.pop %v5126
        %v5128 = vmul.f32 %v5127, 0.6931472
        %v5129 = vmul.f32 -0.5, %v4916
        %v5130 = vadd.f32 %v5129, 1.0
        %v5131 = vmul.f32 %v5130, %v4916
        %v5132 = vand.u32 2147483647, %v4916
        %vm5133 = vcmp.lt.f32.partialorder %v5132, 0.0004427343
        %v5134 = vsel %vm5133, %v5131, %v5128
        %v5135 = vadd.f32 %v4918, 1.0
        %v5136 = vlog2.pop %v5135
        %v5137 = vmul.f32 %v5136, 0.6931472
        %v5138 = vmul.f32 -0.5, %v4918
        %v5139 = vadd.f32 %v5138, 1.0
        %v5140 = vmul.f32 %v5139, %v4918
        %v5141 = vand.u32 2147483647, %v4918
        %vm5142 = vcmp.lt.f32.partialorder %v5141, 0.0004427343
        %v5143 = vsel %vm5142, %v5140, %v5137
        %v5144 = vadd.f32 %v4920, 1.0
        %v5145 = vlog2.pop %v5144
        %v5146 = vmul.f32 %v5145, 0.6931472
        %v5147 = vmul.f32 -0.5, %v4920
        %v5148 = vadd.f32 %v5147, 1.0
        %v5149 = vmul.f32 %v5148, %v4920
        %v5150 = vand.u32 2147483647, %v4920
        %vm5151 = vcmp.lt.f32.partialorder %v5150, 0.0004427343
        %v5152 = vsel %vm5151, %v5149, %v5146
        %v5153 = vadd.f32 %v4922, 1.0
        %v5154 = vlog2.pop %v5153
        %v5155 = vmul.f32 %v5154, 0.6931472
        %v5156 = vmul.f32 -0.5, %v4922
        %v5157 = vadd.f32 %v5156, 1.0
        %v5158 = vmul.f32 %v5157, %v4922
        %v5159 = vand.u32 2147483647, %v4922
        %vm5160 = vcmp.lt.f32.partialorder %v5159, 0.0004427343
        %v5161 = vsel %vm5160, %v5158, %v5155
        %v5162 = vadd.f32 %v4924, 1.0
        %v5163 = vlog2.pop %v5162
        %v5164 = vmul.f32 %v5163, 0.6931472
        %v5165 = vmul.f32 -0.5, %v4924
        %v5166 = vadd.f32 %v5165, 1.0
        %v5167 = vmul.f32 %v5166, %v4924
        %v5168 = vand.u32 2147483647, %v4924
        %vm5169 = vcmp.lt.f32.partialorder %v5168, 0.0004427343
        %v5170 = vsel %vm5169, %v5167, %v5164
        %v5171 = vadd.f32 %v4926, 1.0
        %v5172 = vlog2.pop %v5171
        %v5173 = vmul.f32 %v5172, 0.6931472
        %v5174 = vmul.f32 -0.5, %v4926
        %v5175 = vadd.f32 %v5174, 1.0
        %v5176 = vmul.f32 %v5175, %v4926
        %v5177 = vand.u32 2147483647, %v4926
        %vm5178 = vcmp.lt.f32.partialorder %v5177, 0.0004427343
        %v5179 = vsel %vm5178, %v5176, %v5173
        %v5180 = vadd.f32 %v4928, 1.0
        %v5181 = vlog2.pop %v5180
        %v5182 = vmul.f32 %v5181, 0.6931472
        %v5183 = vmul.f32 -0.5, %v4928
        %v5184 = vadd.f32 %v5183, 1.0
        %v5185 = vmul.f32 %v5184, %v4928
        %v5186 = vand.u32 2147483647, %v4928
        %vm5187 = vcmp.lt.f32.partialorder %v5186, 0.0004427343
        %v5188 = vsel %vm5187, %v5185, %v5182
        %v5189 = vadd.f32 %v4930, 1.0
        %v5190 = vlog2.pop %v5189
        %v5191 = vmul.f32 %v5190, 0.6931472
        %v5192 = vmul.f32 -0.5, %v4930
        %v5193 = vadd.f32 %v5192, 1.0
        %v5194 = vmul.f32 %v5193, %v4930
        %v5195 = vand.u32 2147483647, %v4930
        %vm5196 = vcmp.lt.f32.partialorder %v5195, 0.0004427343
        %v5197 = vsel %vm5196, %v5194, %v5191
        %v5198 = vadd.f32 %v4932, 1.0
        %v5199 = vlog2.pop %v5198
        %v5200 = vmul.f32 %v5199, 0.6931472
        %v5201 = vmul.f32 -0.5, %v4932
        %v5202 = vadd.f32 %v5201, 1.0
        %v5203 = vmul.f32 %v5202, %v4932
        %v5204 = vand.u32 2147483647, %v4932
        %vm5205 = vcmp.lt.f32.partialorder %v5204, 0.0004427343
        %v5206 = vsel %vm5205, %v5203, %v5200
        %v5207 = vadd.f32 %v4934, 1.0
        %v5208 = vlog2.pop %v5207
        %v5209 = vmul.f32 %v5208, 0.6931472
        %v5210 = vmul.f32 -0.5, %v4934
        %v5211 = vadd.f32 %v5210, 1.0
        %v5212 = vmul.f32 %v5211, %v4934
        %v5213 = vand.u32 2147483647, %v4934
        %vm5214 = vcmp.lt.f32.partialorder %v5213, 0.0004427343
        %v5215 = vsel %vm5214, %v5212, %v5209
        %v5216 = vadd.f32 %v4936, 1.0
        %v5217 = vlog2.pop %v5216
        %v5218 = vmul.f32 %v5217, 0.6931472
        %v5219 = vmul.f32 -0.5, %v4936
        %v5220 = vadd.f32 %v5219, 1.0
        %v5221 = vmul.f32 %v5220, %v4936
        %v5222 = vand.u32 2147483647, %v4936
        %vm5223 = vcmp.lt.f32.partialorder %v5222, 0.0004427343
        %v5224 = vsel %vm5223, %v5221, %v5218
        %v5225 = vadd.f32 %v4777, %v4945
        %v5226 = vadd.f32 %v4778, %v4954
        %v5227 = vadd.f32 %v4779, %v4963
        %v5228 = vadd.f32 %v4780, %v4972
        %v5229 = vadd.f32 %v4781, %v4981
        %v5230 = vadd.f32 %v4782, %v4990
        %v5231 = vadd.f32 %v4783, %v4999
        %v5232 = vadd.f32 %v4784, %v5008
        %v5233 = vadd.f32 %v4785, %v5017
        %v5234 = vadd.f32 %v4786, %v5026
        %v5235 = vadd.f32 %v4787, %v5035
        %v5236 = vadd.f32 %v4788, %v5044
        %v5237 = vadd.f32 %v4789, %v5053
        %v5238 = vadd.f32 %v4790, %v5062
        %v5239 = vadd.f32 %v4791, %v5071
        %v5240 = vadd.f32 %v4792, %v5080
        %v5241 = vadd.f32 %v4793, %v5089
        %v5242 = vadd.f32 %v4794, %v5098
        %v5243 = vadd.f32 %v4795, %v5107
        %v5244 = vadd.f32 %v4796, %v5116
        %v5245 = vadd.f32 %v4797, %v5125
        %v5246 = vadd.f32 %v4798, %v5134
        %v5247 = vadd.f32 %v4799, %v5143
        %v5248 = vadd.f32 %v4800, %v5152
        %v5249 = vadd.f32 %v4801, %v5161
        %v5250 = vadd.f32 %v4802, %v5170
        %v5251 = vadd.f32 %v4803, %v5179
        %v5252 = vadd.f32 %v4804, %v5188
        %v5253 = vadd.f32 %v4805, %v5197
        %v5254 = vadd.f32 %v4806, %v5206
        %v5255 = vadd.f32 %v4807, %v5215
        %v5256 = vadd.f32 %v4808, %v5224
        %v5257 = vsel %vm1341, %v5225, 0.0
        %v5258 = vsel %vm1341, %v5226, 0.0
        %v5259 = vadd.f32 %v5257, %v5258
        %v5260 = vsel %vm1341, %v5227, 0.0
        %v5261 = vadd.f32 %v5259, %v5260
        %v5262 = vsel %vm1341, %v5228, 0.0
        %v5263 = vadd.f32 %v5261, %v5262
        %v5264 = vsel %vm1341, %v5229, 0.0
        %v5265 = vadd.f32 %v5263, %v5264
        %v5266 = vsel %vm1341, %v5230, 0.0
        %v5267 = vadd.f32 %v5265, %v5266
        %v5268 = vsel %vm1341, %v5231, 0.0
        %v5269 = vadd.f32 %v5267, %v5268
        %v5270 = vsel %vm1341, %v5232, 0.0
        %v5271 = vadd.f32 %v5269, %v5270
        %v5272 = vsel %vm1341, %v5233, 0.0
        %v5273 = vadd.f32 %v5271, %v5272
        %v5274 = vsel %vm1341, %v5234, 0.0
        %v5275 = vadd.f32 %v5273, %v5274
        %v5276 = vsel %vm1341, %v5235, 0.0
        %v5277 = vadd.f32 %v5275, %v5276
        %v5278 = vsel %vm1341, %v5236, 0.0
        %v5279 = vadd.f32 %v5277, %v5278
        %v5280 = vsel %vm1341, %v5237, 0.0
        %v5281 = vadd.f32 %v5279, %v5280
        %v5282 = vsel %vm1341, %v5238, 0.0
        %v5283 = vadd.f32 %v5281, %v5282
        %v5284 = vsel %vm1341, %v5239, 0.0
        %v5285 = vadd.f32 %v5283, %v5284
        %v5286 = vsel %vm1341, %v5240, 0.0
        %v5287 = vadd.f32 %v5285, %v5286
        %v5288 = vsel %vm1341, %v5241, 0.0
        %v5289 = vadd.f32 %v5287, %v5288
        %v5290 = vsel %vm1341, %v5242, 0.0
        %v5291 = vadd.f32 %v5289, %v5290
        %v5292 = vsel %vm1341, %v5243, 0.0
        %v5293 = vadd.f32 %v5291, %v5292
        %v5294 = vsel %vm1341, %v5244, 0.0
        %v5295 = vadd.f32 %v5293, %v5294
        %v5296 = vsel %vm1341, %v5245, 0.0
        %v5297 = vadd.f32 %v5295, %v5296
        %v5298 = vsel %vm1341, %v5246, 0.0
        %v5299 = vadd.f32 %v5297, %v5298
        %v5300 = vsel %vm1341, %v5247, 0.0
        %v5301 = vadd.f32 %v5299, %v5300
        %v5302 = vsel %vm1341, %v5248, 0.0
        %v5303 = vadd.f32 %v5301, %v5302
        %v5304 = vsel %vm1341, %v5249, 0.0
        %v5305 = vadd.f32 %v5303, %v5304
        %v5306 = vsel %vm1341, %v5250, 0.0
        %v5307 = vadd.f32 %v5305, %v5306
        %v5308 = vsel %vm1341, %v5251, 0.0
        %v5309 = vadd.f32 %v5307, %v5308
        %v5310 = vsel %vm1341, %v5252, 0.0
        %v5311 = vadd.f32 %v5309, %v5310
        %v5312 = vsel %vm1341, %v5253, 0.0
        %v5313 = vadd.f32 %v5311, %v5312
        %v5314 = vsel %vm1341, %v5254, 0.0
        %v5315 = vadd.f32 %v5313, %v5314
        %v5316 = vsel %vm1341, %v5255, 0.0
        %v5317 = vadd.f32 %v5315, %v5316
        %v5318 = vsel %vm1341, %v5256, 0.0
        %v5319 = vadd.f32 %v5317, %v5318
        %5320 = vadd.xlane.f32.xlu0 %v5319
        %v5321 = vpop.xlane.xlu0 %5320
        %v5322 = vrot.slane %v5321, 4
        %v5323 = vadd.f32 %v5321, %v5322
        %v5324 = vrot.slane %v5323, 2
        %v5325 = vadd.f32 %v5323, %v5324
        %v5326 = vrot.slane %v5325, 1
        %v5327 = vadd.f32 %v5325, %v5326
        %s5328 = vtos %v5327
        %s5329 = sadd.f32 %s4351, %s5328
        %v5330 = vlaneseq
        %v5331 = vshrl.u32 %v5330, 7
        %v5332 = vsub.s32 3, %v5331
        %v5333 = vrot.slane %v1052, %v5332
        %5335 = vrot.lane.b32.xlu0 %v5333, 8
        %v5336 = vpop.permute.xlu0 %5335
        %v5338 = vmul.f32 %v1052, %v5336
        %v5339 = vmul.f32 %v1053, %v5336
        %v5340 = vmul.f32 %v1054, %v5336
        %v5341 = vmul.f32 %v1055, %v5336
        %v5342 = vmul.f32 %v1056, %v5336
        %v5343 = vmul.f32 %v1057, %v5336
        %v5344 = vmul.f32 %v1058, %v5336
        %v5345 = vmul.f32 %v1059, %v5336
        %v5346 = vmul.f32 %v1060, %v5336
        %v5347 = vmul.f32 %v1061, %v5336
        %v5348 = vmul.f32 %v1062, %v5336
        %v5349 = vmul.f32 %v1063, %v5336
        %v5350 = vmul.f32 %v1064, %v5336
        %v5351 = vmul.f32 %v1065, %v5336
        %v5352 = vmul.f32 %v1066, %v5336
        %v5353 = vmul.f32 %v1067, %v5336
        %v5354 = vmul.f32 %v1068, %v5336
        %v5355 = vmul.f32 %v1069, %v5336
        %v5356 = vmul.f32 %v1070, %v5336
        %v5357 = vmul.f32 %v1071, %v5336
        %v5358 = vmul.f32 %v1072, %v5336
        %v5359 = vmul.f32 %v1073, %v5336
        %v5360 = vmul.f32 %v1074, %v5336
        %v5361 = vmul.f32 %v1075, %v5336
        %v5362 = vmul.f32 %v1076, %v5336
        %v5363 = vmul.f32 %v1077, %v5336
        %v5364 = vmul.f32 %v1078, %v5336
        %v5365 = vmul.f32 %v1079, %v5336
        %v5366 = vmul.f32 %v1080, %v5336
        %v5367 = vmul.f32 %v1081, %v5336
        %v5368 = vmul.f32 %v1082, %v5336
        %v5369 = vmul.f32 %v1083, %v5336
        %5402 = vrot.lane.b32.xlu0 %v5338, 111
        %v5403 = vpop.permute.xlu0 %5402
        %5404 = vrot.lane.b32.xlu0 %v5339, 111
        %v5405 = vpop.permute.xlu0 %5404
        %5406 = vrot.lane.b32.xlu0 %v5340, 111
        %v5407 = vpop.permute.xlu0 %5406
        %5408 = vrot.lane.b32.xlu0 %v5341, 111
        %v5409 = vpop.permute.xlu0 %5408
        %5410 = vrot.lane.b32.xlu0 %v5342, 111
        %v5411 = vpop.permute.xlu0 %5410
        %5412 = vrot.lane.b32.xlu0 %v5343, 111
        %v5413 = vpop.permute.xlu0 %5412
        %5414 = vrot.lane.b32.xlu0 %v5344, 111
        %v5415 = vpop.permute.xlu0 %5414
        %5416 = vrot.lane.b32.xlu0 %v5345, 111
        %v5417 = vpop.permute.xlu0 %5416
        %5418 = vrot.lane.b32.xlu0 %v5346, 111
        %v5419 = vpop.permute.xlu0 %5418
        %5420 = vrot.lane.b32.xlu0 %v5347, 111
        %v5421 = vpop.permute.xlu0 %5420
        %5422 = vrot.lane.b32.xlu0 %v5348, 111
        %v5423 = vpop.permute.xlu0 %5422
        %5424 = vrot.lane.b32.xlu0 %v5349, 111
        %v5425 = vpop.permute.xlu0 %5424
        %5426 = vrot.lane.b32.xlu0 %v5350, 111
        %v5427 = vpop.permute.xlu0 %5426
        %5428 = vrot.lane.b32.xlu0 %v5351, 111
        %v5429 = vpop.permute.xlu0 %5428
        %5430 = vrot.lane.b32.xlu0 %v5352, 111
        %v5431 = vpop.permute.xlu0 %5430
        %5432 = vrot.lane.b32.xlu0 %v5353, 111
        %v5433 = vpop.permute.xlu0 %5432
        %5434 = vrot.lane.b32.xlu0 %v5354, 111
        %v5435 = vpop.permute.xlu0 %5434
        %5436 = vrot.lane.b32.xlu0 %v5355, 111
        %v5437 = vpop.permute.xlu0 %5436
        %5438 = vrot.lane.b32.xlu0 %v5356, 111
        %v5439 = vpop.permute.xlu0 %5438
        %5440 = vrot.lane.b32.xlu0 %v5357, 111
        %v5441 = vpop.permute.xlu0 %5440
        %5442 = vrot.lane.b32.xlu0 %v5358, 111
        %v5443 = vpop.permute.xlu0 %5442
        %5444 = vrot.lane.b32.xlu0 %v5359, 111
        %v5445 = vpop.permute.xlu0 %5444
        %5446 = vrot.lane.b32.xlu0 %v5360, 111
        %v5447 = vpop.permute.xlu0 %5446
        %5448 = vrot.lane.b32.xlu0 %v5361, 111
        %v5449 = vpop.permute.xlu0 %5448
        %5450 = vrot.lane.b32.xlu0 %v5362, 111
        %v5451 = vpop.permute.xlu0 %5450
        %5452 = vrot.lane.b32.xlu0 %v5363, 111
        %v5453 = vpop.permute.xlu0 %5452
        %5454 = vrot.lane.b32.xlu0 %v5364, 111
        %v5455 = vpop.permute.xlu0 %5454
        %5456 = vrot.lane.b32.xlu0 %v5365, 111
        %v5457 = vpop.permute.xlu0 %5456
        %5458 = vrot.lane.b32.xlu0 %v5366, 111
        %v5459 = vpop.permute.xlu0 %5458
        %5460 = vrot.lane.b32.xlu0 %v5367, 111
        %v5461 = vpop.permute.xlu0 %5460
        %5462 = vrot.lane.b32.xlu0 %v5368, 111
        %v5463 = vpop.permute.xlu0 %5462
        %5464 = vrot.lane.b32.xlu0 %v5369, 111
        %v5465 = vpop.permute.xlu0 %5464
        %v5498 = vsel %vm455, %v5403, 0.0
        %5499 = vadd.xlane.f32.xlu0 %v5498
        %v5500 = vpop.xlane.xlu0 %5499
        %v5501 = vsel %vm455, %v5405, 0.0
        %5502 = vadd.xlane.f32.xlu0 %v5501
        %v5503 = vpop.xlane.xlu0 %5502
        %v5504 = vsel %vm455, %v5407, 0.0
        %5505 = vadd.xlane.f32.xlu0 %v5504
        %v5506 = vpop.xlane.xlu0 %5505
        %v5507 = vsel %vm455, %v5409, 0.0
        %5508 = vadd.xlane.f32.xlu0 %v5507
        %v5509 = vpop.xlane.xlu0 %5508
        %v5510 = vsel %vm455, %v5411, 0.0
        %5511 = vadd.xlane.f32.xlu0 %v5510
        %v5512 = vpop.xlane.xlu0 %5511
        %v5513 = vsel %vm455, %v5413, 0.0
        %5514 = vadd.xlane.f32.xlu0 %v5513
        %v5515 = vpop.xlane.xlu0 %5514
        %v5516 = vsel %vm455, %v5415, 0.0
        %5517 = vadd.xlane.f32.xlu0 %v5516
        %v5518 = vpop.xlane.xlu0 %5517
        %v5519 = vsel %vm455, %v5417, 0.0
        %5520 = vadd.xlane.f32.xlu0 %v5519
        %v5521 = vpop.xlane.xlu0 %5520
        %v5522 = vsel %vm455, %v5419, 0.0
        %5523 = vadd.xlane.f32.xlu0 %v5522
        %v5524 = vpop.xlane.xlu0 %5523
        %v5525 = vsel %vm455, %v5421, 0.0
        %5526 = vadd.xlane.f32.xlu0 %v5525
        %v5527 = vpop.xlane.xlu0 %5526
        %v5528 = vsel %vm455, %v5423, 0.0
        %5529 = vadd.xlane.f32.xlu0 %v5528
        %v5530 = vpop.xlane.xlu0 %5529
        %v5531 = vsel %vm455, %v5425, 0.0
        %5532 = vadd.xlane.f32.xlu0 %v5531
        %v5533 = vpop.xlane.xlu0 %5532
        %v5534 = vsel %vm455, %v5427, 0.0
        %5535 = vadd.xlane.f32.xlu0 %v5534
        %v5536 = vpop.xlane.xlu0 %5535
        %v5537 = vsel %vm455, %v5429, 0.0
        %5538 = vadd.xlane.f32.xlu0 %v5537
        %v5539 = vpop.xlane.xlu0 %5538
        %v5540 = vsel %vm455, %v5431, 0.0
        %5541 = vadd.xlane.f32.xlu0 %v5540
        %v5542 = vpop.xlane.xlu0 %5541
        %v5543 = vsel %vm455, %v5433, 0.0
        %5544 = vadd.xlane.f32.xlu0 %v5543
        %v5545 = vpop.xlane.xlu0 %5544
        %v5546 = vsel %vm455, %v5435, 0.0
        %5547 = vadd.xlane.f32.xlu0 %v5546
        %v5548 = vpop.xlane.xlu0 %5547
        %v5549 = vsel %vm455, %v5437, 0.0
        %5550 = vadd.xlane.f32.xlu0 %v5549
        %v5551 = vpop.xlane.xlu0 %5550
        %v5552 = vsel %vm455, %v5439, 0.0
        %5553 = vadd.xlane.f32.xlu0 %v5552
        %v5554 = vpop.xlane.xlu0 %5553
        %v5555 = vsel %vm455, %v5441, 0.0
        %5556 = vadd.xlane.f32.xlu0 %v5555
        %v5557 = vpop.xlane.xlu0 %5556
        %v5558 = vsel %vm455, %v5443, 0.0
        %5559 = vadd.xlane.f32.xlu0 %v5558
        %v5560 = vpop.xlane.xlu0 %5559
        %v5561 = vsel %vm455, %v5445, 0.0
        %5562 = vadd.xlane.f32.xlu0 %v5561
        %v5563 = vpop.xlane.xlu0 %5562
        %v5564 = vsel %vm455, %v5447, 0.0
        %5565 = vadd.xlane.f32.xlu0 %v5564
        %v5566 = vpop.xlane.xlu0 %5565
        %v5567 = vsel %vm455, %v5449, 0.0
        %5568 = vadd.xlane.f32.xlu0 %v5567
        %v5569 = vpop.xlane.xlu0 %5568
        %v5570 = vsel %vm455, %v5451, 0.0
        %5571 = vadd.xlane.f32.xlu0 %v5570
        %v5572 = vpop.xlane.xlu0 %5571
        %v5573 = vsel %vm455, %v5453, 0.0
        %5574 = vadd.xlane.f32.xlu0 %v5573
        %v5575 = vpop.xlane.xlu0 %5574
        %v5576 = vsel %vm455, %v5455, 0.0
        %5577 = vadd.xlane.f32.xlu0 %v5576
        %v5578 = vpop.xlane.xlu0 %5577
        %v5579 = vsel %vm455, %v5457, 0.0
        %5580 = vadd.xlane.f32.xlu0 %v5579
        %v5581 = vpop.xlane.xlu0 %5580
        %v5582 = vsel %vm455, %v5459, 0.0
        %5583 = vadd.xlane.f32.xlu0 %v5582
        %v5584 = vpop.xlane.xlu0 %5583
        %v5585 = vsel %vm455, %v5461, 0.0
        %5586 = vadd.xlane.f32.xlu0 %v5585
        %v5587 = vpop.xlane.xlu0 %5586
        %v5588 = vsel %vm455, %v5463, 0.0
        %5589 = vadd.xlane.f32.xlu0 %v5588
        %v5590 = vpop.xlane.xlu0 %5589
        %v5591 = vsel %vm455, %v5465, 0.0
        %5592 = vadd.xlane.f32.xlu0 %v5591
        %v5593 = vpop.xlane.xlu0 %5592
        %vm5594 = vcmp.eq.s32.totalorder %v951, 8
        %v5595 = vsel %vm5594, %v1116, 0.0
        %v5596 = vsel %vm5594, %v1117, 0.0
        %v5597 = vsel %vm5594, %v1118, 0.0
        %v5598 = vsel %vm5594, %v1119, 0.0
        %v5599 = vsel %vm5594, %v1120, 0.0
        %v5600 = vsel %vm5594, %v1121, 0.0
        %v5601 = vsel %vm5594, %v1122, 0.0
        %v5602 = vsel %vm5594, %v1123, 0.0
        %v5603 = vsel %vm5594, %v1124, 0.0
        %v5604 = vsel %vm5594, %v1125, 0.0
        %v5605 = vsel %vm5594, %v1126, 0.0
        %v5606 = vsel %vm5594, %v1127, 0.0
        %v5607 = vsel %vm5594, %v1128, 0.0
        %v5608 = vsel %vm5594, %v1129, 0.0
        %v5609 = vsel %vm5594, %v1130, 0.0
        %v5610 = vsel %vm5594, %v1131, 0.0
        %v5611 = vsel %vm5594, %v1132, 0.0
        %v5612 = vsel %vm5594, %v1133, 0.0
        %v5613 = vsel %vm5594, %v1134, 0.0
        %v5614 = vsel %vm5594, %v1135, 0.0
        %v5615 = vsel %vm5594, %v1136, 0.0
        %v5616 = vsel %vm5594, %v1137, 0.0
        %v5617 = vsel %vm5594, %v1138, 0.0
        %v5618 = vsel %vm5594, %v1139, 0.0
        %v5619 = vsel %vm5594, %v1140, 0.0
        %v5620 = vsel %vm5594, %v1141, 0.0
        %v5621 = vsel %vm5594, %v1142, 0.0
        %v5622 = vsel %vm5594, %v1143, 0.0
        %v5623 = vsel %vm5594, %v1144, 0.0
        %v5624 = vsel %vm5594, %v1145, 0.0
        %v5625 = vsel %vm5594, %v1146, 0.0
        %v5626 = vsel %vm5594, %v1147, 0.0
        %5627 = vadd.xlane.f32.xlu0 %v5595
        %v5628 = vpop.xlane.xlu0 %5627
        %5629 = vadd.xlane.f32.xlu0 %v5596
        %v5630 = vpop.xlane.xlu0 %5629
        %5631 = vadd.xlane.f32.xlu0 %v5597
        %v5632 = vpop.xlane.xlu0 %5631
        %5633 = vadd.xlane.f32.xlu0 %v5598
        %v5634 = vpop.xlane.xlu0 %5633
        %5635 = vadd.xlane.f32.xlu0 %v5599
        %v5636 = vpop.xlane.xlu0 %5635
        %5637 = vadd.xlane.f32.xlu0 %v5600
        %v5638 = vpop.xlane.xlu0 %5637
        %5639 = vadd.xlane.f32.xlu0 %v5601
        %v5640 = vpop.xlane.xlu0 %5639
        %5641 = vadd.xlane.f32.xlu0 %v5602
        %v5642 = vpop.xlane.xlu0 %5641
        %5643 = vadd.xlane.f32.xlu0 %v5603
        %v5644 = vpop.xlane.xlu0 %5643
        %5645 = vadd.xlane.f32.xlu0 %v5604
        %v5646 = vpop.xlane.xlu0 %5645
        %5647 = vadd.xlane.f32.xlu0 %v5605
        %v5648 = vpop.xlane.xlu0 %5647
        %5649 = vadd.xlane.f32.xlu0 %v5606
        %v5650 = vpop.xlane.xlu0 %5649
        %5651 = vadd.xlane.f32.xlu0 %v5607
        %v5652 = vpop.xlane.xlu0 %5651
        %5653 = vadd.xlane.f32.xlu0 %v5608
        %v5654 = vpop.xlane.xlu0 %5653
        %5655 = vadd.xlane.f32.xlu0 %v5609
        %v5656 = vpop.xlane.xlu0 %5655
        %5657 = vadd.xlane.f32.xlu0 %v5610
        %v5658 = vpop.xlane.xlu0 %5657
        %5659 = vadd.xlane.f32.xlu0 %v5611
        %v5660 = vpop.xlane.xlu0 %5659
        %5661 = vadd.xlane.f32.xlu0 %v5612
        %v5662 = vpop.xlane.xlu0 %5661
        %5663 = vadd.xlane.f32.xlu0 %v5613
        %v5664 = vpop.xlane.xlu0 %5663
        %5665 = vadd.xlane.f32.xlu0 %v5614
        %v5666 = vpop.xlane.xlu0 %5665
        %5667 = vadd.xlane.f32.xlu0 %v5615
        %v5668 = vpop.xlane.xlu0 %5667
        %5669 = vadd.xlane.f32.xlu0 %v5616
        %v5670 = vpop.xlane.xlu0 %5669
        %5671 = vadd.xlane.f32.xlu0 %v5617
        %v5672 = vpop.xlane.xlu0 %5671
        %5673 = vadd.xlane.f32.xlu0 %v5618
        %v5674 = vpop.xlane.xlu0 %5673
        %5675 = vadd.xlane.f32.xlu0 %v5619
        %v5676 = vpop.xlane.xlu0 %5675
        %5677 = vadd.xlane.f32.xlu0 %v5620
        %v5678 = vpop.xlane.xlu0 %5677
        %5679 = vadd.xlane.f32.xlu0 %v5621
        %v5680 = vpop.xlane.xlu0 %5679
        %5681 = vadd.xlane.f32.xlu0 %v5622
        %v5682 = vpop.xlane.xlu0 %5681
        %5683 = vadd.xlane.f32.xlu0 %v5623
        %v5684 = vpop.xlane.xlu0 %5683
        %5685 = vadd.xlane.f32.xlu0 %v5624
        %v5686 = vpop.xlane.xlu0 %5685
        %5687 = vadd.xlane.f32.xlu0 %v5625
        %v5688 = vpop.xlane.xlu0 %5687
        %5689 = vadd.xlane.f32.xlu0 %v5626
        %v5690 = vpop.xlane.xlu0 %5689
        %v5691 = vmax.f32 %v5500, 0.0
        %v5692 = vmax.f32 %v5503, 0.0
        %v5693 = vmax.f32 %v5506, 0.0
        %v5694 = vmax.f32 %v5509, 0.0
        %v5695 = vmax.f32 %v5512, 0.0
        %v5696 = vmax.f32 %v5515, 0.0
        %v5697 = vmax.f32 %v5518, 0.0
        %v5698 = vmax.f32 %v5521, 0.0
        %v5699 = vmax.f32 %v5524, 0.0
        %v5700 = vmax.f32 %v5527, 0.0
        %v5701 = vmax.f32 %v5530, 0.0
        %v5702 = vmax.f32 %v5533, 0.0
        %v5703 = vmax.f32 %v5536, 0.0
        %v5704 = vmax.f32 %v5539, 0.0
        %v5705 = vmax.f32 %v5542, 0.0
        %v5706 = vmax.f32 %v5545, 0.0
        %v5707 = vmax.f32 %v5548, 0.0
        %v5708 = vmax.f32 %v5551, 0.0
        %v5709 = vmax.f32 %v5554, 0.0
        %v5710 = vmax.f32 %v5557, 0.0
        %v5711 = vmax.f32 %v5560, 0.0
        %v5712 = vmax.f32 %v5563, 0.0
        %v5713 = vmax.f32 %v5566, 0.0
        %v5714 = vmax.f32 %v5569, 0.0
        %v5715 = vmax.f32 %v5572, 0.0
        %v5716 = vmax.f32 %v5575, 0.0
        %v5717 = vmax.f32 %v5578, 0.0
        %v5718 = vmax.f32 %v5581, 0.0
        %v5719 = vmax.f32 %v5584, 0.0
        %v5720 = vmax.f32 %v5587, 0.0
        %v5721 = vmax.f32 %v5590, 0.0
        %v5722 = vmax.f32 %v5593, 0.0
        %v5723 = vmul.f32 %v5500, %v5628
        %v5724 = vmul.f32 %v5503, %v5630
        %v5725 = vmul.f32 %v5506, %v5632
        %v5726 = vmul.f32 %v5509, %v5634
        %v5727 = vmul.f32 %v5512, %v5636
        %v5728 = vmul.f32 %v5515, %v5638
        %v5729 = vmul.f32 %v5518, %v5640
        %v5730 = vmul.f32 %v5521, %v5642
        %v5731 = vmul.f32 %v5524, %v5644
        %v5732 = vmul.f32 %v5527, %v5646
        %v5733 = vmul.f32 %v5530, %v5648
        %v5734 = vmul.f32 %v5533, %v5650
        %v5735 = vmul.f32 %v5536, %v5652
        %v5736 = vmul.f32 %v5539, %v5654
        %v5737 = vmul.f32 %v5542, %v5656
        %v5738 = vmul.f32 %v5545, %v5658
        %v5739 = vmul.f32 %v5548, %v5660
        %v5740 = vmul.f32 %v5551, %v5662
        %v5741 = vmul.f32 %v5554, %v5664
        %v5742 = vmul.f32 %v5557, %v5666
        %v5743 = vmul.f32 %v5560, %v5668
        %v5744 = vmul.f32 %v5563, %v5670
        %v5745 = vmul.f32 %v5566, %v5672
        %v5746 = vmul.f32 %v5569, %v5674
        %v5747 = vmul.f32 %v5572, %v5676
        %v5748 = vmul.f32 %v5575, %v5678
        %v5749 = vmul.f32 %v5578, %v5680
        %v5750 = vmul.f32 %v5581, %v5682
        %v5751 = vmul.f32 %v5584, %v5684
        %v5752 = vmul.f32 %v5587, %v5686
        %v5753 = vmul.f32 %v5590, %v5688
        %v5754 = vmul.f32 %v5593, %v5690
        %v5755 = vsub.f32 %v5691, %v5723
        %v5756 = vsub.f32 %v5692, %v5724
        %v5757 = vsub.f32 %v5693, %v5725
        %v5758 = vsub.f32 %v5694, %v5726
        %v5759 = vsub.f32 %v5695, %v5727
        %v5760 = vsub.f32 %v5696, %v5728
        %v5761 = vsub.f32 %v5697, %v5729
        %v5762 = vsub.f32 %v5698, %v5730
        %v5763 = vsub.f32 %v5699, %v5731
        %v5764 = vsub.f32 %v5700, %v5732
        %v5765 = vsub.f32 %v5701, %v5733
        %v5766 = vsub.f32 %v5702, %v5734
        %v5767 = vsub.f32 %v5703, %v5735
        %v5768 = vsub.f32 %v5704, %v5736
        %v5769 = vsub.f32 %v5705, %v5737
        %v5770 = vsub.f32 %v5706, %v5738
        %v5771 = vsub.f32 %v5707, %v5739
        %v5772 = vsub.f32 %v5708, %v5740
        %v5773 = vsub.f32 %v5709, %v5741
        %v5774 = vsub.f32 %v5710, %v5742
        %v5775 = vsub.f32 %v5711, %v5743
        %v5776 = vsub.f32 %v5712, %v5744
        %v5777 = vsub.f32 %v5713, %v5745
        %v5778 = vsub.f32 %v5714, %v5746
        %v5779 = vsub.f32 %v5715, %v5747
        %v5780 = vsub.f32 %v5716, %v5748
        %v5781 = vsub.f32 %v5717, %v5749
        %v5782 = vsub.f32 %v5718, %v5750
        %v5783 = vsub.f32 %v5719, %v5751
        %v5784 = vsub.f32 %v5720, %v5752
        %v5785 = vsub.f32 %v5721, %v5753
        %v5786 = vsub.f32 %v5722, %v5754
        %v5787 = vand.u32 2147483647, %v5500
        %v5788 = vand.u32 2147483647, %v5503
        %v5789 = vand.u32 2147483647, %v5506
        %v5790 = vand.u32 2147483647, %v5509
        %v5791 = vand.u32 2147483647, %v5512
        %v5792 = vand.u32 2147483647, %v5515
        %v5793 = vand.u32 2147483647, %v5518
        %v5794 = vand.u32 2147483647, %v5521
        %v5795 = vand.u32 2147483647, %v5524
        %v5796 = vand.u32 2147483647, %v5527
        %v5797 = vand.u32 2147483647, %v5530
        %v5798 = vand.u32 2147483647, %v5533
        %v5799 = vand.u32 2147483647, %v5536
        %v5800 = vand.u32 2147483647, %v5539
        %v5801 = vand.u32 2147483647, %v5542
        %v5802 = vand.u32 2147483647, %v5545
        %v5803 = vand.u32 2147483647, %v5548
        %v5804 = vand.u32 2147483647, %v5551
        %v5805 = vand.u32 2147483647, %v5554
        %v5806 = vand.u32 2147483647, %v5557
        %v5807 = vand.u32 2147483647, %v5560
        %v5808 = vand.u32 2147483647, %v5563
        %v5809 = vand.u32 2147483647, %v5566
        %v5810 = vand.u32 2147483647, %v5569
        %v5811 = vand.u32 2147483647, %v5572
        %v5812 = vand.u32 2147483647, %v5575
        %v5813 = vand.u32 2147483647, %v5578
        %v5814 = vand.u32 2147483647, %v5581
        %v5815 = vand.u32 2147483647, %v5584
        %v5816 = vand.u32 2147483647, %v5587
        %v5817 = vand.u32 2147483647, %v5590
        %v5818 = vand.u32 2147483647, %v5593
        %v5819 = vsub.f32 0.0, %v5787
        %v5820 = vsub.f32 0.0, %v5788
        %v5821 = vsub.f32 0.0, %v5789
        %v5822 = vsub.f32 0.0, %v5790
        %v5823 = vsub.f32 0.0, %v5791
        %v5824 = vsub.f32 0.0, %v5792
        %v5825 = vsub.f32 0.0, %v5793
        %v5826 = vsub.f32 0.0, %v5794
        %v5827 = vsub.f32 0.0, %v5795
        %v5828 = vsub.f32 0.0, %v5796
        %v5829 = vsub.f32 0.0, %v5797
        %v5830 = vsub.f32 0.0, %v5798
        %v5831 = vsub.f32 0.0, %v5799
        %v5832 = vsub.f32 0.0, %v5800
        %v5833 = vsub.f32 0.0, %v5801
        %v5834 = vsub.f32 0.0, %v5802
        %v5835 = vsub.f32 0.0, %v5803
        %v5836 = vsub.f32 0.0, %v5804
        %v5837 = vsub.f32 0.0, %v5805
        %v5838 = vsub.f32 0.0, %v5806
        %v5839 = vsub.f32 0.0, %v5807
        %v5840 = vsub.f32 0.0, %v5808
        %v5841 = vsub.f32 0.0, %v5809
        %v5842 = vsub.f32 0.0, %v5810
        %v5843 = vsub.f32 0.0, %v5811
        %v5844 = vsub.f32 0.0, %v5812
        %v5845 = vsub.f32 0.0, %v5813
        %v5846 = vsub.f32 0.0, %v5814
        %v5847 = vsub.f32 0.0, %v5815
        %v5848 = vsub.f32 0.0, %v5816
        %v5849 = vsub.f32 0.0, %v5817
        %v5850 = vsub.f32 0.0, %v5818
        %v5851 = vmul.f32 %v5819, 1.442695
        %v5852 = vpow.pop %v5851
        %v5853 = vmul.f32 %v5820, 1.442695
        %v5854 = vpow.pop %v5853
        %v5855 = vmul.f32 %v5821, 1.442695
        %v5856 = vpow.pop %v5855
        %v5857 = vmul.f32 %v5822, 1.442695
        %v5858 = vpow.pop %v5857
        %v5859 = vmul.f32 %v5823, 1.442695
        %v5860 = vpow.pop %v5859
        %v5861 = vmul.f32 %v5824, 1.442695
        %v5862 = vpow.pop %v5861
        %v5863 = vmul.f32 %v5825, 1.442695
        %v5864 = vpow.pop %v5863
        %v5865 = vmul.f32 %v5826, 1.442695
        %v5866 = vpow.pop %v5865
        %v5867 = vmul.f32 %v5827, 1.442695
        %v5868 = vpow.pop %v5867
        %v5869 = vmul.f32 %v5828, 1.442695
        %v5870 = vpow.pop %v5869
        %v5871 = vmul.f32 %v5829, 1.442695
        %v5872 = vpow.pop %v5871
        %v5873 = vmul.f32 %v5830, 1.442695
        %v5874 = vpow.pop %v5873
        %v5875 = vmul.f32 %v5831, 1.442695
        %v5876 = vpow.pop %v5875
        %v5877 = vmul.f32 %v5832, 1.442695
        %v5878 = vpow.pop %v5877
        %v5879 = vmul.f32 %v5833, 1.442695
        %v5880 = vpow.pop %v5879
        %v5881 = vmul.f32 %v5834, 1.442695
        %v5882 = vpow.pop %v5881
        %v5883 = vmul.f32 %v5835, 1.442695
        %v5884 = vpow.pop %v5883
        %v5885 = vmul.f32 %v5836, 1.442695
        %v5886 = vpow.pop %v5885
        %v5887 = vmul.f32 %v5837, 1.442695
        %v5888 = vpow.pop %v5887
        %v5889 = vmul.f32 %v5838, 1.442695
        %v5890 = vpow.pop %v5889
        %v5891 = vmul.f32 %v5839, 1.442695
        %v5892 = vpow.pop %v5891
        %v5893 = vmul.f32 %v5840, 1.442695
        %v5894 = vpow.pop %v5893
        %v5895 = vmul.f32 %v5841, 1.442695
        %v5896 = vpow.pop %v5895
        %v5897 = vmul.f32 %v5842, 1.442695
        %v5898 = vpow.pop %v5897
        %v5899 = vmul.f32 %v5843, 1.442695
        %v5900 = vpow.pop %v5899
        %v5901 = vmul.f32 %v5844, 1.442695
        %v5902 = vpow.pop %v5901
        %v5903 = vmul.f32 %v5845, 1.442695
        %v5904 = vpow.pop %v5903
        %v5905 = vmul.f32 %v5846, 1.442695
        %v5906 = vpow.pop %v5905
        %v5907 = vmul.f32 %v5847, 1.442695
        %v5908 = vpow.pop %v5907
        %v5909 = vmul.f32 %v5848, 1.442695
        %v5910 = vpow.pop %v5909
        %v5911 = vmul.f32 %v5849, 1.442695
        %v5912 = vpow.pop %v5911
        %v5913 = vmul.f32 %v5850, 1.442695
        %v5914 = vpow.pop %v5913
        %v5915 = vadd.f32 %v5852, 1.0
        %v5916 = vlog2.pop %v5915
        %v5917 = vmul.f32 %v5916, 0.6931472
        %v5918 = vmul.f32 -0.5, %v5852
        %v5919 = vadd.f32 %v5918, 1.0
        %v5920 = vmul.f32 %v5919, %v5852
        %v5921 = vand.u32 2147483647, %v5852
        %vm5922 = vcmp.lt.f32.partialorder %v5921, 0.0004427343
        %v5923 = vsel %vm5922, %v5920, %v5917
        %v5924 = vadd.f32 %v5854, 1.0
        %v5925 = vlog2.pop %v5924
        %v5926 = vmul.f32 %v5925, 0.6931472
        %v5927 = vmul.f32 -0.5, %v5854
        %v5928 = vadd.f32 %v5927, 1.0
        %v5929 = vmul.f32 %v5928, %v5854
        %v5930 = vand.u32 2147483647, %v5854
        %vm5931 = vcmp.lt.f32.partialorder %v5930, 0.0004427343
        %v5932 = vsel %vm5931, %v5929, %v5926
        %v5933 = vadd.f32 %v5856, 1.0
        %v5934 = vlog2.pop %v5933
        %v5935 = vmul.f32 %v5934, 0.6931472
        %v5936 = vmul.f32 -0.5, %v5856
        %v5937 = vadd.f32 %v5936, 1.0
        %v5938 = vmul.f32 %v5937, %v5856
        %v5939 = vand.u32 2147483647, %v5856
        %vm5940 = vcmp.lt.f32.partialorder %v5939, 0.0004427343
        %v5941 = vsel %vm5940, %v5938, %v5935
        %v5942 = vadd.f32 %v5858, 1.0
        %v5943 = vlog2.pop %v5942
        %v5944 = vmul.f32 %v5943, 0.6931472
        %v5945 = vmul.f32 -0.5, %v5858
        %v5946 = vadd.f32 %v5945, 1.0
        %v5947 = vmul.f32 %v5946, %v5858
        %v5948 = vand.u32 2147483647, %v5858
        %vm5949 = vcmp.lt.f32.partialorder %v5948, 0.0004427343
        %v5950 = vsel %vm5949, %v5947, %v5944
        %v5951 = vadd.f32 %v5860, 1.0
        %v5952 = vlog2.pop %v5951
        %v5953 = vmul.f32 %v5952, 0.6931472
        %v5954 = vmul.f32 -0.5, %v5860
        %v5955 = vadd.f32 %v5954, 1.0
        %v5956 = vmul.f32 %v5955, %v5860
        %v5957 = vand.u32 2147483647, %v5860
        %vm5958 = vcmp.lt.f32.partialorder %v5957, 0.0004427343
        %v5959 = vsel %vm5958, %v5956, %v5953
        %v5960 = vadd.f32 %v5862, 1.0
        %v5961 = vlog2.pop %v5960
        %v5962 = vmul.f32 %v5961, 0.6931472
        %v5963 = vmul.f32 -0.5, %v5862
        %v5964 = vadd.f32 %v5963, 1.0
        %v5965 = vmul.f32 %v5964, %v5862
        %v5966 = vand.u32 2147483647, %v5862
        %vm5967 = vcmp.lt.f32.partialorder %v5966, 0.0004427343
        %v5968 = vsel %vm5967, %v5965, %v5962
        %v5969 = vadd.f32 %v5864, 1.0
        %v5970 = vlog2.pop %v5969
        %v5971 = vmul.f32 %v5970, 0.6931472
        %v5972 = vmul.f32 -0.5, %v5864
        %v5973 = vadd.f32 %v5972, 1.0
        %v5974 = vmul.f32 %v5973, %v5864
        %v5975 = vand.u32 2147483647, %v5864
        %vm5976 = vcmp.lt.f32.partialorder %v5975, 0.0004427343
        %v5977 = vsel %vm5976, %v5974, %v5971
        %v5978 = vadd.f32 %v5866, 1.0
        %v5979 = vlog2.pop %v5978
        %v5980 = vmul.f32 %v5979, 0.6931472
        %v5981 = vmul.f32 -0.5, %v5866
        %v5982 = vadd.f32 %v5981, 1.0
        %v5983 = vmul.f32 %v5982, %v5866
        %v5984 = vand.u32 2147483647, %v5866
        %vm5985 = vcmp.lt.f32.partialorder %v5984, 0.0004427343
        %v5986 = vsel %vm5985, %v5983, %v5980
        %v5987 = vadd.f32 %v5868, 1.0
        %v5988 = vlog2.pop %v5987
        %v5989 = vmul.f32 %v5988, 0.6931472
        %v5990 = vmul.f32 -0.5, %v5868
        %v5991 = vadd.f32 %v5990, 1.0
        %v5992 = vmul.f32 %v5991, %v5868
        %v5993 = vand.u32 2147483647, %v5868
        %vm5994 = vcmp.lt.f32.partialorder %v5993, 0.0004427343
        %v5995 = vsel %vm5994, %v5992, %v5989
        %v5996 = vadd.f32 %v5870, 1.0
        %v5997 = vlog2.pop %v5996
        %v5998 = vmul.f32 %v5997, 0.6931472
        %v5999 = vmul.f32 -0.5, %v5870
        %v6000 = vadd.f32 %v5999, 1.0
        %v6001 = vmul.f32 %v6000, %v5870
        %v6002 = vand.u32 2147483647, %v5870
        %vm6003 = vcmp.lt.f32.partialorder %v6002, 0.0004427343
        %v6004 = vsel %vm6003, %v6001, %v5998
        %v6005 = vadd.f32 %v5872, 1.0
        %v6006 = vlog2.pop %v6005
        %v6007 = vmul.f32 %v6006, 0.6931472
        %v6008 = vmul.f32 -0.5, %v5872
        %v6009 = vadd.f32 %v6008, 1.0
        %v6010 = vmul.f32 %v6009, %v5872
        %v6011 = vand.u32 2147483647, %v5872
        %vm6012 = vcmp.lt.f32.partialorder %v6011, 0.0004427343
        %v6013 = vsel %vm6012, %v6010, %v6007
        %v6014 = vadd.f32 %v5874, 1.0
        %v6015 = vlog2.pop %v6014
        %v6016 = vmul.f32 %v6015, 0.6931472
        %v6017 = vmul.f32 -0.5, %v5874
        %v6018 = vadd.f32 %v6017, 1.0
        %v6019 = vmul.f32 %v6018, %v5874
        %v6020 = vand.u32 2147483647, %v5874
        %vm6021 = vcmp.lt.f32.partialorder %v6020, 0.0004427343
        %v6022 = vsel %vm6021, %v6019, %v6016
        %v6023 = vadd.f32 %v5876, 1.0
        %v6024 = vlog2.pop %v6023
        %v6025 = vmul.f32 %v6024, 0.6931472
        %v6026 = vmul.f32 -0.5, %v5876
        %v6027 = vadd.f32 %v6026, 1.0
        %v6028 = vmul.f32 %v6027, %v5876
        %v6029 = vand.u32 2147483647, %v5876
        %vm6030 = vcmp.lt.f32.partialorder %v6029, 0.0004427343
        %v6031 = vsel %vm6030, %v6028, %v6025
        %v6032 = vadd.f32 %v5878, 1.0
        %v6033 = vlog2.pop %v6032
        %v6034 = vmul.f32 %v6033, 0.6931472
        %v6035 = vmul.f32 -0.5, %v5878
        %v6036 = vadd.f32 %v6035, 1.0
        %v6037 = vmul.f32 %v6036, %v5878
        %v6038 = vand.u32 2147483647, %v5878
        %vm6039 = vcmp.lt.f32.partialorder %v6038, 0.0004427343
        %v6040 = vsel %vm6039, %v6037, %v6034
        %v6041 = vadd.f32 %v5880, 1.0
        %v6042 = vlog2.pop %v6041
        %v6043 = vmul.f32 %v6042, 0.6931472
        %v6044 = vmul.f32 -0.5, %v5880
        %v6045 = vadd.f32 %v6044, 1.0
        %v6046 = vmul.f32 %v6045, %v5880
        %v6047 = vand.u32 2147483647, %v5880
        %vm6048 = vcmp.lt.f32.partialorder %v6047, 0.0004427343
        %v6049 = vsel %vm6048, %v6046, %v6043
        %v6050 = vadd.f32 %v5882, 1.0
        %v6051 = vlog2.pop %v6050
        %v6052 = vmul.f32 %v6051, 0.6931472
        %v6053 = vmul.f32 -0.5, %v5882
        %v6054 = vadd.f32 %v6053, 1.0
        %v6055 = vmul.f32 %v6054, %v5882
        %v6056 = vand.u32 2147483647, %v5882
        %vm6057 = vcmp.lt.f32.partialorder %v6056, 0.0004427343
        %v6058 = vsel %vm6057, %v6055, %v6052
        %v6059 = vadd.f32 %v5884, 1.0
        %v6060 = vlog2.pop %v6059
        %v6061 = vmul.f32 %v6060, 0.6931472
        %v6062 = vmul.f32 -0.5, %v5884
        %v6063 = vadd.f32 %v6062, 1.0
        %v6064 = vmul.f32 %v6063, %v5884
        %v6065 = vand.u32 2147483647, %v5884
        %vm6066 = vcmp.lt.f32.partialorder %v6065, 0.0004427343
        %v6067 = vsel %vm6066, %v6064, %v6061
        %v6068 = vadd.f32 %v5886, 1.0
        %v6069 = vlog2.pop %v6068
        %v6070 = vmul.f32 %v6069, 0.6931472
        %v6071 = vmul.f32 -0.5, %v5886
        %v6072 = vadd.f32 %v6071, 1.0
        %v6073 = vmul.f32 %v6072, %v5886
        %v6074 = vand.u32 2147483647, %v5886
        %vm6075 = vcmp.lt.f32.partialorder %v6074, 0.0004427343
        %v6076 = vsel %vm6075, %v6073, %v6070
        %v6077 = vadd.f32 %v5888, 1.0
        %v6078 = vlog2.pop %v6077
        %v6079 = vmul.f32 %v6078, 0.6931472
        %v6080 = vmul.f32 -0.5, %v5888
        %v6081 = vadd.f32 %v6080, 1.0
        %v6082 = vmul.f32 %v6081, %v5888
        %v6083 = vand.u32 2147483647, %v5888
        %vm6084 = vcmp.lt.f32.partialorder %v6083, 0.0004427343
        %v6085 = vsel %vm6084, %v6082, %v6079
        %v6086 = vadd.f32 %v5890, 1.0
        %v6087 = vlog2.pop %v6086
        %v6088 = vmul.f32 %v6087, 0.6931472
        %v6089 = vmul.f32 -0.5, %v5890
        %v6090 = vadd.f32 %v6089, 1.0
        %v6091 = vmul.f32 %v6090, %v5890
        %v6092 = vand.u32 2147483647, %v5890
        %vm6093 = vcmp.lt.f32.partialorder %v6092, 0.0004427343
        %v6094 = vsel %vm6093, %v6091, %v6088
        %v6095 = vadd.f32 %v5892, 1.0
        %v6096 = vlog2.pop %v6095
        %v6097 = vmul.f32 %v6096, 0.6931472
        %v6098 = vmul.f32 -0.5, %v5892
        %v6099 = vadd.f32 %v6098, 1.0
        %v6100 = vmul.f32 %v6099, %v5892
        %v6101 = vand.u32 2147483647, %v5892
        %vm6102 = vcmp.lt.f32.partialorder %v6101, 0.0004427343
        %v6103 = vsel %vm6102, %v6100, %v6097
        %v6104 = vadd.f32 %v5894, 1.0
        %v6105 = vlog2.pop %v6104
        %v6106 = vmul.f32 %v6105, 0.6931472
        %v6107 = vmul.f32 -0.5, %v5894
        %v6108 = vadd.f32 %v6107, 1.0
        %v6109 = vmul.f32 %v6108, %v5894
        %v6110 = vand.u32 2147483647, %v5894
        %vm6111 = vcmp.lt.f32.partialorder %v6110, 0.0004427343
        %v6112 = vsel %vm6111, %v6109, %v6106
        %v6113 = vadd.f32 %v5896, 1.0
        %v6114 = vlog2.pop %v6113
        %v6115 = vmul.f32 %v6114, 0.6931472
        %v6116 = vmul.f32 -0.5, %v5896
        %v6117 = vadd.f32 %v6116, 1.0
        %v6118 = vmul.f32 %v6117, %v5896
        %v6119 = vand.u32 2147483647, %v5896
        %vm6120 = vcmp.lt.f32.partialorder %v6119, 0.0004427343
        %v6121 = vsel %vm6120, %v6118, %v6115
        %v6122 = vadd.f32 %v5898, 1.0
        %v6123 = vlog2.pop %v6122
        %v6124 = vmul.f32 %v6123, 0.6931472
        %v6125 = vmul.f32 -0.5, %v5898
        %v6126 = vadd.f32 %v6125, 1.0
        %v6127 = vmul.f32 %v6126, %v5898
        %v6128 = vand.u32 2147483647, %v5898
        %vm6129 = vcmp.lt.f32.partialorder %v6128, 0.0004427343
        %v6130 = vsel %vm6129, %v6127, %v6124
        %v6131 = vadd.f32 %v5900, 1.0
        %v6132 = vlog2.pop %v6131
        %v6133 = vmul.f32 %v6132, 0.6931472
        %v6134 = vmul.f32 -0.5, %v5900
        %v6135 = vadd.f32 %v6134, 1.0
        %v6136 = vmul.f32 %v6135, %v5900
        %v6137 = vand.u32 2147483647, %v5900
        %vm6138 = vcmp.lt.f32.partialorder %v6137, 0.0004427343
        %v6139 = vsel %vm6138, %v6136, %v6133
        %v6140 = vadd.f32 %v5902, 1.0
        %v6141 = vlog2.pop %v6140
        %v6142 = vmul.f32 %v6141, 0.6931472
        %v6143 = vmul.f32 -0.5, %v5902
        %v6144 = vadd.f32 %v6143, 1.0
        %v6145 = vmul.f32 %v6144, %v5902
        %v6146 = vand.u32 2147483647, %v5902
        %vm6147 = vcmp.lt.f32.partialorder %v6146, 0.0004427343
        %v6148 = vsel %vm6147, %v6145, %v6142
        %v6149 = vadd.f32 %v5904, 1.0
        %v6150 = vlog2.pop %v6149
        %v6151 = vmul.f32 %v6150, 0.6931472
        %v6152 = vmul.f32 -0.5, %v5904
        %v6153 = vadd.f32 %v6152, 1.0
        %v6154 = vmul.f32 %v6153, %v5904
        %v6155 = vand.u32 2147483647, %v5904
        %vm6156 = vcmp.lt.f32.partialorder %v6155, 0.0004427343
        %v6157 = vsel %vm6156, %v6154, %v6151
        %v6158 = vadd.f32 %v5906, 1.0
        %v6159 = vlog2.pop %v6158
        %v6160 = vmul.f32 %v6159, 0.6931472
        %v6161 = vmul.f32 -0.5, %v5906
        %v6162 = vadd.f32 %v6161, 1.0
        %v6163 = vmul.f32 %v6162, %v5906
        %v6164 = vand.u32 2147483647, %v5906
        %vm6165 = vcmp.lt.f32.partialorder %v6164, 0.0004427343
        %v6166 = vsel %vm6165, %v6163, %v6160
        %v6167 = vadd.f32 %v5908, 1.0
        %v6168 = vlog2.pop %v6167
        %v6169 = vmul.f32 %v6168, 0.6931472
        %v6170 = vmul.f32 -0.5, %v5908
        %v6171 = vadd.f32 %v6170, 1.0
        %v6172 = vmul.f32 %v6171, %v5908
        %v6173 = vand.u32 2147483647, %v5908
        %vm6174 = vcmp.lt.f32.partialorder %v6173, 0.0004427343
        %v6175 = vsel %vm6174, %v6172, %v6169
        %v6176 = vadd.f32 %v5910, 1.0
        %v6177 = vlog2.pop %v6176
        %v6178 = vmul.f32 %v6177, 0.6931472
        %v6179 = vmul.f32 -0.5, %v5910
        %v6180 = vadd.f32 %v6179, 1.0
        %v6181 = vmul.f32 %v6180, %v5910
        %v6182 = vand.u32 2147483647, %v5910
        %vm6183 = vcmp.lt.f32.partialorder %v6182, 0.0004427343
        %v6184 = vsel %vm6183, %v6181, %v6178
        %v6185 = vadd.f32 %v5912, 1.0
        %v6186 = vlog2.pop %v6185
        %v6187 = vmul.f32 %v6186, 0.6931472
        %v6188 = vmul.f32 -0.5, %v5912
        %v6189 = vadd.f32 %v6188, 1.0
        %v6190 = vmul.f32 %v6189, %v5912
        %v6191 = vand.u32 2147483647, %v5912
        %vm6192 = vcmp.lt.f32.partialorder %v6191, 0.0004427343
        %v6193 = vsel %vm6192, %v6190, %v6187
        %v6194 = vadd.f32 %v5914, 1.0
        %v6195 = vlog2.pop %v6194
        %v6196 = vmul.f32 %v6195, 0.6931472
        %v6197 = vmul.f32 -0.5, %v5914
        %v6198 = vadd.f32 %v6197, 1.0
        %v6199 = vmul.f32 %v6198, %v5914
        %v6200 = vand.u32 2147483647, %v5914
        %vm6201 = vcmp.lt.f32.partialorder %v6200, 0.0004427343
        %v6202 = vsel %vm6201, %v6199, %v6196
        %v6203 = vadd.f32 %v5755, %v5923
        %v6204 = vadd.f32 %v5756, %v5932
        %v6205 = vadd.f32 %v5757, %v5941
        %v6206 = vadd.f32 %v5758, %v5950
        %v6207 = vadd.f32 %v5759, %v5959
        %v6208 = vadd.f32 %v5760, %v5968
        %v6209 = vadd.f32 %v5761, %v5977
        %v6210 = vadd.f32 %v5762, %v5986
        %v6211 = vadd.f32 %v5763, %v5995
        %v6212 = vadd.f32 %v5764, %v6004
        %v6213 = vadd.f32 %v5765, %v6013
        %v6214 = vadd.f32 %v5766, %v6022
        %v6215 = vadd.f32 %v5767, %v6031
        %v6216 = vadd.f32 %v5768, %v6040
        %v6217 = vadd.f32 %v5769, %v6049
        %v6218 = vadd.f32 %v5770, %v6058
        %v6219 = vadd.f32 %v5771, %v6067
        %v6220 = vadd.f32 %v5772, %v6076
        %v6221 = vadd.f32 %v5773, %v6085
        %v6222 = vadd.f32 %v5774, %v6094
        %v6223 = vadd.f32 %v5775, %v6103
        %v6224 = vadd.f32 %v5776, %v6112
        %v6225 = vadd.f32 %v5777, %v6121
        %v6226 = vadd.f32 %v5778, %v6130
        %v6227 = vadd.f32 %v5779, %v6139
        %v6228 = vadd.f32 %v5780, %v6148
        %v6229 = vadd.f32 %v5781, %v6157
        %v6230 = vadd.f32 %v5782, %v6166
        %v6231 = vadd.f32 %v5783, %v6175
        %v6232 = vadd.f32 %v5784, %v6184
        %v6233 = vadd.f32 %v5785, %v6193
        %v6234 = vadd.f32 %v5786, %v6202
        %v6235 = vsel %vm1341, %v6203, 0.0
        %v6236 = vsel %vm1341, %v6204, 0.0
        %v6237 = vadd.f32 %v6235, %v6236
        %v6238 = vsel %vm1341, %v6205, 0.0
        %v6239 = vadd.f32 %v6237, %v6238
        %v6240 = vsel %vm1341, %v6206, 0.0
        %v6241 = vadd.f32 %v6239, %v6240
        %v6242 = vsel %vm1341, %v6207, 0.0
        %v6243 = vadd.f32 %v6241, %v6242
        %v6244 = vsel %vm1341, %v6208, 0.0
        %v6245 = vadd.f32 %v6243, %v6244
        %v6246 = vsel %vm1341, %v6209, 0.0
        %v6247 = vadd.f32 %v6245, %v6246
        %v6248 = vsel %vm1341, %v6210, 0.0
        %v6249 = vadd.f32 %v6247, %v6248
        %v6250 = vsel %vm1341, %v6211, 0.0
        %v6251 = vadd.f32 %v6249, %v6250
        %v6252 = vsel %vm1341, %v6212, 0.0
        %v6253 = vadd.f32 %v6251, %v6252
        %v6254 = vsel %vm1341, %v6213, 0.0
        %v6255 = vadd.f32 %v6253, %v6254
        %v6256 = vsel %vm1341, %v6214, 0.0
        %v6257 = vadd.f32 %v6255, %v6256
        %v6258 = vsel %vm1341, %v6215, 0.0
        %v6259 = vadd.f32 %v6257, %v6258
        %v6260 = vsel %vm1341, %v6216, 0.0
        %v6261 = vadd.f32 %v6259, %v6260
        %v6262 = vsel %vm1341, %v6217, 0.0
        %v6263 = vadd.f32 %v6261, %v6262
        %v6264 = vsel %vm1341, %v6218, 0.0
        %v6265 = vadd.f32 %v6263, %v6264
        %v6266 = vsel %vm1341, %v6219, 0.0
        %v6267 = vadd.f32 %v6265, %v6266
        %v6268 = vsel %vm1341, %v6220, 0.0
        %v6269 = vadd.f32 %v6267, %v6268
        %v6270 = vsel %vm1341, %v6221, 0.0
        %v6271 = vadd.f32 %v6269, %v6270
        %v6272 = vsel %vm1341, %v6222, 0.0
        %v6273 = vadd.f32 %v6271, %v6272
        %v6274 = vsel %vm1341, %v6223, 0.0
        %v6275 = vadd.f32 %v6273, %v6274
        %v6276 = vsel %vm1341, %v6224, 0.0
        %v6277 = vadd.f32 %v6275, %v6276
        %v6278 = vsel %vm1341, %v6225, 0.0
        %v6279 = vadd.f32 %v6277, %v6278
        %v6280 = vsel %vm1341, %v6226, 0.0
        %v6281 = vadd.f32 %v6279, %v6280
        %v6282 = vsel %vm1341, %v6227, 0.0
        %v6283 = vadd.f32 %v6281, %v6282
        %v6284 = vsel %vm1341, %v6228, 0.0
        %v6285 = vadd.f32 %v6283, %v6284
        %v6286 = vsel %vm1341, %v6229, 0.0
        %v6287 = vadd.f32 %v6285, %v6286
        %v6288 = vsel %vm1341, %v6230, 0.0
        %v6289 = vadd.f32 %v6287, %v6288
        %v6290 = vsel %vm1341, %v6231, 0.0
        %v6291 = vadd.f32 %v6289, %v6290
        %v6292 = vsel %vm1341, %v6232, 0.0
        %v6293 = vadd.f32 %v6291, %v6292
        %v6294 = vsel %vm1341, %v6233, 0.0
        %v6295 = vadd.f32 %v6293, %v6294
        %v6296 = vsel %vm1341, %v6234, 0.0
        %v6297 = vadd.f32 %v6295, %v6296
        %6298 = vadd.xlane.f32.xlu0 %v6297
        %v6299 = vpop.xlane.xlu0 %6298
        %v6300 = vrot.slane %v6299, 4
        %v6301 = vadd.f32 %v6299, %v6300
        %v6302 = vrot.slane %v6301, 2
        %v6303 = vadd.f32 %v6301, %v6302
        %v6304 = vrot.slane %v6303, 1
        %v6305 = vadd.f32 %v6303, %v6304
        %s6306 = vtos %v6305
        %s6307 = sadd.f32 %s5329, %s6306
        %vm6308 = vcmp.eq.s32.totalorder %v951, 0
        %v6309 = vstv %s1744
        %v6310 = vsel %vm6308, %v6309, 0.0
        %vm6311 = vcmp.eq.s32.totalorder %v951, 1
        %v6312 = vstv %s2395
        %v6313 = vsel %vm6311, %v6312, %v6310
        %vm6314 = vcmp.eq.s32.totalorder %v951, 2
        %v6315 = vstv %s6307
        %v6316 = vsel %vm6314, %v6315, %v6313
        %vm6317 = vcmp.eq.s32.totalorder %v951, 3
        %v6318 = vstv %s1413
        %v6319 = vsel %vm6317, %v6318, %v6316
        %6320 = vst [vmem:[%s333] sm:$0xff] %v6319
        %s6321 = smul.u32 32, %s22
        %p6322 = scmp.lt.s32.totalorder %s6321, 63
        %s6323 = scalar_select %p6322, %s6321, 63
        %s6324 = smul.addr %s6323, 8
        %s6325 = scalar_lea.vmem %s6, %s6324
        %p6326 = scmp.lt.s32.totalorder %s22, 1
        %s6327 = scalar_select %p6326, %s22, 1
        %s6328 = smul.addr %s6327, 8
        %s6329 = scalar_lea.vmem %s7, %s6328
        // Predicated region
        $region49: #{net_with_loss_preds.1} parent=43 // pred_check
          %p6330 = pneg %p176
        $region50: #{net_with_loss_preds.1} parent=43 // pred_check_branch
          %6332 = sbr.rel (%p6330) target = $region52
        $region51: #{net_with_loss_preds.1} parent=43 // pred_region
          %s6333 = smul.u32 32, %s22
        $region52: #{net_with_loss_preds.1} parent=43 // pred_fallthru
          _
        // Predicated region
        $region53: #{net_with_loss_preds.1} parent=43 // pred_check
          %p6334 = pneg %p202
        $region54: #{net_with_loss_preds.1} parent=43 // pred_check_branch
          %6336 = sbr.rel (%p6334) target = $region56
        $region55: #{net_with_loss_preds.1} parent=43 // pred_region
          _
        $region56: #{net_with_loss_preds.1} parent=43 // pred_fallthru
          _
      $region44: #{net_with_loss_preds.1} parent=5 // pred_fallthru
        _
      %p6337 = scmp.le.s32.totalorder 2, %s17
      // Predicated region
      $region57: #{net_with_loss_preds.1} parent=5 // pred_check
        %p6338 = pneg %p6337
      $region58: #{net_with_loss_preds.1} parent=5 // pred_check_branch
        %6340 = sbr.rel (%p6338) target = $region60
      $region59: #{net_with_loss_preds.1} parent=5 // pred_region
        %s6341 = ssub.s32 %s17, 2
        // Predicated region
        $region61: #{net_with_loss_preds.1} parent=59 // pred_check
          %p6342 = pneg %p182
        $region62: #{net_with_loss_preds.1} parent=59 // pred_check_branch
          %6344 = sbr.rel (%p6342) target = $region64
        $region63: #{net_with_loss_preds.1} parent=59 // pred_region
          %s6345 = smul.u32 32, %s23
          %p6346 = scmp.lt.s32.totalorder %s6345, 63
          %s6347 = scalar_select %p6346, %s6345, 63
          %s6348 = smul.addr %s6347, 8
          %s6349 = scalar_lea.vmem %s6, %s6348
        $region64: #{net_with_loss_preds.1} parent=59 // pred_fallthru
          _
        // Predicated region
        $region65: #{net_with_loss_preds.1} parent=59 // pred_check
          %p6350 = pneg %p208
        $region66: #{net_with_loss_preds.1} parent=59 // pred_check_branch
          %6352 = sbr.rel (%p6350) target = $region68
        $region67: #{net_with_loss_preds.1} parent=59 // pred_region
          %p6353 = scmp.lt.s32.totalorder %s23, 1
          %s6354 = scalar_select %p6353, %s23, 1
          %s6355 = smul.addr %s6354, 8
          %s6356 = scalar_lea.vmem %s7, %s6355
        $region68: #{net_with_loss_preds.1} parent=59 // pred_fallthru
          _
      $region60: #{net_with_loss_preds.1} parent=5 // pred_fallthru
        _
    $region6: #{net_with_loss_preds.1} parent=1 // loop_footer
      %s21 = sadd.s32 1, %s17
    $region7: #{net_with_loss_preds.1} parent=1 // loop_footer_branch
      %16 = sbr.rel target = $region3
    $region8: #{net_with_loss_preds.1} parent=1 // loop_exit
      _
    %6357 = vsyncpa [#allocation3], 1
    %s6358 = scalar_lea.sflag [#allocation3], 1
    %6359 = vsyncpa %s6358, 1

</llo_original>
